<compile_context>
chip_gen: v7x
topology: tpu7x:2x2x1
jax: 0.10.0
libtpu: 0.0.40
codegen_flags: <defaults>
</compile_context>

<pallas_src>
import jax
import jax.numpy as jnp
from jax.experimental import pallas as pl
from jax.experimental.pallas import tpu as pltpu


# ------------------------------ fused kernel ---------------------------------
def _make_fused_kernel(n_layers, seq_len, batch, hidden_dim, compute_dtype):
    """Builds the fused embedding + stacked-LSTM + FC kernel.

    Kernel ref order (after the scalar-prefetch ids ref):
      inputs : emb, (wx_0, wh_0, b_0), ..., (wx_{L-1}, wh_{L-1}, b_{L-1}),
               fc_w, fc_b, h0, c0
      outputs: logits, h_n, c_n
    """
    H = hidden_dim

    def kernel(ids_ref, *refs):
        it = iter(refs)
        emb_ref = next(it)
        layer_refs = [(next(it), next(it), next(it)) for _ in range(n_layers)]
        fcw_ref = next(it)
        fcb_ref = next(it)
        h0_ref = next(it)
        c0_ref = next(it)
        logits_ref = next(it)
        hn_ref = next(it)
        cn_ref = next(it)

        # ---- prologue: hoisted embedding gather (off the recurrent chain) ----
        xs = []
        for t in range(seq_len):
            rows = [emb_ref[pl.ds(ids_ref[b, t], 1), :] for b in range(batch)]
            xs.append(jnp.concatenate(rows, axis=0).astype(compute_dtype))  # (B,E)

        # layer-0 input projections are recurrence-independent: precompute them.
        wx0 = layer_refs[0][0][...]                                  # (E, 4H)
        zx0 = [jnp.dot(xs[t], wx0, preferred_element_type=jnp.float32)
               for t in range(seq_len)]                              # (B, 4H) f32

        # ---- recurrent state carried as vreg-resident Python locals ----------
        h = [h0_ref[l] for l in range(n_layers)]                     # (B, H) f32
        c = [c0_ref[l] for l in range(n_layers)]                     # (B, H) f32

        # ---- time loop (fully unrolled: seq_len small & static) --------------
        for t in range(seq_len):
            x = None
            for l in range(n_layers):
                wx_ref, wh_ref, b_ref = layer_refs[l]

                if l == 0:
                    zx = zx0[t]
                else:
                    zx = jnp.dot(x, wx_ref[...],
                                 preferred_element_type=jnp.float32)

                # fused gates: one lane-dense (B, 4H) result, f32 accumulation.
                z = (zx
                     + jnp.dot(h[l].astype(compute_dtype), wh_ref[...],
                               preferred_element_type=jnp.float32)
                     + b_ref[...])                                   # (B, 4H) f32

                # PyTorch gate order [i, f, g, o]; f32 gate math.
                i_g = jax.nn.sigmoid(z[:, 0 * H:1 * H])
                f_g = jax.nn.sigmoid(z[:, 1 * H:2 * H])
                g_g = jnp.tanh(z[:, 2 * H:3 * H])
                o_g = jax.nn.sigmoid(z[:, 3 * H:4 * H])

                c[l] = f_g * c[l] + i_g * g_g                        # f32 cell
                h[l] = o_g * jnp.tanh(c[l])
                x = h[l].astype(compute_dtype)                       # next layer

        # ---- epilogue: FC on last layer's final hidden state + state out -----
        h_last = h[n_layers - 1]                                     # == out[:, -1, :]
        logits_ref[...] = (
            jnp.dot(h_last.astype(compute_dtype), fcw_ref[...],
                    preferred_element_type=jnp.float32) + fcb_ref[...])
        for l in range(n_layers):
            hn_ref[l] = h[l]
            cn_ref[l] = c[l]

    return kernel


# ------------------------------ model wrapper ---------------------------------
def init_params(key, vocab_size, embedding_dim, hidden_dim, n_layers,
                compute_dtype=jnp.float32):
    """PyTorch-style LSTM init, repacked into fused-gate lane-dense weight slabs."""
    H = hidden_dim
    bound = float(hidden_dim) ** -0.5
    params = {}

    key, sub = jax.random.split(key)
    params["embedding"] = 0.1 * jax.random.normal(
        sub, (vocab_size, embedding_dim), jnp.float32)

    layers = []
    for l in range(n_layers):
        in_dim = embedding_dim if l == 0 else hidden_dim
        key, k1, k2, k3, k4 = jax.random.split(key, 5)
        w_ih = jax.random.uniform(k1, (4 * H, in_dim), jnp.float32, -bound, bound)
        w_hh = jax.random.uniform(k2, (4 * H, H), jnp.float32, -bound, bound)
        b_ih = jax.random.uniform(k3, (4 * H,), jnp.float32, -bound, bound)
        b_hh = jax.random.uniform(k4, (4 * H,), jnp.float32, -bound, bound)

        # Transpose -> gate columns stacked along the lane (N) dimension in
        # PyTorch order [i, f, g, o]; biases combined.
        layers.append(dict(
            wx=w_ih.T.astype(compute_dtype),                 # (in_dim, 4H)
            wh=w_hh.T.astype(compute_dtype),                 # (H, 4H)
            b=(b_ih + b_hh)[None, :]))                       # (1, 4H) f32
    params["lstm"] = layers

    key, k1, k2 = jax.random.split(key, 3)
    params["fc_w"] = jax.random.uniform(
        k1, (hidden_dim, vocab_size), jnp.float32, -bound, bound).astype(compute_dtype)
    params["fc_b"] = jax.random.uniform(
        k2, (1, vocab_size), jnp.float32, -bound, bound)
    return params


def forward(params, x_idx, hidden):
    """x_idx: (B, T) int token ids; hidden = (h0, c0), each (L, B, H).

    Returns (logits (B, vocab), (h_n (L,B,H), c_n (L,B,H))) -- same semantics as
    TextGenerationModel.forward with batch_first=True.
    """
    h0, c0 = hidden
    L, B, H = h0.shape
    T = x_idx.shape[1]
    V, E = params["embedding"].shape
    compute_dtype = params["lstm"][0]["wx"].dtype

    # Pad batch to a full sublane group (8 rows) so vector ops / MXU passes are
    # not sublane-sparse.  Padded rows gather embedding row 0; outputs sliced.
    B_pad = max(8, -(-B // 8) * 8)
    if B_pad != B:
        pad = B_pad - B
        x_idx = jnp.pad(x_idx, ((0, pad), (0, 0)))
        h0 = jnp.pad(h0, ((0, 0), (0, pad), (0, 0)))
        c0 = jnp.pad(c0, ((0, 0), (0, pad), (0, 0)))

    kernel = _make_fused_kernel(L, T, B_pad, H, compute_dtype)

    # Whole forward = one grid step; every operand is a full-array VMEM block.
    inputs = [params["embedding"]]
    in_specs = [pl.BlockSpec((V, E), lambda i, ids: (0, 0))]
    for lp in params["lstm"]:
        inputs += [lp["wx"], lp["wh"], lp["b"]]
        in_specs += [pl.BlockSpec(lp["wx"].shape, lambda i, ids: (0, 0)),
                     pl.BlockSpec(lp["wh"].shape, lambda i, ids: (0, 0)),
                     pl.BlockSpec(lp["b"].shape, lambda i, ids: (0, 0))]
    inputs += [params["fc_w"], params["fc_b"], h0, c0]
    in_specs += [pl.BlockSpec(params["fc_w"].shape, lambda i, ids: (0, 0)),
                 pl.BlockSpec(params["fc_b"].shape, lambda i, ids: (0, 0)),
                 pl.BlockSpec((L, B_pad, H), lambda i, ids: (0, 0, 0)),
                 pl.BlockSpec((L, B_pad, H), lambda i, ids: (0, 0, 0))]

    out_shape = (jax.ShapeDtypeStruct((B_pad, V), jnp.float32),
                 jax.ShapeDtypeStruct((L, B_pad, H), jnp.float32),
                 jax.ShapeDtypeStruct((L, B_pad, H), jnp.float32))
    out_specs = (pl.BlockSpec((B_pad, V), lambda i, ids: (0, 0)),
                 pl.BlockSpec((L, B_pad, H), lambda i, ids: (0, 0, 0)),
                 pl.BlockSpec((L, B_pad, H), lambda i, ids: (0, 0, 0)))

    grid_spec = pltpu.PrefetchScalarGridSpec(
        num_scalar_prefetch=1,                 # token ids -> SMEM
        grid=(1,),
        in_specs=in_specs,
        out_specs=out_specs)

    logits, h_n, c_n = pl.pallas_call(
        kernel,
        out_shape=out_shape,
        grid_spec=grid_spec,
        compiler_params=pltpu.CompilerParams(
            dimension_semantics=("arbitrary",)),   # recurrence is sequential
    )(x_idx.astype(jnp.int32), *inputs)

    return logits[:B], (h_n[:, :B, :], c_n[:, :B, :])


# ------------------------------ pure-JAX reference ----------------------------
def _reference_forward(params, x_idx, hidden):
    h0, c0 = hidden
    x = params["embedding"][x_idx]                   # (B, T, E)
    L, _, H = h0.shape
    T = x.shape[1]
    h = [h0[l] for l in range(L)]
    c = [c0[l] for l in range(L)]
    for t in range(T):
        inp = x[:, t, :]
        for l in range(L):
            wx = params["lstm"][l]["wx"].astype(jnp.float32)   # (in, 4H)
            wh = params["lstm"][l]["wh"].astype(jnp.float32)   # (H, 4H)
            b = params["lstm"][l]["b"]                          # (1, 4H)
            z = inp @ wx + h[l] @ wh + b
            i_g = jax.nn.sigmoid(z[:, 0 * H:1 * H])
            f_g = jax.nn.sigmoid(z[:, 1 * H:2 * H])
            g_g = jnp.tanh(z[:, 2 * H:3 * H])
            o_g = jax.nn.sigmoid(z[:, 3 * H:4 * H])
            c[l] = f_g * c[l] + i_g * g_g
            h[l] = o_g * jnp.tanh(c[l])
            inp = h[l]
    logits = h[-1] @ params["fc_w"].astype(jnp.float32) + params["fc_b"]
    return logits, (jnp.stack(h, axis=0), jnp.stack(c, axis=0))


if __name__ == "__main__":
    VOCAB, EMB, HID, LAYERS = 64, 32, 32, 2
    B, T = 2, 8

    key = jax.random.PRNGKey(0)
    key, k_params, k_tokens = jax.random.split(key, 3)

    # compute_dtype=jnp.bfloat16 is the recommended setting on v6e/v7x at
    # realistic sizes; float32 here for exact parity with the f32 reference.
    params = init_params(k_params, VOCAB, EMB, HID, LAYERS,
                         compute_dtype=jnp.float32)
    x_idx = jax.random.randint(k_tokens, (B, T), 0, VOCAB, dtype=jnp.int32)
    h0 = jnp.zeros((LAYERS, B, HID), jnp.float32)
    c0 = jnp.zeros((LAYERS, B, HID), jnp.float32)

    fwd = jax.jit(forward)
    logits, (h_n, c_n) = fwd(params, x_idx, (h0, c0))
    jax.block_until_ready((logits, h_n, c_n))

    assert logits.shape == (B, VOCAB)
    assert h_n.shape == (LAYERS, B, HID) and c_n.shape == (LAYERS, B, HID)

    ref_logits, (ref_h, ref_c) = _reference_forward(params, x_idx, (h0, c0))
    assert jnp.allclose(logits, ref_logits, atol=1e-3, rtol=1e-3), "logits mismatch"
    assert jnp.allclose(h_n, ref_h, atol=1e-3, rtol=1e-3), "h_n mismatch"
    assert jnp.allclose(c_n, ref_c, atol=1e-3, rtol=1e-3), "c_n mismatch"

    print("KERNEL_OK")
</pallas_src>

<mosaic_0001>
module attributes {stable_mosaic.version = 11 : i64} {
  func.func @kernel(%arg0: i32, %arg1: memref<8x8xi32, #tpu.memory_space<smem>>, %arg2: memref<64x32xf32, #tpu.memory_space<vmem>>, %arg3: memref<32x128xf32, #tpu.memory_space<vmem>>, %arg4: memref<32x128xf32, #tpu.memory_space<vmem>>, %arg5: memref<1x128xf32, #tpu.memory_space<vmem>>, %arg6: memref<32x128xf32, #tpu.memory_space<vmem>>, %arg7: memref<32x128xf32, #tpu.memory_space<vmem>>, %arg8: memref<1x128xf32, #tpu.memory_space<vmem>>, %arg9: memref<32x64xf32, #tpu.memory_space<vmem>>, %arg10: memref<1x64xf32, #tpu.memory_space<vmem>>, %arg11: memref<2x8x32xf32, #tpu.memory_space<vmem>>, %arg12: memref<2x8x32xf32, #tpu.memory_space<vmem>>, %arg13: memref<8x64xf32, #tpu.memory_space<vmem>>, %arg14: memref<2x8x32xf32, #tpu.memory_space<vmem>>, %arg15: memref<2x8x32xf32, #tpu.memory_space<vmem>>) attributes {dimension_semantics = [#tpu.dimension_semantics<arbitrary>], iteration_bounds = array<i64: 1>, scalar_prefetch = 1 : i64, scratch_operands = 0 : i64, tpu.core_type = #tpu.core_type<tc>, window_params = [{pipeline_mode = #tpu.pipeline_mode<synchronous>, transform_indices = @transform_0, window_bounds = array<i64: 64, 32>}, {pipeline_mode = #tpu.pipeline_mode<synchronous>, transform_indices = @transform_1, window_bounds = array<i64: 32, 128>}, {pipeline_mode = #tpu.pipeline_mode<synchronous>, transform_indices = @transform_2, window_bounds = array<i64: 32, 128>}, {pipeline_mode = #tpu.pipeline_mode<synchronous>, transform_indices = @transform_3, window_bounds = array<i64: 1, 128>}, {pipeline_mode = #tpu.pipeline_mode<synchronous>, transform_indices = @transform_4, window_bounds = array<i64: 32, 128>}, {pipeline_mode = #tpu.pipeline_mode<synchronous>, transform_indices = @transform_5, window_bounds = array<i64: 32, 128>}, {pipeline_mode = #tpu.pipeline_mode<synchronous>, transform_indices = @transform_6, window_bounds = array<i64: 1, 128>}, {pipeline_mode = #tpu.pipeline_mode<synchronous>, transform_indices = @transform_7, window_bounds = array<i64: 32, 64>}, {pipeline_mode = #tpu.pipeline_mode<synchronous>, transform_indices = @transform_8, window_bounds = array<i64: 1, 64>}, {pipeline_mode = #tpu.pipeline_mode<synchronous>, transform_indices = @transform_9, window_bounds = array<i64: 2, 8, 32>}, {pipeline_mode = #tpu.pipeline_mode<synchronous>, transform_indices = @transform_10, window_bounds = array<i64: 2, 8, 32>}, {pipeline_mode = #tpu.pipeline_mode<synchronous>, transform_indices = @transform_11, window_bounds = array<i64: 8, 64>}, {pipeline_mode = #tpu.pipeline_mode<synchronous>, transform_indices = @transform_12, window_bounds = array<i64: 2, 8, 32>}, {pipeline_mode = #tpu.pipeline_mode<synchronous>, transform_indices = @transform_13, window_bounds = array<i64: 2, 8, 32>}]} {
    %c0 = arith.constant 0 : index
    %c0_0 = arith.constant 0 : index
    %0 = memref.load %arg1[%c0, %c0_0] : memref<8x8xi32, #tpu.memory_space<smem>>
    %1 = arith.index_cast %0 : i32 to index
    %c0_1 = arith.constant 0 : index
    %2 = vector.load %arg2[%1, %c0_1] : memref<64x32xf32, #tpu.memory_space<vmem>>, vector<1x32xf32>
    %c1 = arith.constant 1 : index
    %c0_2 = arith.constant 0 : index
    %3 = memref.load %arg1[%c1, %c0_2] : memref<8x8xi32, #tpu.memory_space<smem>>
    %4 = arith.index_cast %3 : i32 to index
    %c0_3 = arith.constant 0 : index
    %5 = vector.load %arg2[%4, %c0_3] : memref<64x32xf32, #tpu.memory_space<vmem>>, vector<1x32xf32>
    %c2 = arith.constant 2 : index
    %c0_4 = arith.constant 0 : index
    %6 = memref.load %arg1[%c2, %c0_4] : memref<8x8xi32, #tpu.memory_space<smem>>
    %7 = arith.index_cast %6 : i32 to index
    %c0_5 = arith.constant 0 : index
    %8 = vector.load %arg2[%7, %c0_5] : memref<64x32xf32, #tpu.memory_space<vmem>>, vector<1x32xf32>
    %c3 = arith.constant 3 : index
    %c0_6 = arith.constant 0 : index
    %9 = memref.load %arg1[%c3, %c0_6] : memref<8x8xi32, #tpu.memory_space<smem>>
    %10 = arith.index_cast %9 : i32 to index
    %c0_7 = arith.constant 0 : index
    %11 = vector.load %arg2[%10, %c0_7] : memref<64x32xf32, #tpu.memory_space<vmem>>, vector<1x32xf32>
    %c4 = arith.constant 4 : index
    %c0_8 = arith.constant 0 : index
    %12 = memref.load %arg1[%c4, %c0_8] : memref<8x8xi32, #tpu.memory_space<smem>>
    %13 = arith.index_cast %12 : i32 to index
    %c0_9 = arith.constant 0 : index
    %14 = vector.load %arg2[%13, %c0_9] : memref<64x32xf32, #tpu.memory_space<vmem>>, vector<1x32xf32>
    %c5 = arith.constant 5 : index
    %c0_10 = arith.constant 0 : index
    %15 = memref.load %arg1[%c5, %c0_10] : memref<8x8xi32, #tpu.memory_space<smem>>
    %16 = arith.index_cast %15 : i32 to index
    %c0_11 = arith.constant 0 : index
    %17 = vector.load %arg2[%16, %c0_11] : memref<64x32xf32, #tpu.memory_space<vmem>>, vector<1x32xf32>
    %c6 = arith.constant 6 : index
    %c0_12 = arith.constant 0 : index
    %18 = memref.load %arg1[%c6, %c0_12] : memref<8x8xi32, #tpu.memory_space<smem>>
    %19 = arith.index_cast %18 : i32 to index
    %c0_13 = arith.constant 0 : index
    %20 = vector.load %arg2[%19, %c0_13] : memref<64x32xf32, #tpu.memory_space<vmem>>, vector<1x32xf32>
    %c7 = arith.constant 7 : index
    %c0_14 = arith.constant 0 : index
    %21 = memref.load %arg1[%c7, %c0_14] : memref<8x8xi32, #tpu.memory_space<smem>>
    %22 = arith.index_cast %21 : i32 to index
    %c0_15 = arith.constant 0 : index
    %23 = vector.load %arg2[%22, %c0_15] : memref<64x32xf32, #tpu.memory_space<vmem>>, vector<1x32xf32>
    %24 = tpu.concatenate %2, %5, %8, %11, %14, %17, %20, %23 in 0 : vector<1x32xf32>, vector<1x32xf32>, vector<1x32xf32>, vector<1x32xf32>, vector<1x32xf32>, vector<1x32xf32>, vector<1x32xf32>, vector<1x32xf32> -> vector<8x32xf32>
    %c0_16 = arith.constant 0 : index
    %c1_17 = arith.constant 1 : index
    %25 = memref.load %arg1[%c0_16, %c1_17] : memref<8x8xi32, #tpu.memory_space<smem>>
    %26 = arith.index_cast %25 : i32 to index
    %c0_18 = arith.constant 0 : index
    %27 = vector.load %arg2[%26, %c0_18] : memref<64x32xf32, #tpu.memory_space<vmem>>, vector<1x32xf32>
    %c1_19 = arith.constant 1 : index
    %c1_20 = arith.constant 1 : index
    %28 = memref.load %arg1[%c1_19, %c1_20] : memref<8x8xi32, #tpu.memory_space<smem>>
    %29 = arith.index_cast %28 : i32 to index
    %c0_21 = arith.constant 0 : index
    %30 = vector.load %arg2[%29, %c0_21] : memref<64x32xf32, #tpu.memory_space<vmem>>, vector<1x32xf32>
    %c2_22 = arith.constant 2 : index
    %c1_23 = arith.constant 1 : index
    %31 = memref.load %arg1[%c2_22, %c1_23] : memref<8x8xi32, #tpu.memory_space<smem>>
    %32 = arith.index_cast %31 : i32 to index
    %c0_24 = arith.constant 0 : index
    %33 = vector.load %arg2[%32, %c0_24] : memref<64x32xf32, #tpu.memory_space<vmem>>, vector<1x32xf32>
    %c3_25 = arith.constant 3 : index
    %c1_26 = arith.constant 1 : index
    %34 = memref.load %arg1[%c3_25, %c1_26] : memref<8x8xi32, #tpu.memory_space<smem>>
    %35 = arith.index_cast %34 : i32 to index
    %c0_27 = arith.constant 0 : index
    %36 = vector.load %arg2[%35, %c0_27] : memref<64x32xf32, #tpu.memory_space<vmem>>, vector<1x32xf32>
    %c4_28 = arith.constant 4 : index
    %c1_29 = arith.constant 1 : index
    %37 = memref.load %arg1[%c4_28, %c1_29] : memref<8x8xi32, #tpu.memory_space<smem>>
    %38 = arith.index_cast %37 : i32 to index
    %c0_30 = arith.constant 0 : index
    %39 = vector.load %arg2[%38, %c0_30] : memref<64x32xf32, #tpu.memory_space<vmem>>, vector<1x32xf32>
    %c5_31 = arith.constant 5 : index
    %c1_32 = arith.constant 1 : index
    %40 = memref.load %arg1[%c5_31, %c1_32] : memref<8x8xi32, #tpu.memory_space<smem>>
    %41 = arith.index_cast %40 : i32 to index
    %c0_33 = arith.constant 0 : index
    %42 = vector.load %arg2[%41, %c0_33] : memref<64x32xf32, #tpu.memory_space<vmem>>, vector<1x32xf32>
    %c6_34 = arith.constant 6 : index
    %c1_35 = arith.constant 1 : index
    %43 = memref.load %arg1[%c6_34, %c1_35] : memref<8x8xi32, #tpu.memory_space<smem>>
    %44 = arith.index_cast %43 : i32 to index
    %c0_36 = arith.constant 0 : index
    %45 = vector.load %arg2[%44, %c0_36] : memref<64x32xf32, #tpu.memory_space<vmem>>, vector<1x32xf32>
    %c7_37 = arith.constant 7 : index
    %c1_38 = arith.constant 1 : index
    %46 = memref.load %arg1[%c7_37, %c1_38] : memref<8x8xi32, #tpu.memory_space<smem>>
    %47 = arith.index_cast %46 : i32 to index
    %c0_39 = arith.constant 0 : index
    %48 = vector.load %arg2[%47, %c0_39] : memref<64x32xf32, #tpu.memory_space<vmem>>, vector<1x32xf32>
    %49 = tpu.concatenate %27, %30, %33, %36, %39, %42, %45, %48 in 0 : vector<1x32xf32>, vector<1x32xf32>, vector<1x32xf32>, vector<1x32xf32>, vector<1x32xf32>, vector<1x32xf32>, vector<1x32xf32>, vector<1x32xf32> -> vector<8x32xf32>
    %c0_40 = arith.constant 0 : index
    %c2_41 = arith.constant 2 : index
    %50 = memref.load %arg1[%c0_40, %c2_41] : memref<8x8xi32, #tpu.memory_space<smem>>
    %51 = arith.index_cast %50 : i32 to index
    %c0_42 = arith.constant 0 : index
    %52 = vector.load %arg2[%51, %c0_42] : memref<64x32xf32, #tpu.memory_space<vmem>>, vector<1x32xf32>
    %c1_43 = arith.constant 1 : index
    %c2_44 = arith.constant 2 : index
    %53 = memref.load %arg1[%c1_43, %c2_44] : memref<8x8xi32, #tpu.memory_space<smem>>
    %54 = arith.index_cast %53 : i32 to index
    %c0_45 = arith.constant 0 : index
    %55 = vector.load %arg2[%54, %c0_45] : memref<64x32xf32, #tpu.memory_space<vmem>>, vector<1x32xf32>
    %c2_46 = arith.constant 2 : index
    %c2_47 = arith.constant 2 : index
    %56 = memref.load %arg1[%c2_46, %c2_47] : memref<8x8xi32, #tpu.memory_space<smem>>
    %57 = arith.index_cast %56 : i32 to index
    %c0_48 = arith.constant 0 : index
    %58 = vector.load %arg2[%57, %c0_48] : memref<64x32xf32, #tpu.memory_space<vmem>>, vector<1x32xf32>
    %c3_49 = arith.constant 3 : index
    %c2_50 = arith.constant 2 : index
    %59 = memref.load %arg1[%c3_49, %c2_50] : memref<8x8xi32, #tpu.memory_space<smem>>
    %60 = arith.index_cast %59 : i32 to index
    %c0_51 = arith.constant 0 : index
    %61 = vector.load %arg2[%60, %c0_51] : memref<64x32xf32, #tpu.memory_space<vmem>>, vector<1x32xf32>
    %c4_52 = arith.constant 4 : index
    %c2_53 = arith.constant 2 : index
    %62 = memref.load %arg1[%c4_52, %c2_53] : memref<8x8xi32, #tpu.memory_space<smem>>
    %63 = arith.index_cast %62 : i32 to index
    %c0_54 = arith.constant 0 : index
    %64 = vector.load %arg2[%63, %c0_54] : memref<64x32xf32, #tpu.memory_space<vmem>>, vector<1x32xf32>
    %c5_55 = arith.constant 5 : index
    %c2_56 = arith.constant 2 : index
    %65 = memref.load %arg1[%c5_55, %c2_56] : memref<8x8xi32, #tpu.memory_space<smem>>
    %66 = arith.index_cast %65 : i32 to index
    %c0_57 = arith.constant 0 : index
    %67 = vector.load %arg2[%66, %c0_57] : memref<64x32xf32, #tpu.memory_space<vmem>>, vector<1x32xf32>
    %c6_58 = arith.constant 6 : index
    %c2_59 = arith.constant 2 : index
    %68 = memref.load %arg1[%c6_58, %c2_59] : memref<8x8xi32, #tpu.memory_space<smem>>
    %69 = arith.index_cast %68 : i32 to index
    %c0_60 = arith.constant 0 : index
    %70 = vector.load %arg2[%69, %c0_60] : memref<64x32xf32, #tpu.memory_space<vmem>>, vector<1x32xf32>
    %c7_61 = arith.constant 7 : index
    %c2_62 = arith.constant 2 : index
    %71 = memref.load %arg1[%c7_61, %c2_62] : memref<8x8xi32, #tpu.memory_space<smem>>
    %72 = arith.index_cast %71 : i32 to index
    %c0_63 = arith.constant 0 : index
    %73 = vector.load %arg2[%72, %c0_63] : memref<64x32xf32, #tpu.memory_space<vmem>>, vector<1x32xf32>
    %74 = tpu.concatenate %52, %55, %58, %61, %64, %67, %70, %73 in 0 : vector<1x32xf32>, vector<1x32xf32>, vector<1x32xf32>, vector<1x32xf32>, vector<1x32xf32>, vector<1x32xf32>, vector<1x32xf32>, vector<1x32xf32> -> vector<8x32xf32>
    %c0_64 = arith.constant 0 : index
    %c3_65 = arith.constant 3 : index
    %75 = memref.load %arg1[%c0_64, %c3_65] : memref<8x8xi32, #tpu.memory_space<smem>>
    %76 = arith.index_cast %75 : i32 to index
    %c0_66 = arith.constant 0 : index
    %77 = vector.load %arg2[%76, %c0_66] : memref<64x32xf32, #tpu.memory_space<vmem>>, vector<1x32xf32>
    %c1_67 = arith.constant 1 : index
    %c3_68 = arith.constant 3 : index
    %78 = memref.load %arg1[%c1_67, %c3_68] : memref<8x8xi32, #tpu.memory_space<smem>>
    %79 = arith.index_cast %78 : i32 to index
    %c0_69 = arith.constant 0 : index
    %80 = vector.load %arg2[%79, %c0_69] : memref<64x32xf32, #tpu.memory_space<vmem>>, vector<1x32xf32>
    %c2_70 = arith.constant 2 : index
    %c3_71 = arith.constant 3 : index
    %81 = memref.load %arg1[%c2_70, %c3_71] : memref<8x8xi32, #tpu.memory_space<smem>>
    %82 = arith.index_cast %81 : i32 to index
    %c0_72 = arith.constant 0 : index
    %83 = vector.load %arg2[%82, %c0_72] : memref<64x32xf32, #tpu.memory_space<vmem>>, vector<1x32xf32>
    %c3_73 = arith.constant 3 : index
    %c3_74 = arith.constant 3 : index
    %84 = memref.load %arg1[%c3_73, %c3_74] : memref<8x8xi32, #tpu.memory_space<smem>>
    %85 = arith.index_cast %84 : i32 to index
    %c0_75 = arith.constant 0 : index
    %86 = vector.load %arg2[%85, %c0_75] : memref<64x32xf32, #tpu.memory_space<vmem>>, vector<1x32xf32>
    %c4_76 = arith.constant 4 : index
    %c3_77 = arith.constant 3 : index
    %87 = memref.load %arg1[%c4_76, %c3_77] : memref<8x8xi32, #tpu.memory_space<smem>>
    %88 = arith.index_cast %87 : i32 to index
    %c0_78 = arith.constant 0 : index
    %89 = vector.load %arg2[%88, %c0_78] : memref<64x32xf32, #tpu.memory_space<vmem>>, vector<1x32xf32>
    %c5_79 = arith.constant 5 : index
    %c3_80 = arith.constant 3 : index
    %90 = memref.load %arg1[%c5_79, %c3_80] : memref<8x8xi32, #tpu.memory_space<smem>>
    %91 = arith.index_cast %90 : i32 to index
    %c0_81 = arith.constant 0 : index
    %92 = vector.load %arg2[%91, %c0_81] : memref<64x32xf32, #tpu.memory_space<vmem>>, vector<1x32xf32>
    %c6_82 = arith.constant 6 : index
    %c3_83 = arith.constant 3 : index
    %93 = memref.load %arg1[%c6_82, %c3_83] : memref<8x8xi32, #tpu.memory_space<smem>>
    %94 = arith.index_cast %93 : i32 to index
    %c0_84 = arith.constant 0 : index
    %95 = vector.load %arg2[%94, %c0_84] : memref<64x32xf32, #tpu.memory_space<vmem>>, vector<1x32xf32>
    %c7_85 = arith.constant 7 : index
    %c3_86 = arith.constant 3 : index
    %96 = memref.load %arg1[%c7_85, %c3_86] : memref<8x8xi32, #tpu.memory_space<smem>>
    %97 = arith.index_cast %96 : i32 to index
    %c0_87 = arith.constant 0 : index
    %98 = vector.load %arg2[%97, %c0_87] : memref<64x32xf32, #tpu.memory_space<vmem>>, vector<1x32xf32>
    %99 = tpu.concatenate %77, %80, %83, %86, %89, %92, %95, %98 in 0 : vector<1x32xf32>, vector<1x32xf32>, vector<1x32xf32>, vector<1x32xf32>, vector<1x32xf32>, vector<1x32xf32>, vector<1x32xf32>, vector<1x32xf32> -> vector<8x32xf32>
    %c0_88 = arith.constant 0 : index
    %c4_89 = arith.constant 4 : index
    %100 = memref.load %arg1[%c0_88, %c4_89] : memref<8x8xi32, #tpu.memory_space<smem>>
    %101 = arith.index_cast %100 : i32 to index
    %c0_90 = arith.constant 0 : index
    %102 = vector.load %arg2[%101, %c0_90] : memref<64x32xf32, #tpu.memory_space<vmem>>, vector<1x32xf32>
    %c1_91 = arith.constant 1 : index
    %c4_92 = arith.constant 4 : index
    %103 = memref.load %arg1[%c1_91, %c4_92] : memref<8x8xi32, #tpu.memory_space<smem>>
    %104 = arith.index_cast %103 : i32 to index
    %c0_93 = arith.constant 0 : index
    %105 = vector.load %arg2[%104, %c0_93] : memref<64x32xf32, #tpu.memory_space<vmem>>, vector<1x32xf32>
    %c2_94 = arith.constant 2 : index
    %c4_95 = arith.constant 4 : index
    %106 = memref.load %arg1[%c2_94, %c4_95] : memref<8x8xi32, #tpu.memory_space<smem>>
    %107 = arith.index_cast %106 : i32 to index
    %c0_96 = arith.constant 0 : index
    %108 = vector.load %arg2[%107, %c0_96] : memref<64x32xf32, #tpu.memory_space<vmem>>, vector<1x32xf32>
    %c3_97 = arith.constant 3 : index
    %c4_98 = arith.constant 4 : index
    %109 = memref.load %arg1[%c3_97, %c4_98] : memref<8x8xi32, #tpu.memory_space<smem>>
    %110 = arith.index_cast %109 : i32 to index
    %c0_99 = arith.constant 0 : index
    %111 = vector.load %arg2[%110, %c0_99] : memref<64x32xf32, #tpu.memory_space<vmem>>, vector<1x32xf32>
    %c4_100 = arith.constant 4 : index
    %c4_101 = arith.constant 4 : index
    %112 = memref.load %arg1[%c4_100, %c4_101] : memref<8x8xi32, #tpu.memory_space<smem>>
    %113 = arith.index_cast %112 : i32 to index
    %c0_102 = arith.constant 0 : index
    %114 = vector.load %arg2[%113, %c0_102] : memref<64x32xf32, #tpu.memory_space<vmem>>, vector<1x32xf32>
    %c5_103 = arith.constant 5 : index
    %c4_104 = arith.constant 4 : index
    %115 = memref.load %arg1[%c5_103, %c4_104] : memref<8x8xi32, #tpu.memory_space<smem>>
    %116 = arith.index_cast %115 : i32 to index
    %c0_105 = arith.constant 0 : index
    %117 = vector.load %arg2[%116, %c0_105] : memref<64x32xf32, #tpu.memory_space<vmem>>, vector<1x32xf32>
    %c6_106 = arith.constant 6 : index
    %c4_107 = arith.constant 4 : index
    %118 = memref.load %arg1[%c6_106, %c4_107] : memref<8x8xi32, #tpu.memory_space<smem>>
    %119 = arith.index_cast %118 : i32 to index
    %c0_108 = arith.constant 0 : index
    %120 = vector.load %arg2[%119, %c0_108] : memref<64x32xf32, #tpu.memory_space<vmem>>, vector<1x32xf32>
    %c7_109 = arith.constant 7 : index
    %c4_110 = arith.constant 4 : index
    %121 = memref.load %arg1[%c7_109, %c4_110] : memref<8x8xi32, #tpu.memory_space<smem>>
    %122 = arith.index_cast %121 : i32 to index
    %c0_111 = arith.constant 0 : index
    %123 = vector.load %arg2[%122, %c0_111] : memref<64x32xf32, #tpu.memory_space<vmem>>, vector<1x32xf32>
    %124 = tpu.concatenate %102, %105, %108, %111, %114, %117, %120, %123 in 0 : vector<1x32xf32>, vector<1x32xf32>, vector<1x32xf32>, vector<1x32xf32>, vector<1x32xf32>, vector<1x32xf32>, vector<1x32xf32>, vector<1x32xf32> -> vector<8x32xf32>
    %c0_112 = arith.constant 0 : index
    %c5_113 = arith.constant 5 : index
    %125 = memref.load %arg1[%c0_112, %c5_113] : memref<8x8xi32, #tpu.memory_space<smem>>
    %126 = arith.index_cast %125 : i32 to index
    %c0_114 = arith.constant 0 : index
    %127 = vector.load %arg2[%126, %c0_114] : memref<64x32xf32, #tpu.memory_space<vmem>>, vector<1x32xf32>
    %c1_115 = arith.constant 1 : index
    %c5_116 = arith.constant 5 : index
    %128 = memref.load %arg1[%c1_115, %c5_116] : memref<8x8xi32, #tpu.memory_space<smem>>
    %129 = arith.index_cast %128 : i32 to index
    %c0_117 = arith.constant 0 : index
    %130 = vector.load %arg2[%129, %c0_117] : memref<64x32xf32, #tpu.memory_space<vmem>>, vector<1x32xf32>
    %c2_118 = arith.constant 2 : index
    %c5_119 = arith.constant 5 : index
    %131 = memref.load %arg1[%c2_118, %c5_119] : memref<8x8xi32, #tpu.memory_space<smem>>
    %132 = arith.index_cast %131 : i32 to index
    %c0_120 = arith.constant 0 : index
    %133 = vector.load %arg2[%132, %c0_120] : memref<64x32xf32, #tpu.memory_space<vmem>>, vector<1x32xf32>
    %c3_121 = arith.constant 3 : index
    %c5_122 = arith.constant 5 : index
    %134 = memref.load %arg1[%c3_121, %c5_122] : memref<8x8xi32, #tpu.memory_space<smem>>
    %135 = arith.index_cast %134 : i32 to index
    %c0_123 = arith.constant 0 : index
    %136 = vector.load %arg2[%135, %c0_123] : memref<64x32xf32, #tpu.memory_space<vmem>>, vector<1x32xf32>
    %c4_124 = arith.constant 4 : index
    %c5_125 = arith.constant 5 : index
    %137 = memref.load %arg1[%c4_124, %c5_125] : memref<8x8xi32, #tpu.memory_space<smem>>
    %138 = arith.index_cast %137 : i32 to index
    %c0_126 = arith.constant 0 : index
    %139 = vector.load %arg2[%138, %c0_126] : memref<64x32xf32, #tpu.memory_space<vmem>>, vector<1x32xf32>
    %c5_127 = arith.constant 5 : index
    %c5_128 = arith.constant 5 : index
    %140 = memref.load %arg1[%c5_127, %c5_128] : memref<8x8xi32, #tpu.memory_space<smem>>
    %141 = arith.index_cast %140 : i32 to index
    %c0_129 = arith.constant 0 : index
    %142 = vector.load %arg2[%141, %c0_129] : memref<64x32xf32, #tpu.memory_space<vmem>>, vector<1x32xf32>
    %c6_130 = arith.constant 6 : index
    %c5_131 = arith.constant 5 : index
    %143 = memref.load %arg1[%c6_130, %c5_131] : memref<8x8xi32, #tpu.memory_space<smem>>
    %144 = arith.index_cast %143 : i32 to index
    %c0_132 = arith.constant 0 : index
    %145 = vector.load %arg2[%144, %c0_132] : memref<64x32xf32, #tpu.memory_space<vmem>>, vector<1x32xf32>
    %c7_133 = arith.constant 7 : index
    %c5_134 = arith.constant 5 : index
    %146 = memref.load %arg1[%c7_133, %c5_134] : memref<8x8xi32, #tpu.memory_space<smem>>
    %147 = arith.index_cast %146 : i32 to index
    %c0_135 = arith.constant 0 : index
    %148 = vector.load %arg2[%147, %c0_135] : memref<64x32xf32, #tpu.memory_space<vmem>>, vector<1x32xf32>
    %149 = tpu.concatenate %127, %130, %133, %136, %139, %142, %145, %148 in 0 : vector<1x32xf32>, vector<1x32xf32>, vector<1x32xf32>, vector<1x32xf32>, vector<1x32xf32>, vector<1x32xf32>, vector<1x32xf32>, vector<1x32xf32> -> vector<8x32xf32>
    %c0_136 = arith.constant 0 : index
    %c6_137 = arith.constant 6 : index
    %150 = memref.load %arg1[%c0_136, %c6_137] : memref<8x8xi32, #tpu.memory_space<smem>>
    %151 = arith.index_cast %150 : i32 to index
    %c0_138 = arith.constant 0 : index
    %152 = vector.load %arg2[%151, %c0_138] : memref<64x32xf32, #tpu.memory_space<vmem>>, vector<1x32xf32>
    %c1_139 = arith.constant 1 : index
    %c6_140 = arith.constant 6 : index
    %153 = memref.load %arg1[%c1_139, %c6_140] : memref<8x8xi32, #tpu.memory_space<smem>>
    %154 = arith.index_cast %153 : i32 to index
    %c0_141 = arith.constant 0 : index
    %155 = vector.load %arg2[%154, %c0_141] : memref<64x32xf32, #tpu.memory_space<vmem>>, vector<1x32xf32>
    %c2_142 = arith.constant 2 : index
    %c6_143 = arith.constant 6 : index
    %156 = memref.load %arg1[%c2_142, %c6_143] : memref<8x8xi32, #tpu.memory_space<smem>>
    %157 = arith.index_cast %156 : i32 to index
    %c0_144 = arith.constant 0 : index
    %158 = vector.load %arg2[%157, %c0_144] : memref<64x32xf32, #tpu.memory_space<vmem>>, vector<1x32xf32>
    %c3_145 = arith.constant 3 : index
    %c6_146 = arith.constant 6 : index
    %159 = memref.load %arg1[%c3_145, %c6_146] : memref<8x8xi32, #tpu.memory_space<smem>>
    %160 = arith.index_cast %159 : i32 to index
    %c0_147 = arith.constant 0 : index
    %161 = vector.load %arg2[%160, %c0_147] : memref<64x32xf32, #tpu.memory_space<vmem>>, vector<1x32xf32>
    %c4_148 = arith.constant 4 : index
    %c6_149 = arith.constant 6 : index
    %162 = memref.load %arg1[%c4_148, %c6_149] : memref<8x8xi32, #tpu.memory_space<smem>>
    %163 = arith.index_cast %162 : i32 to index
    %c0_150 = arith.constant 0 : index
    %164 = vector.load %arg2[%163, %c0_150] : memref<64x32xf32, #tpu.memory_space<vmem>>, vector<1x32xf32>
    %c5_151 = arith.constant 5 : index
    %c6_152 = arith.constant 6 : index
    %165 = memref.load %arg1[%c5_151, %c6_152] : memref<8x8xi32, #tpu.memory_space<smem>>
    %166 = arith.index_cast %165 : i32 to index
    %c0_153 = arith.constant 0 : index
    %167 = vector.load %arg2[%166, %c0_153] : memref<64x32xf32, #tpu.memory_space<vmem>>, vector<1x32xf32>
    %c6_154 = arith.constant 6 : index
    %c6_155 = arith.constant 6 : index
    %168 = memref.load %arg1[%c6_154, %c6_155] : memref<8x8xi32, #tpu.memory_space<smem>>
    %169 = arith.index_cast %168 : i32 to index
    %c0_156 = arith.constant 0 : index
    %170 = vector.load %arg2[%169, %c0_156] : memref<64x32xf32, #tpu.memory_space<vmem>>, vector<1x32xf32>
    %c7_157 = arith.constant 7 : index
    %c6_158 = arith.constant 6 : index
    %171 = memref.load %arg1[%c7_157, %c6_158] : memref<8x8xi32, #tpu.memory_space<smem>>
    %172 = arith.index_cast %171 : i32 to index
    %c0_159 = arith.constant 0 : index
    %173 = vector.load %arg2[%172, %c0_159] : memref<64x32xf32, #tpu.memory_space<vmem>>, vector<1x32xf32>
    %174 = tpu.concatenate %152, %155, %158, %161, %164, %167, %170, %173 in 0 : vector<1x32xf32>, vector<1x32xf32>, vector<1x32xf32>, vector<1x32xf32>, vector<1x32xf32>, vector<1x32xf32>, vector<1x32xf32>, vector<1x32xf32> -> vector<8x32xf32>
    %c0_160 = arith.constant 0 : index
    %c7_161 = arith.constant 7 : index
    %175 = memref.load %arg1[%c0_160, %c7_161] : memref<8x8xi32, #tpu.memory_space<smem>>
    %176 = arith.index_cast %175 : i32 to index
    %c0_162 = arith.constant 0 : index
    %177 = vector.load %arg2[%176, %c0_162] : memref<64x32xf32, #tpu.memory_space<vmem>>, vector<1x32xf32>
    %c1_163 = arith.constant 1 : index
    %c7_164 = arith.constant 7 : index
    %178 = memref.load %arg1[%c1_163, %c7_164] : memref<8x8xi32, #tpu.memory_space<smem>>
    %179 = arith.index_cast %178 : i32 to index
    %c0_165 = arith.constant 0 : index
    %180 = vector.load %arg2[%179, %c0_165] : memref<64x32xf32, #tpu.memory_space<vmem>>, vector<1x32xf32>
    %c2_166 = arith.constant 2 : index
    %c7_167 = arith.constant 7 : index
    %181 = memref.load %arg1[%c2_166, %c7_167] : memref<8x8xi32, #tpu.memory_space<smem>>
    %182 = arith.index_cast %181 : i32 to index
    %c0_168 = arith.constant 0 : index
    %183 = vector.load %arg2[%182, %c0_168] : memref<64x32xf32, #tpu.memory_space<vmem>>, vector<1x32xf32>
    %c3_169 = arith.constant 3 : index
    %c7_170 = arith.constant 7 : index
    %184 = memref.load %arg1[%c3_169, %c7_170] : memref<8x8xi32, #tpu.memory_space<smem>>
    %185 = arith.index_cast %184 : i32 to index
    %c0_171 = arith.constant 0 : index
    %186 = vector.load %arg2[%185, %c0_171] : memref<64x32xf32, #tpu.memory_space<vmem>>, vector<1x32xf32>
    %c4_172 = arith.constant 4 : index
    %c7_173 = arith.constant 7 : index
    %187 = memref.load %arg1[%c4_172, %c7_173] : memref<8x8xi32, #tpu.memory_space<smem>>
    %188 = arith.index_cast %187 : i32 to index
    %c0_174 = arith.constant 0 : index
    %189 = vector.load %arg2[%188, %c0_174] : memref<64x32xf32, #tpu.memory_space<vmem>>, vector<1x32xf32>
    %c5_175 = arith.constant 5 : index
    %c7_176 = arith.constant 7 : index
    %190 = memref.load %arg1[%c5_175, %c7_176] : memref<8x8xi32, #tpu.memory_space<smem>>
    %191 = arith.index_cast %190 : i32 to index
    %c0_177 = arith.constant 0 : index
    %192 = vector.load %arg2[%191, %c0_177] : memref<64x32xf32, #tpu.memory_space<vmem>>, vector<1x32xf32>
    %c6_178 = arith.constant 6 : index
    %c7_179 = arith.constant 7 : index
    %193 = memref.load %arg1[%c6_178, %c7_179] : memref<8x8xi32, #tpu.memory_space<smem>>
    %194 = arith.index_cast %193 : i32 to index
    %c0_180 = arith.constant 0 : index
    %195 = vector.load %arg2[%194, %c0_180] : memref<64x32xf32, #tpu.memory_space<vmem>>, vector<1x32xf32>
    %c7_181 = arith.constant 7 : index
    %c7_182 = arith.constant 7 : index
    %196 = memref.load %arg1[%c7_181, %c7_182] : memref<8x8xi32, #tpu.memory_space<smem>>
    %197 = arith.index_cast %196 : i32 to index
    %c0_183 = arith.constant 0 : index
    %198 = vector.load %arg2[%197, %c0_183] : memref<64x32xf32, #tpu.memory_space<vmem>>, vector<1x32xf32>
    %199 = tpu.concatenate %177, %180, %183, %186, %189, %192, %195, %198 in 0 : vector<1x32xf32>, vector<1x32xf32>, vector<1x32xf32>, vector<1x32xf32>, vector<1x32xf32>, vector<1x32xf32>, vector<1x32xf32>, vector<1x32xf32> -> vector<8x32xf32>
    %c0_184 = arith.constant 0 : index
    %c0_185 = arith.constant 0 : index
    %200 = vector.load %arg3[%c0_184, %c0_185] : memref<32x128xf32, #tpu.memory_space<vmem>>, vector<32x128xf32>
    %cst = arith.constant dense<0.000000e+00> : vector<8x128xf32>
    %201 = tpu.matmul %24, %200, %cst {dimension_numbers = #tpu.dot_dimension_numbers<[1], [0], [0], [1], [0, 0, 1, 1], [], []>} : vector<8x32xf32>, vector<32x128xf32>, vector<8x128xf32> -> vector<8x128xf32>
    %cst_186 = arith.constant dense<0.000000e+00> : vector<8x128xf32>
    %202 = tpu.matmul %49, %200, %cst_186 {dimension_numbers = #tpu.dot_dimension_numbers<[1], [0], [0], [1], [0, 0, 1, 1], [], []>} : vector<8x32xf32>, vector<32x128xf32>, vector<8x128xf32> -> vector<8x128xf32>
    %cst_187 = arith.constant dense<0.000000e+00> : vector<8x128xf32>
    %203 = tpu.matmul %74, %200, %cst_187 {dimension_numbers = #tpu.dot_dimension_numbers<[1], [0], [0], [1], [0, 0, 1, 1], [], []>} : vector<8x32xf32>, vector<32x128xf32>, vector<8x128xf32> -> vector<8x128xf32>
    %cst_188 = arith.constant dense<0.000000e+00> : vector<8x128xf32>
    %204 = tpu.matmul %99, %200, %cst_188 {dimension_numbers = #tpu.dot_dimension_numbers<[1], [0], [0], [1], [0, 0, 1, 1], [], []>} : vector<8x32xf32>, vector<32x128xf32>, vector<8x128xf32> -> vector<8x128xf32>
    %cst_189 = arith.constant dense<0.000000e+00> : vector<8x128xf32>
    %205 = tpu.matmul %124, %200, %cst_189 {dimension_numbers = #tpu.dot_dimension_numbers<[1], [0], [0], [1], [0, 0, 1, 1], [], []>} : vector<8x32xf32>, vector<32x128xf32>, vector<8x128xf32> -> vector<8x128xf32>
    %cst_190 = arith.constant dense<0.000000e+00> : vector<8x128xf32>
    %206 = tpu.matmul %149, %200, %cst_190 {dimension_numbers = #tpu.dot_dimension_numbers<[1], [0], [0], [1], [0, 0, 1, 1], [], []>} : vector<8x32xf32>, vector<32x128xf32>, vector<8x128xf32> -> vector<8x128xf32>
    %cst_191 = arith.constant dense<0.000000e+00> : vector<8x128xf32>
    %207 = tpu.matmul %174, %200, %cst_191 {dimension_numbers = #tpu.dot_dimension_numbers<[1], [0], [0], [1], [0, 0, 1, 1], [], []>} : vector<8x32xf32>, vector<32x128xf32>, vector<8x128xf32> -> vector<8x128xf32>
    %cst_192 = arith.constant dense<0.000000e+00> : vector<8x128xf32>
    %208 = tpu.matmul %199, %200, %cst_192 {dimension_numbers = #tpu.dot_dimension_numbers<[1], [0], [0], [1], [0, 0, 1, 1], [], []>} : vector<8x32xf32>, vector<32x128xf32>, vector<8x128xf32> -> vector<8x128xf32>
    %c0_193 = arith.constant 0 : index
    %c0_194 = arith.constant 0 : index
    %c0_195 = arith.constant 0 : index
    %209 = vector.load %arg11[%c0_193, %c0_194, %c0_195] : memref<2x8x32xf32, #tpu.memory_space<vmem>>, vector<1x8x32xf32>
    %210 = vector.shape_cast %209 : vector<1x8x32xf32> to vector<8x32xf32>
    %c1_196 = arith.constant 1 : index
    %c0_197 = arith.constant 0 : index
    %c0_198 = arith.constant 0 : index
    %211 = vector.load %arg11[%c1_196, %c0_197, %c0_198] : memref<2x8x32xf32, #tpu.memory_space<vmem>>, vector<1x8x32xf32>
    %212 = vector.shape_cast %211 : vector<1x8x32xf32> to vector<8x32xf32>
    %c0_199 = arith.constant 0 : index
    %c0_200 = arith.constant 0 : index
    %c0_201 = arith.constant 0 : index
    %213 = vector.load %arg12[%c0_199, %c0_200, %c0_201] : memref<2x8x32xf32, #tpu.memory_space<vmem>>, vector<1x8x32xf32>
    %214 = vector.shape_cast %213 : vector<1x8x32xf32> to vector<8x32xf32>
    %c1_202 = arith.constant 1 : index
    %c0_203 = arith.constant 0 : index
    %c0_204 = arith.constant 0 : index
    %215 = vector.load %arg12[%c1_202, %c0_203, %c0_204] : memref<2x8x32xf32, #tpu.memory_space<vmem>>, vector<1x8x32xf32>
    %216 = vector.shape_cast %215 : vector<1x8x32xf32> to vector<8x32xf32>
    %c0_205 = arith.constant 0 : index
    %c0_206 = arith.constant 0 : index
    %217 = vector.load %arg4[%c0_205, %c0_206] : memref<32x128xf32, #tpu.memory_space<vmem>>, vector<32x128xf32>
    %cst_207 = arith.constant dense<0.000000e+00> : vector<8x128xf32>
    %218 = tpu.matmul %210, %217, %cst_207 {dimension_numbers = #tpu.dot_dimension_numbers<[1], [0], [0], [1], [0, 0, 1, 1], [], []>} : vector<8x32xf32>, vector<32x128xf32>, vector<8x128xf32> -> vector<8x128xf32>
    %219 = arith.addf %201, %218 : vector<8x128xf32>
    %c0_208 = arith.constant 0 : index
    %c0_209 = arith.constant 0 : index
    %220 = vector.load %arg5[%c0_208, %c0_209] : memref<1x128xf32, #tpu.memory_space<vmem>>, vector<1x128xf32>
    %221 = vector.broadcast %220 : vector<1x128xf32> to vector<8x128xf32>
    %222 = arith.addf %219, %221 : vector<8x128xf32>
    %223 = vector.extract_strided_slice %222 {offsets = [0, 0], sizes = [8, 32], strides = [1, 1]} : vector<8x128xf32> to vector<8x32xf32>
    %224 = arith.negf %223 : vector<8x32xf32>
    %225 = math.exp %224 : vector<8x32xf32>
    %cst_210 = arith.constant 1.000000e+00 : f32
    %226 = vector.broadcast %cst_210 : f32 to vector<8x32xf32>
    %227 = arith.addf %226, %225 : vector<8x32xf32>
    %228 = arith.divf %226, %227 : vector<8x32xf32>
    %229 = vector.extract_strided_slice %222 {offsets = [0, 32], sizes = [8, 32], strides = [1, 1]} : vector<8x128xf32> to vector<8x32xf32>
    %230 = arith.negf %229 : vector<8x32xf32>
    %231 = math.exp %230 : vector<8x32xf32>
    %cst_211 = arith.constant 1.000000e+00 : f32
    %232 = vector.broadcast %cst_211 : f32 to vector<8x32xf32>
    %233 = arith.addf %232, %231 : vector<8x32xf32>
    %234 = arith.divf %232, %233 : vector<8x32xf32>
    %235 = vector.extract_strided_slice %222 {offsets = [0, 64], sizes = [8, 32], strides = [1, 1]} : vector<8x128xf32> to vector<8x32xf32>
    %236 = math.tanh %235 : vector<8x32xf32>
    %237 = vector.extract_strided_slice %222 {offsets = [0, 96], sizes = [8, 32], strides = [1, 1]} : vector<8x128xf32> to vector<8x32xf32>
    %238 = arith.negf %237 : vector<8x32xf32>
    %239 = math.exp %238 : vector<8x32xf32>
    %cst_212 = arith.constant 1.000000e+00 : f32
    %240 = vector.broadcast %cst_212 : f32 to vector<8x32xf32>
    %241 = arith.addf %240, %239 : vector<8x32xf32>
    %242 = arith.divf %240, %241 : vector<8x32xf32>
    %243 = arith.mulf %234, %214 : vector<8x32xf32>
    %244 = arith.mulf %228, %236 : vector<8x32xf32>
    %245 = arith.addf %243, %244 : vector<8x32xf32>
    %246 = math.tanh %245 : vector<8x32xf32>
    %247 = arith.mulf %242, %246 : vector<8x32xf32>
    %c0_213 = arith.constant 0 : index
    %c0_214 = arith.constant 0 : index
    %248 = vector.load %arg6[%c0_213, %c0_214] : memref<32x128xf32, #tpu.memory_space<vmem>>, vector<32x128xf32>
    %cst_215 = arith.constant dense<0.000000e+00> : vector<8x128xf32>
    %249 = tpu.matmul %247, %248, %cst_215 {dimension_numbers = #tpu.dot_dimension_numbers<[1], [0], [0], [1], [0, 0, 1, 1], [], []>} : vector<8x32xf32>, vector<32x128xf32>, vector<8x128xf32> -> vector<8x128xf32>
    %c0_216 = arith.constant 0 : index
    %c0_217 = arith.constant 0 : index
    %250 = vector.load %arg7[%c0_216, %c0_217] : memref<32x128xf32, #tpu.memory_space<vmem>>, vector<32x128xf32>
    %cst_218 = arith.constant dense<0.000000e+00> : vector<8x128xf32>
    %251 = tpu.matmul %212, %250, %cst_218 {dimension_numbers = #tpu.dot_dimension_numbers<[1], [0], [0], [1], [0, 0, 1, 1], [], []>} : vector<8x32xf32>, vector<32x128xf32>, vector<8x128xf32> -> vector<8x128xf32>
    %252 = arith.addf %249, %251 : vector<8x128xf32>
    %c0_219 = arith.constant 0 : index
    %c0_220 = arith.constant 0 : index
    %253 = vector.load %arg8[%c0_219, %c0_220] : memref<1x128xf32, #tpu.memory_space<vmem>>, vector<1x128xf32>
    %254 = vector.broadcast %253 : vector<1x128xf32> to vector<8x128xf32>
    %255 = arith.addf %252, %254 : vector<8x128xf32>
    %256 = vector.extract_strided_slice %255 {offsets = [0, 0], sizes = [8, 32], strides = [1, 1]} : vector<8x128xf32> to vector<8x32xf32>
    %257 = arith.negf %256 : vector<8x32xf32>
    %258 = math.exp %257 : vector<8x32xf32>
    %cst_221 = arith.constant 1.000000e+00 : f32
    %259 = vector.broadcast %cst_221 : f32 to vector<8x32xf32>
    %260 = arith.addf %259, %258 : vector<8x32xf32>
    %261 = arith.divf %259, %260 : vector<8x32xf32>
    %262 = vector.extract_strided_slice %255 {offsets = [0, 32], sizes = [8, 32], strides = [1, 1]} : vector<8x128xf32> to vector<8x32xf32>
    %263 = arith.negf %262 : vector<8x32xf32>
    %264 = math.exp %263 : vector<8x32xf32>
    %cst_222 = arith.constant 1.000000e+00 : f32
    %265 = vector.broadcast %cst_222 : f32 to vector<8x32xf32>
    %266 = arith.addf %265, %264 : vector<8x32xf32>
    %267 = arith.divf %265, %266 : vector<8x32xf32>
    %268 = vector.extract_strided_slice %255 {offsets = [0, 64], sizes = [8, 32], strides = [1, 1]} : vector<8x128xf32> to vector<8x32xf32>
    %269 = math.tanh %268 : vector<8x32xf32>
    %270 = vector.extract_strided_slice %255 {offsets = [0, 96], sizes = [8, 32], strides = [1, 1]} : vector<8x128xf32> to vector<8x32xf32>
    %271 = arith.negf %270 : vector<8x32xf32>
    %272 = math.exp %271 : vector<8x32xf32>
    %cst_223 = arith.constant 1.000000e+00 : f32
    %273 = vector.broadcast %cst_223 : f32 to vector<8x32xf32>
    %274 = arith.addf %273, %272 : vector<8x32xf32>
    %275 = arith.divf %273, %274 : vector<8x32xf32>
    %276 = arith.mulf %267, %216 : vector<8x32xf32>
    %277 = arith.mulf %261, %269 : vector<8x32xf32>
    %278 = arith.addf %276, %277 : vector<8x32xf32>
    %279 = math.tanh %278 : vector<8x32xf32>
    %280 = arith.mulf %275, %279 : vector<8x32xf32>
    %c0_224 = arith.constant 0 : index
    %c0_225 = arith.constant 0 : index
    %281 = vector.load %arg4[%c0_224, %c0_225] : memref<32x128xf32, #tpu.memory_space<vmem>>, vector<32x128xf32>
    %cst_226 = arith.constant dense<0.000000e+00> : vector<8x128xf32>
    %282 = tpu.matmul %247, %281, %cst_226 {dimension_numbers = #tpu.dot_dimension_numbers<[1], [0], [0], [1], [0, 0, 1, 1], [], []>} : vector<8x32xf32>, vector<32x128xf32>, vector<8x128xf32> -> vector<8x128xf32>
    %283 = arith.addf %202, %282 : vector<8x128xf32>
    %c0_227 = arith.constant 0 : index
    %c0_228 = arith.constant 0 : index
    %284 = vector.load %arg5[%c0_227, %c0_228] : memref<1x128xf32, #tpu.memory_space<vmem>>, vector<1x128xf32>
    %285 = vector.broadcast %284 : vector<1x128xf32> to vector<8x128xf32>
    %286 = arith.addf %283, %285 : vector<8x128xf32>
    %287 = vector.extract_strided_slice %286 {offsets = [0, 0], sizes = [8, 32], strides = [1, 1]} : vector<8x128xf32> to vector<8x32xf32>
    %288 = arith.negf %287 : vector<8x32xf32>
    %289 = math.exp %288 : vector<8x32xf32>
    %cst_229 = arith.constant 1.000000e+00 : f32
    %290 = vector.broadcast %cst_229 : f32 to vector<8x32xf32>
    %291 = arith.addf %290, %289 : vector<8x32xf32>
    %292 = arith.divf %290, %291 : vector<8x32xf32>
    %293 = vector.extract_strided_slice %286 {offsets = [0, 32], sizes = [8, 32], strides = [1, 1]} : vector<8x128xf32> to vector<8x32xf32>
    %294 = arith.negf %293 : vector<8x32xf32>
    %295 = math.exp %294 : vector<8x32xf32>
    %cst_230 = arith.constant 1.000000e+00 : f32
    %296 = vector.broadcast %cst_230 : f32 to vector<8x32xf32>
    %297 = arith.addf %296, %295 : vector<8x32xf32>
    %298 = arith.divf %296, %297 : vector<8x32xf32>
    %299 = vector.extract_strided_slice %286 {offsets = [0, 64], sizes = [8, 32], strides = [1, 1]} : vector<8x128xf32> to vector<8x32xf32>
    %300 = math.tanh %299 : vector<8x32xf32>
    %301 = vector.extract_strided_slice %286 {offsets = [0, 96], sizes = [8, 32], strides = [1, 1]} : vector<8x128xf32> to vector<8x32xf32>
    %302 = arith.negf %301 : vector<8x32xf32>
    %303 = math.exp %302 : vector<8x32xf32>
    %cst_231 = arith.constant 1.000000e+00 : f32
    %304 = vector.broadcast %cst_231 : f32 to vector<8x32xf32>
    %305 = arith.addf %304, %303 : vector<8x32xf32>
    %306 = arith.divf %304, %305 : vector<8x32xf32>
    %307 = arith.mulf %298, %245 : vector<8x32xf32>
    %308 = arith.mulf %292, %300 : vector<8x32xf32>
    %309 = arith.addf %307, %308 : vector<8x32xf32>
    %310 = math.tanh %309 : vector<8x32xf32>
    %311 = arith.mulf %306, %310 : vector<8x32xf32>
    %c0_232 = arith.constant 0 : index
    %c0_233 = arith.constant 0 : index
    %312 = vector.load %arg6[%c0_232, %c0_233] : memref<32x128xf32, #tpu.memory_space<vmem>>, vector<32x128xf32>
    %cst_234 = arith.constant dense<0.000000e+00> : vector<8x128xf32>
    %313 = tpu.matmul %311, %312, %cst_234 {dimension_numbers = #tpu.dot_dimension_numbers<[1], [0], [0], [1], [0, 0, 1, 1], [], []>} : vector<8x32xf32>, vector<32x128xf32>, vector<8x128xf32> -> vector<8x128xf32>
    %c0_235 = arith.constant 0 : index
    %c0_236 = arith.constant 0 : index
    %314 = vector.load %arg7[%c0_235, %c0_236] : memref<32x128xf32, #tpu.memory_space<vmem>>, vector<32x128xf32>
    %cst_237 = arith.constant dense<0.000000e+00> : vector<8x128xf32>
    %315 = tpu.matmul %280, %314, %cst_237 {dimension_numbers = #tpu.dot_dimension_numbers<[1], [0], [0], [1], [0, 0, 1, 1], [], []>} : vector<8x32xf32>, vector<32x128xf32>, vector<8x128xf32> -> vector<8x128xf32>
    %316 = arith.addf %313, %315 : vector<8x128xf32>
    %c0_238 = arith.constant 0 : index
    %c0_239 = arith.constant 0 : index
    %317 = vector.load %arg8[%c0_238, %c0_239] : memref<1x128xf32, #tpu.memory_space<vmem>>, vector<1x128xf32>
    %318 = vector.broadcast %317 : vector<1x128xf32> to vector<8x128xf32>
    %319 = arith.addf %316, %318 : vector<8x128xf32>
    %320 = vector.extract_strided_slice %319 {offsets = [0, 0], sizes = [8, 32], strides = [1, 1]} : vector<8x128xf32> to vector<8x32xf32>
    %321 = arith.negf %320 : vector<8x32xf32>
    %322 = math.exp %321 : vector<8x32xf32>
    %cst_240 = arith.constant 1.000000e+00 : f32
    %323 = vector.broadcast %cst_240 : f32 to vector<8x32xf32>
    %324 = arith.addf %323, %322 : vector<8x32xf32>
    %325 = arith.divf %323, %324 : vector<8x32xf32>
    %326 = vector.extract_strided_slice %319 {offsets = [0, 32], sizes = [8, 32], strides = [1, 1]} : vector<8x128xf32> to vector<8x32xf32>
    %327 = arith.negf %326 : vector<8x32xf32>
    %328 = math.exp %327 : vector<8x32xf32>
    %cst_241 = arith.constant 1.000000e+00 : f32
    %329 = vector.broadcast %cst_241 : f32 to vector<8x32xf32>
    %330 = arith.addf %329, %328 : vector<8x32xf32>
    %331 = arith.divf %329, %330 : vector<8x32xf32>
    %332 = vector.extract_strided_slice %319 {offsets = [0, 64], sizes = [8, 32], strides = [1, 1]} : vector<8x128xf32> to vector<8x32xf32>
    %333 = math.tanh %332 : vector<8x32xf32>
    %334 = vector.extract_strided_slice %319 {offsets = [0, 96], sizes = [8, 32], strides = [1, 1]} : vector<8x128xf32> to vector<8x32xf32>
    %335 = arith.negf %334 : vector<8x32xf32>
    %336 = math.exp %335 : vector<8x32xf32>
    %cst_242 = arith.constant 1.000000e+00 : f32
    %337 = vector.broadcast %cst_242 : f32 to vector<8x32xf32>
    %338 = arith.addf %337, %336 : vector<8x32xf32>
    %339 = arith.divf %337, %338 : vector<8x32xf32>
    %340 = arith.mulf %331, %278 : vector<8x32xf32>
    %341 = arith.mulf %325, %333 : vector<8x32xf32>
    %342 = arith.addf %340, %341 : vector<8x32xf32>
    %343 = math.tanh %342 : vector<8x32xf32>
    %344 = arith.mulf %339, %343 : vector<8x32xf32>
    %c0_243 = arith.constant 0 : index
    %c0_244 = arith.constant 0 : index
    %345 = vector.load %arg4[%c0_243, %c0_244] : memref<32x128xf32, #tpu.memory_space<vmem>>, vector<32x128xf32>
    %cst_245 = arith.constant dense<0.000000e+00> : vector<8x128xf32>
    %346 = tpu.matmul %311, %345, %cst_245 {dimension_numbers = #tpu.dot_dimension_numbers<[1], [0], [0], [1], [0, 0, 1, 1], [], []>} : vector<8x32xf32>, vector<32x128xf32>, vector<8x128xf32> -> vector<8x128xf32>
    %347 = arith.addf %203, %346 : vector<8x128xf32>
    %c0_246 = arith.constant 0 : index
    %c0_247 = arith.constant 0 : index
    %348 = vector.load %arg5[%c0_246, %c0_247] : memref<1x128xf32, #tpu.memory_space<vmem>>, vector<1x128xf32>
    %349 = vector.broadcast %348 : vector<1x128xf32> to vector<8x128xf32>
    %350 = arith.addf %347, %349 : vector<8x128xf32>
    %351 = vector.extract_strided_slice %350 {offsets = [0, 0], sizes = [8, 32], strides = [1, 1]} : vector<8x128xf32> to vector<8x32xf32>
    %352 = arith.negf %351 : vector<8x32xf32>
    %353 = math.exp %352 : vector<8x32xf32>
    %cst_248 = arith.constant 1.000000e+00 : f32
    %354 = vector.broadcast %cst_248 : f32 to vector<8x32xf32>
    %355 = arith.addf %354, %353 : vector<8x32xf32>
    %356 = arith.divf %354, %355 : vector<8x32xf32>
    %357 = vector.extract_strided_slice %350 {offsets = [0, 32], sizes = [8, 32], strides = [1, 1]} : vector<8x128xf32> to vector<8x32xf32>
    %358 = arith.negf %357 : vector<8x32xf32>
    %359 = math.exp %358 : vector<8x32xf32>
    %cst_249 = arith.constant 1.000000e+00 : f32
    %360 = vector.broadcast %cst_249 : f32 to vector<8x32xf32>
    %361 = arith.addf %360, %359 : vector<8x32xf32>
    %362 = arith.divf %360, %361 : vector<8x32xf32>
    %363 = vector.extract_strided_slice %350 {offsets = [0, 64], sizes = [8, 32], strides = [1, 1]} : vector<8x128xf32> to vector<8x32xf32>
    %364 = math.tanh %363 : vector<8x32xf32>
    %365 = vector.extract_strided_slice %350 {offsets = [0, 96], sizes = [8, 32], strides = [1, 1]} : vector<8x128xf32> to vector<8x32xf32>
    %366 = arith.negf %365 : vector<8x32xf32>
    %367 = math.exp %366 : vector<8x32xf32>
    %cst_250 = arith.constant 1.000000e+00 : f32
    %368 = vector.broadcast %cst_250 : f32 to vector<8x32xf32>
    %369 = arith.addf %368, %367 : vector<8x32xf32>
    %370 = arith.divf %368, %369 : vector<8x32xf32>
    %371 = arith.mulf %362, %309 : vector<8x32xf32>
    %372 = arith.mulf %356, %364 : vector<8x32xf32>
    %373 = arith.addf %371, %372 : vector<8x32xf32>
    %374 = math.tanh %373 : vector<8x32xf32>
    %375 = arith.mulf %370, %374 : vector<8x32xf32>
    %c0_251 = arith.constant 0 : index
    %c0_252 = arith.constant 0 : index
    %376 = vector.load %arg6[%c0_251, %c0_252] : memref<32x128xf32, #tpu.memory_space<vmem>>, vector<32x128xf32>
    %cst_253 = arith.constant dense<0.000000e+00> : vector<8x128xf32>
    %377 = tpu.matmul %375, %376, %cst_253 {dimension_numbers = #tpu.dot_dimension_numbers<[1], [0], [0], [1], [0, 0, 1, 1], [], []>} : vector<8x32xf32>, vector<32x128xf32>, vector<8x128xf32> -> vector<8x128xf32>
    %c0_254 = arith.constant 0 : index
    %c0_255 = arith.constant 0 : index
    %378 = vector.load %arg7[%c0_254, %c0_255] : memref<32x128xf32, #tpu.memory_space<vmem>>, vector<32x128xf32>
    %cst_256 = arith.constant dense<0.000000e+00> : vector<8x128xf32>
    %379 = tpu.matmul %344, %378, %cst_256 {dimension_numbers = #tpu.dot_dimension_numbers<[1], [0], [0], [1], [0, 0, 1, 1], [], []>} : vector<8x32xf32>, vector<32x128xf32>, vector<8x128xf32> -> vector<8x128xf32>
    %380 = arith.addf %377, %379 : vector<8x128xf32>
    %c0_257 = arith.constant 0 : index
    %c0_258 = arith.constant 0 : index
    %381 = vector.load %arg8[%c0_257, %c0_258] : memref<1x128xf32, #tpu.memory_space<vmem>>, vector<1x128xf32>
    %382 = vector.broadcast %381 : vector<1x128xf32> to vector<8x128xf32>
    %383 = arith.addf %380, %382 : vector<8x128xf32>
    %384 = vector.extract_strided_slice %383 {offsets = [0, 0], sizes = [8, 32], strides = [1, 1]} : vector<8x128xf32> to vector<8x32xf32>
    %385 = arith.negf %384 : vector<8x32xf32>
    %386 = math.exp %385 : vector<8x32xf32>
    %cst_259 = arith.constant 1.000000e+00 : f32
    %387 = vector.broadcast %cst_259 : f32 to vector<8x32xf32>
    %388 = arith.addf %387, %386 : vector<8x32xf32>
    %389 = arith.divf %387, %388 : vector<8x32xf32>
    %390 = vector.extract_strided_slice %383 {offsets = [0, 32], sizes = [8, 32], strides = [1, 1]} : vector<8x128xf32> to vector<8x32xf32>
    %391 = arith.negf %390 : vector<8x32xf32>
    %392 = math.exp %391 : vector<8x32xf32>
    %cst_260 = arith.constant 1.000000e+00 : f32
    %393 = vector.broadcast %cst_260 : f32 to vector<8x32xf32>
    %394 = arith.addf %393, %392 : vector<8x32xf32>
    %395 = arith.divf %393, %394 : vector<8x32xf32>
    %396 = vector.extract_strided_slice %383 {offsets = [0, 64], sizes = [8, 32], strides = [1, 1]} : vector<8x128xf32> to vector<8x32xf32>
    %397 = math.tanh %396 : vector<8x32xf32>
    %398 = vector.extract_strided_slice %383 {offsets = [0, 96], sizes = [8, 32], strides = [1, 1]} : vector<8x128xf32> to vector<8x32xf32>
    %399 = arith.negf %398 : vector<8x32xf32>
    %400 = math.exp %399 : vector<8x32xf32>
    %cst_261 = arith.constant 1.000000e+00 : f32
    %401 = vector.broadcast %cst_261 : f32 to vector<8x32xf32>
    %402 = arith.addf %401, %400 : vector<8x32xf32>
    %403 = arith.divf %401, %402 : vector<8x32xf32>
    %404 = arith.mulf %395, %342 : vector<8x32xf32>
    %405 = arith.mulf %389, %397 : vector<8x32xf32>
    %406 = arith.addf %404, %405 : vector<8x32xf32>
    %407 = math.tanh %406 : vector<8x32xf32>
    %408 = arith.mulf %403, %407 : vector<8x32xf32>
    %c0_262 = arith.constant 0 : index
    %c0_263 = arith.constant 0 : index
    %409 = vector.load %arg4[%c0_262, %c0_263] : memref<32x128xf32, #tpu.memory_space<vmem>>, vector<32x128xf32>
    %cst_264 = arith.constant dense<0.000000e+00> : vector<8x128xf32>
    %410 = tpu.matmul %375, %409, %cst_264 {dimension_numbers = #tpu.dot_dimension_numbers<[1], [0], [0], [1], [0, 0, 1, 1], [], []>} : vector<8x32xf32>, vector<32x128xf32>, vector<8x128xf32> -> vector<8x128xf32>
    %411 = arith.addf %204, %410 : vector<8x128xf32>
    %c0_265 = arith.constant 0 : index
    %c0_266 = arith.constant 0 : index
    %412 = vector.load %arg5[%c0_265, %c0_266] : memref<1x128xf32, #tpu.memory_space<vmem>>, vector<1x128xf32>
    %413 = vector.broadcast %412 : vector<1x128xf32> to vector<8x128xf32>
    %414 = arith.addf %411, %413 : vector<8x128xf32>
    %415 = vector.extract_strided_slice %414 {offsets = [0, 0], sizes = [8, 32], strides = [1, 1]} : vector<8x128xf32> to vector<8x32xf32>
    %416 = arith.negf %415 : vector<8x32xf32>
    %417 = math.exp %416 : vector<8x32xf32>
    %cst_267 = arith.constant 1.000000e+00 : f32
    %418 = vector.broadcast %cst_267 : f32 to vector<8x32xf32>
    %419 = arith.addf %418, %417 : vector<8x32xf32>
    %420 = arith.divf %418, %419 : vector<8x32xf32>
    %421 = vector.extract_strided_slice %414 {offsets = [0, 32], sizes = [8, 32], strides = [1, 1]} : vector<8x128xf32> to vector<8x32xf32>
    %422 = arith.negf %421 : vector<8x32xf32>
    %423 = math.exp %422 : vector<8x32xf32>
    %cst_268 = arith.constant 1.000000e+00 : f32
    %424 = vector.broadcast %cst_268 : f32 to vector<8x32xf32>
    %425 = arith.addf %424, %423 : vector<8x32xf32>
    %426 = arith.divf %424, %425 : vector<8x32xf32>
    %427 = vector.extract_strided_slice %414 {offsets = [0, 64], sizes = [8, 32], strides = [1, 1]} : vector<8x128xf32> to vector<8x32xf32>
    %428 = math.tanh %427 : vector<8x32xf32>
    %429 = vector.extract_strided_slice %414 {offsets = [0, 96], sizes = [8, 32], strides = [1, 1]} : vector<8x128xf32> to vector<8x32xf32>
    %430 = arith.negf %429 : vector<8x32xf32>
    %431 = math.exp %430 : vector<8x32xf32>
    %cst_269 = arith.constant 1.000000e+00 : f32
    %432 = vector.broadcast %cst_269 : f32 to vector<8x32xf32>
    %433 = arith.addf %432, %431 : vector<8x32xf32>
    %434 = arith.divf %432, %433 : vector<8x32xf32>
    %435 = arith.mulf %426, %373 : vector<8x32xf32>
    %436 = arith.mulf %420, %428 : vector<8x32xf32>
    %437 = arith.addf %435, %436 : vector<8x32xf32>
    %438 = math.tanh %437 : vector<8x32xf32>
    %439 = arith.mulf %434, %438 : vector<8x32xf32>
    %c0_270 = arith.constant 0 : index
    %c0_271 = arith.constant 0 : index
    %440 = vector.load %arg6[%c0_270, %c0_271] : memref<32x128xf32, #tpu.memory_space<vmem>>, vector<32x128xf32>
    %cst_272 = arith.constant dense<0.000000e+00> : vector<8x128xf32>
    %441 = tpu.matmul %439, %440, %cst_272 {dimension_numbers = #tpu.dot_dimension_numbers<[1], [0], [0], [1], [0, 0, 1, 1], [], []>} : vector<8x32xf32>, vector<32x128xf32>, vector<8x128xf32> -> vector<8x128xf32>
    %c0_273 = arith.constant 0 : index
    %c0_274 = arith.constant 0 : index
    %442 = vector.load %arg7[%c0_273, %c0_274] : memref<32x128xf32, #tpu.memory_space<vmem>>, vector<32x128xf32>
    %cst_275 = arith.constant dense<0.000000e+00> : vector<8x128xf32>
    %443 = tpu.matmul %408, %442, %cst_275 {dimension_numbers = #tpu.dot_dimension_numbers<[1], [0], [0], [1], [0, 0, 1, 1], [], []>} : vector<8x32xf32>, vector<32x128xf32>, vector<8x128xf32> -> vector<8x128xf32>
    %444 = arith.addf %441, %443 : vector<8x128xf32>
    %c0_276 = arith.constant 0 : index
    %c0_277 = arith.constant 0 : index
    %445 = vector.load %arg8[%c0_276, %c0_277] : memref<1x128xf32, #tpu.memory_space<vmem>>, vector<1x128xf32>
    %446 = vector.broadcast %445 : vector<1x128xf32> to vector<8x128xf32>
    %447 = arith.addf %444, %446 : vector<8x128xf32>
    %448 = vector.extract_strided_slice %447 {offsets = [0, 0], sizes = [8, 32], strides = [1, 1]} : vector<8x128xf32> to vector<8x32xf32>
    %449 = arith.negf %448 : vector<8x32xf32>
    %450 = math.exp %449 : vector<8x32xf32>
    %cst_278 = arith.constant 1.000000e+00 : f32
    %451 = vector.broadcast %cst_278 : f32 to vector<8x32xf32>
    %452 = arith.addf %451, %450 : vector<8x32xf32>
    %453 = arith.divf %451, %452 : vector<8x32xf32>
    %454 = vector.extract_strided_slice %447 {offsets = [0, 32], sizes = [8, 32], strides = [1, 1]} : vector<8x128xf32> to vector<8x32xf32>
    %455 = arith.negf %454 : vector<8x32xf32>
    %456 = math.exp %455 : vector<8x32xf32>
    %cst_279 = arith.constant 1.000000e+00 : f32
    %457 = vector.broadcast %cst_279 : f32 to vector<8x32xf32>
    %458 = arith.addf %457, %456 : vector<8x32xf32>
    %459 = arith.divf %457, %458 : vector<8x32xf32>
    %460 = vector.extract_strided_slice %447 {offsets = [0, 64], sizes = [8, 32], strides = [1, 1]} : vector<8x128xf32> to vector<8x32xf32>
    %461 = math.tanh %460 : vector<8x32xf32>
    %462 = vector.extract_strided_slice %447 {offsets = [0, 96], sizes = [8, 32], strides = [1, 1]} : vector<8x128xf32> to vector<8x32xf32>
    %463 = arith.negf %462 : vector<8x32xf32>
    %464 = math.exp %463 : vector<8x32xf32>
    %cst_280 = arith.constant 1.000000e+00 : f32
    %465 = vector.broadcast %cst_280 : f32 to vector<8x32xf32>
    %466 = arith.addf %465, %464 : vector<8x32xf32>
    %467 = arith.divf %465, %466 : vector<8x32xf32>
    %468 = arith.mulf %459, %406 : vector<8x32xf32>
    %469 = arith.mulf %453, %461 : vector<8x32xf32>
    %470 = arith.addf %468, %469 : vector<8x32xf32>
    %471 = math.tanh %470 : vector<8x32xf32>
    %472 = arith.mulf %467, %471 : vector<8x32xf32>
    %c0_281 = arith.constant 0 : index
    %c0_282 = arith.constant 0 : index
    %473 = vector.load %arg4[%c0_281, %c0_282] : memref<32x128xf32, #tpu.memory_space<vmem>>, vector<32x128xf32>
    %cst_283 = arith.constant dense<0.000000e+00> : vector<8x128xf32>
    %474 = tpu.matmul %439, %473, %cst_283 {dimension_numbers = #tpu.dot_dimension_numbers<[1], [0], [0], [1], [0, 0, 1, 1], [], []>} : vector<8x32xf32>, vector<32x128xf32>, vector<8x128xf32> -> vector<8x128xf32>
    %475 = arith.addf %205, %474 : vector<8x128xf32>
    %c0_284 = arith.constant 0 : index
    %c0_285 = arith.constant 0 : index
    %476 = vector.load %arg5[%c0_284, %c0_285] : memref<1x128xf32, #tpu.memory_space<vmem>>, vector<1x128xf32>
    %477 = vector.broadcast %476 : vector<1x128xf32> to vector<8x128xf32>
    %478 = arith.addf %475, %477 : vector<8x128xf32>
    %479 = vector.extract_strided_slice %478 {offsets = [0, 0], sizes = [8, 32], strides = [1, 1]} : vector<8x128xf32> to vector<8x32xf32>
    %480 = arith.negf %479 : vector<8x32xf32>
    %481 = math.exp %480 : vector<8x32xf32>
    %cst_286 = arith.constant 1.000000e+00 : f32
    %482 = vector.broadcast %cst_286 : f32 to vector<8x32xf32>
    %483 = arith.addf %482, %481 : vector<8x32xf32>
    %484 = arith.divf %482, %483 : vector<8x32xf32>
    %485 = vector.extract_strided_slice %478 {offsets = [0, 32], sizes = [8, 32], strides = [1, 1]} : vector<8x128xf32> to vector<8x32xf32>
    %486 = arith.negf %485 : vector<8x32xf32>
    %487 = math.exp %486 : vector<8x32xf32>
    %cst_287 = arith.constant 1.000000e+00 : f32
    %488 = vector.broadcast %cst_287 : f32 to vector<8x32xf32>
    %489 = arith.addf %488, %487 : vector<8x32xf32>
    %490 = arith.divf %488, %489 : vector<8x32xf32>
    %491 = vector.extract_strided_slice %478 {offsets = [0, 64], sizes = [8, 32], strides = [1, 1]} : vector<8x128xf32> to vector<8x32xf32>
    %492 = math.tanh %491 : vector<8x32xf32>
    %493 = vector.extract_strided_slice %478 {offsets = [0, 96], sizes = [8, 32], strides = [1, 1]} : vector<8x128xf32> to vector<8x32xf32>
    %494 = arith.negf %493 : vector<8x32xf32>
    %495 = math.exp %494 : vector<8x32xf32>
    %cst_288 = arith.constant 1.000000e+00 : f32
    %496 = vector.broadcast %cst_288 : f32 to vector<8x32xf32>
    %497 = arith.addf %496, %495 : vector<8x32xf32>
    %498 = arith.divf %496, %497 : vector<8x32xf32>
    %499 = arith.mulf %490, %437 : vector<8x32xf32>
    %500 = arith.mulf %484, %492 : vector<8x32xf32>
    %501 = arith.addf %499, %500 : vector<8x32xf32>
    %502 = math.tanh %501 : vector<8x32xf32>
    %503 = arith.mulf %498, %502 : vector<8x32xf32>
    %c0_289 = arith.constant 0 : index
    %c0_290 = arith.constant 0 : index
    %504 = vector.load %arg6[%c0_289, %c0_290] : memref<32x128xf32, #tpu.memory_space<vmem>>, vector<32x128xf32>
    %cst_291 = arith.constant dense<0.000000e+00> : vector<8x128xf32>
    %505 = tpu.matmul %503, %504, %cst_291 {dimension_numbers = #tpu.dot_dimension_numbers<[1], [0], [0], [1], [0, 0, 1, 1], [], []>} : vector<8x32xf32>, vector<32x128xf32>, vector<8x128xf32> -> vector<8x128xf32>
    %c0_292 = arith.constant 0 : index
    %c0_293 = arith.constant 0 : index
    %506 = vector.load %arg7[%c0_292, %c0_293] : memref<32x128xf32, #tpu.memory_space<vmem>>, vector<32x128xf32>
    %cst_294 = arith.constant dense<0.000000e+00> : vector<8x128xf32>
    %507 = tpu.matmul %472, %506, %cst_294 {dimension_numbers = #tpu.dot_dimension_numbers<[1], [0], [0], [1], [0, 0, 1, 1], [], []>} : vector<8x32xf32>, vector<32x128xf32>, vector<8x128xf32> -> vector<8x128xf32>
    %508 = arith.addf %505, %507 : vector<8x128xf32>
    %c0_295 = arith.constant 0 : index
    %c0_296 = arith.constant 0 : index
    %509 = vector.load %arg8[%c0_295, %c0_296] : memref<1x128xf32, #tpu.memory_space<vmem>>, vector<1x128xf32>
    %510 = vector.broadcast %509 : vector<1x128xf32> to vector<8x128xf32>
    %511 = arith.addf %508, %510 : vector<8x128xf32>
    %512 = vector.extract_strided_slice %511 {offsets = [0, 0], sizes = [8, 32], strides = [1, 1]} : vector<8x128xf32> to vector<8x32xf32>
    %513 = arith.negf %512 : vector<8x32xf32>
    %514 = math.exp %513 : vector<8x32xf32>
    %cst_297 = arith.constant 1.000000e+00 : f32
    %515 = vector.broadcast %cst_297 : f32 to vector<8x32xf32>
    %516 = arith.addf %515, %514 : vector<8x32xf32>
    %517 = arith.divf %515, %516 : vector<8x32xf32>
    %518 = vector.extract_strided_slice %511 {offsets = [0, 32], sizes = [8, 32], strides = [1, 1]} : vector<8x128xf32> to vector<8x32xf32>
    %519 = arith.negf %518 : vector<8x32xf32>
    %520 = math.exp %519 : vector<8x32xf32>
    %cst_298 = arith.constant 1.000000e+00 : f32
    %521 = vector.broadcast %cst_298 : f32 to vector<8x32xf32>
    %522 = arith.addf %521, %520 : vector<8x32xf32>
    %523 = arith.divf %521, %522 : vector<8x32xf32>
    %524 = vector.extract_strided_slice %511 {offsets = [0, 64], sizes = [8, 32], strides = [1, 1]} : vector<8x128xf32> to vector<8x32xf32>
    %525 = math.tanh %524 : vector<8x32xf32>
    %526 = vector.extract_strided_slice %511 {offsets = [0, 96], sizes = [8, 32], strides = [1, 1]} : vector<8x128xf32> to vector<8x32xf32>
    %527 = arith.negf %526 : vector<8x32xf32>
    %528 = math.exp %527 : vector<8x32xf32>
    %cst_299 = arith.constant 1.000000e+00 : f32
    %529 = vector.broadcast %cst_299 : f32 to vector<8x32xf32>
    %530 = arith.addf %529, %528 : vector<8x32xf32>
    %531 = arith.divf %529, %530 : vector<8x32xf32>
    %532 = arith.mulf %523, %470 : vector<8x32xf32>
    %533 = arith.mulf %517, %525 : vector<8x32xf32>
    %534 = arith.addf %532, %533 : vector<8x32xf32>
    %535 = math.tanh %534 : vector<8x32xf32>
    %536 = arith.mulf %531, %535 : vector<8x32xf32>
    %c0_300 = arith.constant 0 : index
    %c0_301 = arith.constant 0 : index
    %537 = vector.load %arg4[%c0_300, %c0_301] : memref<32x128xf32, #tpu.memory_space<vmem>>, vector<32x128xf32>
    %cst_302 = arith.constant dense<0.000000e+00> : vector<8x128xf32>
    %538 = tpu.matmul %503, %537, %cst_302 {dimension_numbers = #tpu.dot_dimension_numbers<[1], [0], [0], [1], [0, 0, 1, 1], [], []>} : vector<8x32xf32>, vector<32x128xf32>, vector<8x128xf32> -> vector<8x128xf32>
    %539 = arith.addf %206, %538 : vector<8x128xf32>
    %c0_303 = arith.constant 0 : index
    %c0_304 = arith.constant 0 : index
    %540 = vector.load %arg5[%c0_303, %c0_304] : memref<1x128xf32, #tpu.memory_space<vmem>>, vector<1x128xf32>
    %541 = vector.broadcast %540 : vector<1x128xf32> to vector<8x128xf32>
    %542 = arith.addf %539, %541 : vector<8x128xf32>
    %543 = vector.extract_strided_slice %542 {offsets = [0, 0], sizes = [8, 32], strides = [1, 1]} : vector<8x128xf32> to vector<8x32xf32>
    %544 = arith.negf %543 : vector<8x32xf32>
    %545 = math.exp %544 : vector<8x32xf32>
    %cst_305 = arith.constant 1.000000e+00 : f32
    %546 = vector.broadcast %cst_305 : f32 to vector<8x32xf32>
    %547 = arith.addf %546, %545 : vector<8x32xf32>
    %548 = arith.divf %546, %547 : vector<8x32xf32>
    %549 = vector.extract_strided_slice %542 {offsets = [0, 32], sizes = [8, 32], strides = [1, 1]} : vector<8x128xf32> to vector<8x32xf32>
    %550 = arith.negf %549 : vector<8x32xf32>
    %551 = math.exp %550 : vector<8x32xf32>
    %cst_306 = arith.constant 1.000000e+00 : f32
    %552 = vector.broadcast %cst_306 : f32 to vector<8x32xf32>
    %553 = arith.addf %552, %551 : vector<8x32xf32>
    %554 = arith.divf %552, %553 : vector<8x32xf32>
    %555 = vector.extract_strided_slice %542 {offsets = [0, 64], sizes = [8, 32], strides = [1, 1]} : vector<8x128xf32> to vector<8x32xf32>
    %556 = math.tanh %555 : vector<8x32xf32>
    %557 = vector.extract_strided_slice %542 {offsets = [0, 96], sizes = [8, 32], strides = [1, 1]} : vector<8x128xf32> to vector<8x32xf32>
    %558 = arith.negf %557 : vector<8x32xf32>
    %559 = math.exp %558 : vector<8x32xf32>
    %cst_307 = arith.constant 1.000000e+00 : f32
    %560 = vector.broadcast %cst_307 : f32 to vector<8x32xf32>
    %561 = arith.addf %560, %559 : vector<8x32xf32>
    %562 = arith.divf %560, %561 : vector<8x32xf32>
    %563 = arith.mulf %554, %501 : vector<8x32xf32>
    %564 = arith.mulf %548, %556 : vector<8x32xf32>
    %565 = arith.addf %563, %564 : vector<8x32xf32>
    %566 = math.tanh %565 : vector<8x32xf32>
    %567 = arith.mulf %562, %566 : vector<8x32xf32>
    %c0_308 = arith.constant 0 : index
    %c0_309 = arith.constant 0 : index
    %568 = vector.load %arg6[%c0_308, %c0_309] : memref<32x128xf32, #tpu.memory_space<vmem>>, vector<32x128xf32>
    %cst_310 = arith.constant dense<0.000000e+00> : vector<8x128xf32>
    %569 = tpu.matmul %567, %568, %cst_310 {dimension_numbers = #tpu.dot_dimension_numbers<[1], [0], [0], [1], [0, 0, 1, 1], [], []>} : vector<8x32xf32>, vector<32x128xf32>, vector<8x128xf32> -> vector<8x128xf32>
    %c0_311 = arith.constant 0 : index
    %c0_312 = arith.constant 0 : index
    %570 = vector.load %arg7[%c0_311, %c0_312] : memref<32x128xf32, #tpu.memory_space<vmem>>, vector<32x128xf32>
    %cst_313 = arith.constant dense<0.000000e+00> : vector<8x128xf32>
    %571 = tpu.matmul %536, %570, %cst_313 {dimension_numbers = #tpu.dot_dimension_numbers<[1], [0], [0], [1], [0, 0, 1, 1], [], []>} : vector<8x32xf32>, vector<32x128xf32>, vector<8x128xf32> -> vector<8x128xf32>
    %572 = arith.addf %569, %571 : vector<8x128xf32>
    %c0_314 = arith.constant 0 : index
    %c0_315 = arith.constant 0 : index
    %573 = vector.load %arg8[%c0_314, %c0_315] : memref<1x128xf32, #tpu.memory_space<vmem>>, vector<1x128xf32>
    %574 = vector.broadcast %573 : vector<1x128xf32> to vector<8x128xf32>
    %575 = arith.addf %572, %574 : vector<8x128xf32>
    %576 = vector.extract_strided_slice %575 {offsets = [0, 0], sizes = [8, 32], strides = [1, 1]} : vector<8x128xf32> to vector<8x32xf32>
    %577 = arith.negf %576 : vector<8x32xf32>
    %578 = math.exp %577 : vector<8x32xf32>
    %cst_316 = arith.constant 1.000000e+00 : f32
    %579 = vector.broadcast %cst_316 : f32 to vector<8x32xf32>
    %580 = arith.addf %579, %578 : vector<8x32xf32>
    %581 = arith.divf %579, %580 : vector<8x32xf32>
    %582 = vector.extract_strided_slice %575 {offsets = [0, 32], sizes = [8, 32], strides = [1, 1]} : vector<8x128xf32> to vector<8x32xf32>
    %583 = arith.negf %582 : vector<8x32xf32>
    %584 = math.exp %583 : vector<8x32xf32>
    %cst_317 = arith.constant 1.000000e+00 : f32
    %585 = vector.broadcast %cst_317 : f32 to vector<8x32xf32>
    %586 = arith.addf %585, %584 : vector<8x32xf32>
    %587 = arith.divf %585, %586 : vector<8x32xf32>
    %588 = vector.extract_strided_slice %575 {offsets = [0, 64], sizes = [8, 32], strides = [1, 1]} : vector<8x128xf32> to vector<8x32xf32>
    %589 = math.tanh %588 : vector<8x32xf32>
    %590 = vector.extract_strided_slice %575 {offsets = [0, 96], sizes = [8, 32], strides = [1, 1]} : vector<8x128xf32> to vector<8x32xf32>
    %591 = arith.negf %590 : vector<8x32xf32>
    %592 = math.exp %591 : vector<8x32xf32>
    %cst_318 = arith.constant 1.000000e+00 : f32
    %593 = vector.broadcast %cst_318 : f32 to vector<8x32xf32>
    %594 = arith.addf %593, %592 : vector<8x32xf32>
    %595 = arith.divf %593, %594 : vector<8x32xf32>
    %596 = arith.mulf %587, %534 : vector<8x32xf32>
    %597 = arith.mulf %581, %589 : vector<8x32xf32>
    %598 = arith.addf %596, %597 : vector<8x32xf32>
    %599 = math.tanh %598 : vector<8x32xf32>
    %600 = arith.mulf %595, %599 : vector<8x32xf32>
    %c0_319 = arith.constant 0 : index
    %c0_320 = arith.constant 0 : index
    %601 = vector.load %arg4[%c0_319, %c0_320] : memref<32x128xf32, #tpu.memory_space<vmem>>, vector<32x128xf32>
    %cst_321 = arith.constant dense<0.000000e+00> : vector<8x128xf32>
    %602 = tpu.matmul %567, %601, %cst_321 {dimension_numbers = #tpu.dot_dimension_numbers<[1], [0], [0], [1], [0, 0, 1, 1], [], []>} : vector<8x32xf32>, vector<32x128xf32>, vector<8x128xf32> -> vector<8x128xf32>
    %603 = arith.addf %207, %602 : vector<8x128xf32>
    %c0_322 = arith.constant 0 : index
    %c0_323 = arith.constant 0 : index
    %604 = vector.load %arg5[%c0_322, %c0_323] : memref<1x128xf32, #tpu.memory_space<vmem>>, vector<1x128xf32>
    %605 = vector.broadcast %604 : vector<1x128xf32> to vector<8x128xf32>
    %606 = arith.addf %603, %605 : vector<8x128xf32>
    %607 = vector.extract_strided_slice %606 {offsets = [0, 0], sizes = [8, 32], strides = [1, 1]} : vector<8x128xf32> to vector<8x32xf32>
    %608 = arith.negf %607 : vector<8x32xf32>
    %609 = math.exp %608 : vector<8x32xf32>
    %cst_324 = arith.constant 1.000000e+00 : f32
    %610 = vector.broadcast %cst_324 : f32 to vector<8x32xf32>
    %611 = arith.addf %610, %609 : vector<8x32xf32>
    %612 = arith.divf %610, %611 : vector<8x32xf32>
    %613 = vector.extract_strided_slice %606 {offsets = [0, 32], sizes = [8, 32], strides = [1, 1]} : vector<8x128xf32> to vector<8x32xf32>
    %614 = arith.negf %613 : vector<8x32xf32>
    %615 = math.exp %614 : vector<8x32xf32>
    %cst_325 = arith.constant 1.000000e+00 : f32
    %616 = vector.broadcast %cst_325 : f32 to vector<8x32xf32>
    %617 = arith.addf %616, %615 : vector<8x32xf32>
    %618 = arith.divf %616, %617 : vector<8x32xf32>
    %619 = vector.extract_strided_slice %606 {offsets = [0, 64], sizes = [8, 32], strides = [1, 1]} : vector<8x128xf32> to vector<8x32xf32>
    %620 = math.tanh %619 : vector<8x32xf32>
    %621 = vector.extract_strided_slice %606 {offsets = [0, 96], sizes = [8, 32], strides = [1, 1]} : vector<8x128xf32> to vector<8x32xf32>
    %622 = arith.negf %621 : vector<8x32xf32>
    %623 = math.exp %622 : vector<8x32xf32>
    %cst_326 = arith.constant 1.000000e+00 : f32
    %624 = vector.broadcast %cst_326 : f32 to vector<8x32xf32>
    %625 = arith.addf %624, %623 : vector<8x32xf32>
    %626 = arith.divf %624, %625 : vector<8x32xf32>
    %627 = arith.mulf %618, %565 : vector<8x32xf32>
    %628 = arith.mulf %612, %620 : vector<8x32xf32>
    %629 = arith.addf %627, %628 : vector<8x32xf32>
    %630 = math.tanh %629 : vector<8x32xf32>
    %631 = arith.mulf %626, %630 : vector<8x32xf32>
    %c0_327 = arith.constant 0 : index
    %c0_328 = arith.constant 0 : index
    %632 = vector.load %arg6[%c0_327, %c0_328] : memref<32x128xf32, #tpu.memory_space<vmem>>, vector<32x128xf32>
    %cst_329 = arith.constant dense<0.000000e+00> : vector<8x128xf32>
    %633 = tpu.matmul %631, %632, %cst_329 {dimension_numbers = #tpu.dot_dimension_numbers<[1], [0], [0], [1], [0, 0, 1, 1], [], []>} : vector<8x32xf32>, vector<32x128xf32>, vector<8x128xf32> -> vector<8x128xf32>
    %c0_330 = arith.constant 0 : index
    %c0_331 = arith.constant 0 : index
    %634 = vector.load %arg7[%c0_330, %c0_331] : memref<32x128xf32, #tpu.memory_space<vmem>>, vector<32x128xf32>
    %cst_332 = arith.constant dense<0.000000e+00> : vector<8x128xf32>
    %635 = tpu.matmul %600, %634, %cst_332 {dimension_numbers = #tpu.dot_dimension_numbers<[1], [0], [0], [1], [0, 0, 1, 1], [], []>} : vector<8x32xf32>, vector<32x128xf32>, vector<8x128xf32> -> vector<8x128xf32>
    %636 = arith.addf %633, %635 : vector<8x128xf32>
    %c0_333 = arith.constant 0 : index
    %c0_334 = arith.constant 0 : index
    %637 = vector.load %arg8[%c0_333, %c0_334] : memref<1x128xf32, #tpu.memory_space<vmem>>, vector<1x128xf32>
    %638 = vector.broadcast %637 : vector<1x128xf32> to vector<8x128xf32>
    %639 = arith.addf %636, %638 : vector<8x128xf32>
    %640 = vector.extract_strided_slice %639 {offsets = [0, 0], sizes = [8, 32], strides = [1, 1]} : vector<8x128xf32> to vector<8x32xf32>
    %641 = arith.negf %640 : vector<8x32xf32>
    %642 = math.exp %641 : vector<8x32xf32>
    %cst_335 = arith.constant 1.000000e+00 : f32
    %643 = vector.broadcast %cst_335 : f32 to vector<8x32xf32>
    %644 = arith.addf %643, %642 : vector<8x32xf32>
    %645 = arith.divf %643, %644 : vector<8x32xf32>
    %646 = vector.extract_strided_slice %639 {offsets = [0, 32], sizes = [8, 32], strides = [1, 1]} : vector<8x128xf32> to vector<8x32xf32>
    %647 = arith.negf %646 : vector<8x32xf32>
    %648 = math.exp %647 : vector<8x32xf32>
    %cst_336 = arith.constant 1.000000e+00 : f32
    %649 = vector.broadcast %cst_336 : f32 to vector<8x32xf32>
    %650 = arith.addf %649, %648 : vector<8x32xf32>
    %651 = arith.divf %649, %650 : vector<8x32xf32>
    %652 = vector.extract_strided_slice %639 {offsets = [0, 64], sizes = [8, 32], strides = [1, 1]} : vector<8x128xf32> to vector<8x32xf32>
    %653 = math.tanh %652 : vector<8x32xf32>
    %654 = vector.extract_strided_slice %639 {offsets = [0, 96], sizes = [8, 32], strides = [1, 1]} : vector<8x128xf32> to vector<8x32xf32>
    %655 = arith.negf %654 : vector<8x32xf32>
    %656 = math.exp %655 : vector<8x32xf32>
    %cst_337 = arith.constant 1.000000e+00 : f32
    %657 = vector.broadcast %cst_337 : f32 to vector<8x32xf32>
    %658 = arith.addf %657, %656 : vector<8x32xf32>
    %659 = arith.divf %657, %658 : vector<8x32xf32>
    %660 = arith.mulf %651, %598 : vector<8x32xf32>
    %661 = arith.mulf %645, %653 : vector<8x32xf32>
    %662 = arith.addf %660, %661 : vector<8x32xf32>
    %663 = math.tanh %662 : vector<8x32xf32>
    %664 = arith.mulf %659, %663 : vector<8x32xf32>
    %c0_338 = arith.constant 0 : index
    %c0_339 = arith.constant 0 : index
    %665 = vector.load %arg4[%c0_338, %c0_339] : memref<32x128xf32, #tpu.memory_space<vmem>>, vector<32x128xf32>
    %cst_340 = arith.constant dense<0.000000e+00> : vector<8x128xf32>
    %666 = tpu.matmul %631, %665, %cst_340 {dimension_numbers = #tpu.dot_dimension_numbers<[1], [0], [0], [1], [0, 0, 1, 1], [], []>} : vector<8x32xf32>, vector<32x128xf32>, vector<8x128xf32> -> vector<8x128xf32>
    %667 = arith.addf %208, %666 : vector<8x128xf32>
    %c0_341 = arith.constant 0 : index
    %c0_342 = arith.constant 0 : index
    %668 = vector.load %arg5[%c0_341, %c0_342] : memref<1x128xf32, #tpu.memory_space<vmem>>, vector<1x128xf32>
    %669 = vector.broadcast %668 : vector<1x128xf32> to vector<8x128xf32>
    %670 = arith.addf %667, %669 : vector<8x128xf32>
    %671 = vector.extract_strided_slice %670 {offsets = [0, 0], sizes = [8, 32], strides = [1, 1]} : vector<8x128xf32> to vector<8x32xf32>
    %672 = arith.negf %671 : vector<8x32xf32>
    %673 = math.exp %672 : vector<8x32xf32>
    %cst_343 = arith.constant 1.000000e+00 : f32
    %674 = vector.broadcast %cst_343 : f32 to vector<8x32xf32>
    %675 = arith.addf %674, %673 : vector<8x32xf32>
    %676 = arith.divf %674, %675 : vector<8x32xf32>
    %677 = vector.extract_strided_slice %670 {offsets = [0, 32], sizes = [8, 32], strides = [1, 1]} : vector<8x128xf32> to vector<8x32xf32>
    %678 = arith.negf %677 : vector<8x32xf32>
    %679 = math.exp %678 : vector<8x32xf32>
    %cst_344 = arith.constant 1.000000e+00 : f32
    %680 = vector.broadcast %cst_344 : f32 to vector<8x32xf32>
    %681 = arith.addf %680, %679 : vector<8x32xf32>
    %682 = arith.divf %680, %681 : vector<8x32xf32>
    %683 = vector.extract_strided_slice %670 {offsets = [0, 64], sizes = [8, 32], strides = [1, 1]} : vector<8x128xf32> to vector<8x32xf32>
    %684 = math.tanh %683 : vector<8x32xf32>
    %685 = vector.extract_strided_slice %670 {offsets = [0, 96], sizes = [8, 32], strides = [1, 1]} : vector<8x128xf32> to vector<8x32xf32>
    %686 = arith.negf %685 : vector<8x32xf32>
    %687 = math.exp %686 : vector<8x32xf32>
    %cst_345 = arith.constant 1.000000e+00 : f32
    %688 = vector.broadcast %cst_345 : f32 to vector<8x32xf32>
    %689 = arith.addf %688, %687 : vector<8x32xf32>
    %690 = arith.divf %688, %689 : vector<8x32xf32>
    %691 = arith.mulf %682, %629 : vector<8x32xf32>
    %692 = arith.mulf %676, %684 : vector<8x32xf32>
    %693 = arith.addf %691, %692 : vector<8x32xf32>
    %694 = math.tanh %693 : vector<8x32xf32>
    %695 = arith.mulf %690, %694 : vector<8x32xf32>
    %c0_346 = arith.constant 0 : index
    %c0_347 = arith.constant 0 : index
    %696 = vector.load %arg6[%c0_346, %c0_347] : memref<32x128xf32, #tpu.memory_space<vmem>>, vector<32x128xf32>
    %cst_348 = arith.constant dense<0.000000e+00> : vector<8x128xf32>
    %697 = tpu.matmul %695, %696, %cst_348 {dimension_numbers = #tpu.dot_dimension_numbers<[1], [0], [0], [1], [0, 0, 1, 1], [], []>} : vector<8x32xf32>, vector<32x128xf32>, vector<8x128xf32> -> vector<8x128xf32>
    %c0_349 = arith.constant 0 : index
    %c0_350 = arith.constant 0 : index
    %698 = vector.load %arg7[%c0_349, %c0_350] : memref<32x128xf32, #tpu.memory_space<vmem>>, vector<32x128xf32>
    %cst_351 = arith.constant dense<0.000000e+00> : vector<8x128xf32>
    %699 = tpu.matmul %664, %698, %cst_351 {dimension_numbers = #tpu.dot_dimension_numbers<[1], [0], [0], [1], [0, 0, 1, 1], [], []>} : vector<8x32xf32>, vector<32x128xf32>, vector<8x128xf32> -> vector<8x128xf32>
    %700 = arith.addf %697, %699 : vector<8x128xf32>
    %c0_352 = arith.constant 0 : index
    %c0_353 = arith.constant 0 : index
    %701 = vector.load %arg8[%c0_352, %c0_353] : memref<1x128xf32, #tpu.memory_space<vmem>>, vector<1x128xf32>
    %702 = vector.broadcast %701 : vector<1x128xf32> to vector<8x128xf32>
    %703 = arith.addf %700, %702 : vector<8x128xf32>
    %704 = vector.extract_strided_slice %703 {offsets = [0, 0], sizes = [8, 32], strides = [1, 1]} : vector<8x128xf32> to vector<8x32xf32>
    %705 = arith.negf %704 : vector<8x32xf32>
    %706 = math.exp %705 : vector<8x32xf32>
    %cst_354 = arith.constant 1.000000e+00 : f32
    %707 = vector.broadcast %cst_354 : f32 to vector<8x32xf32>
    %708 = arith.addf %707, %706 : vector<8x32xf32>
    %709 = arith.divf %707, %708 : vector<8x32xf32>
    %710 = vector.extract_strided_slice %703 {offsets = [0, 32], sizes = [8, 32], strides = [1, 1]} : vector<8x128xf32> to vector<8x32xf32>
    %711 = arith.negf %710 : vector<8x32xf32>
    %712 = math.exp %711 : vector<8x32xf32>
    %cst_355 = arith.constant 1.000000e+00 : f32
    %713 = vector.broadcast %cst_355 : f32 to vector<8x32xf32>
    %714 = arith.addf %713, %712 : vector<8x32xf32>
    %715 = arith.divf %713, %714 : vector<8x32xf32>
    %716 = vector.extract_strided_slice %703 {offsets = [0, 64], sizes = [8, 32], strides = [1, 1]} : vector<8x128xf32> to vector<8x32xf32>
    %717 = math.tanh %716 : vector<8x32xf32>
    %718 = vector.extract_strided_slice %703 {offsets = [0, 96], sizes = [8, 32], strides = [1, 1]} : vector<8x128xf32> to vector<8x32xf32>
    %719 = arith.negf %718 : vector<8x32xf32>
    %720 = math.exp %719 : vector<8x32xf32>
    %cst_356 = arith.constant 1.000000e+00 : f32
    %721 = vector.broadcast %cst_356 : f32 to vector<8x32xf32>
    %722 = arith.addf %721, %720 : vector<8x32xf32>
    %723 = arith.divf %721, %722 : vector<8x32xf32>
    %724 = arith.mulf %715, %662 : vector<8x32xf32>
    %725 = arith.mulf %709, %717 : vector<8x32xf32>
    %726 = arith.addf %724, %725 : vector<8x32xf32>
    %727 = math.tanh %726 : vector<8x32xf32>
    %728 = arith.mulf %723, %727 : vector<8x32xf32>
    %c0_357 = arith.constant 0 : index
    %c0_358 = arith.constant 0 : index
    %729 = vector.load %arg9[%c0_357, %c0_358] : memref<32x64xf32, #tpu.memory_space<vmem>>, vector<32x64xf32>
    %cst_359 = arith.constant dense<0.000000e+00> : vector<8x64xf32>
    %730 = tpu.matmul %728, %729, %cst_359 {dimension_numbers = #tpu.dot_dimension_numbers<[1], [0], [0], [1], [0, 0, 1, 1], [], []>} : vector<8x32xf32>, vector<32x64xf32>, vector<8x64xf32> -> vector<8x64xf32>
    %c0_360 = arith.constant 0 : index
    %c0_361 = arith.constant 0 : index
    %731 = vector.load %arg10[%c0_360, %c0_361] : memref<1x64xf32, #tpu.memory_space<vmem>>, vector<1x64xf32>
    %732 = vector.broadcast %731 : vector<1x64xf32> to vector<8x64xf32>
    %733 = arith.addf %730, %732 : vector<8x64xf32>
    %c0_362 = arith.constant 0 : index
    %c0_363 = arith.constant 0 : index
    %734 = vector.load %arg13[%c0_362, %c0_363] : memref<8x64xf32, #tpu.memory_space<vmem>>, vector<8x64xf32>
    tpu.vector_store %arg13[%c0_362, %c0_363], %733 {strides = array<i32>} : memref<8x64xf32, #tpu.memory_space<vmem>>, vector<8x64xf32>,
    %c0_364 = arith.constant 0 : index
    %c0_365 = arith.constant 0 : index
    %c0_366 = arith.constant 0 : index
    %735 = vector.load %arg14[%c0_364, %c0_365, %c0_366] : memref<2x8x32xf32, #tpu.memory_space<vmem>>, vector<1x8x32xf32>
    %736 = vector.shape_cast %735 : vector<1x8x32xf32> to vector<8x32xf32>
    %737 = vector.shape_cast %695 : vector<8x32xf32> to vector<1x8x32xf32>
    tpu.vector_store %arg14[%c0_364, %c0_365, %c0_366], %737 {strides = array<i32>} : memref<2x8x32xf32, #tpu.memory_space<vmem>>, vector<1x8x32xf32>,
    %c0_367 = arith.constant 0 : index
    %c0_368 = arith.constant 0 : index
    %c0_369 = arith.constant 0 : index
    %738 = vector.load %arg15[%c0_367, %c0_368, %c0_369] : memref<2x8x32xf32, #tpu.memory_space<vmem>>, vector<1x8x32xf32>
    %739 = vector.shape_cast %738 : vector<1x8x32xf32> to vector<8x32xf32>
    %740 = vector.shape_cast %693 : vector<8x32xf32> to vector<1x8x32xf32>
    tpu.vector_store %arg15[%c0_367, %c0_368, %c0_369], %740 {strides = array<i32>} : memref<2x8x32xf32, #tpu.memory_space<vmem>>, vector<1x8x32xf32>,
    %c1_370 = arith.constant 1 : index
    %c0_371 = arith.constant 0 : index
    %c0_372 = arith.constant 0 : index
    %741 = vector.load %arg14[%c1_370, %c0_371, %c0_372] : memref<2x8x32xf32, #tpu.memory_space<vmem>>, vector<1x8x32xf32>
    %742 = vector.shape_cast %741 : vector<1x8x32xf32> to vector<8x32xf32>
    %743 = vector.shape_cast %728 : vector<8x32xf32> to vector<1x8x32xf32>
    tpu.vector_store %arg14[%c1_370, %c0_371, %c0_372], %743 {strides = array<i32>} : memref<2x8x32xf32, #tpu.memory_space<vmem>>, vector<1x8x32xf32>,
    %c1_373 = arith.constant 1 : index
    %c0_374 = arith.constant 0 : index
    %c0_375 = arith.constant 0 : index
    %744 = vector.load %arg15[%c1_373, %c0_374, %c0_375] : memref<2x8x32xf32, #tpu.memory_space<vmem>>, vector<1x8x32xf32>
    %745 = vector.shape_cast %744 : vector<1x8x32xf32> to vector<8x32xf32>
    %746 = vector.shape_cast %726 : vector<8x32xf32> to vector<1x8x32xf32>
    tpu.vector_store %arg15[%c1_373, %c0_374, %c0_375], %746 {strides = array<i32>} : memref<2x8x32xf32, #tpu.memory_space<vmem>>, vector<1x8x32xf32>,
    return
  }
  func.func @transform_0(%arg0: i32, %arg1: memref<8x8xi32, #tpu.memory_space<smem>>) -> (i32, i32) {
    %c0_i32 = arith.constant 0 : i32
    %c0_i32_0 = arith.constant 0 : i32
    %c0_i32_1 = arith.constant 0 : i32
    return %c0_i32, %c0_i32_0 : i32, i32
  }
  func.func @transform_1(%arg0: i32, %arg1: memref<8x8xi32, #tpu.memory_space<smem>>) -> (i32, i32) {
    %c0_i32 = arith.constant 0 : i32
    %c0_i32_0 = arith.constant 0 : i32
    %c0_i32_1 = arith.constant 0 : i32
    return %c0_i32, %c0_i32_0 : i32, i32
  }
  func.func @transform_2(%arg0: i32, %arg1: memref<8x8xi32, #tpu.memory_space<smem>>) -> (i32, i32) {
    %c0_i32 = arith.constant 0 : i32
    %c0_i32_0 = arith.constant 0 : i32
    %c0_i32_1 = arith.constant 0 : i32
    return %c0_i32, %c0_i32_0 : i32, i32
  }
  func.func @transform_3(%arg0: i32, %arg1: memref<8x8xi32, #tpu.memory_space<smem>>) -> (i32, i32) {
    %c0_i32 = arith.constant 0 : i32
    %c0_i32_0 = arith.constant 0 : i32
    %c0_i32_1 = arith.constant 0 : i32
    return %c0_i32, %c0_i32_0 : i32, i32
  }
  func.func @transform_4(%arg0: i32, %arg1: memref<8x8xi32, #tpu.memory_space<smem>>) -> (i32, i32) {
    %c0_i32 = arith.constant 0 : i32
    %c0_i32_0 = arith.constant 0 : i32
    %c0_i32_1 = arith.constant 0 : i32
    return %c0_i32, %c0_i32_0 : i32, i32
  }
  func.func @transform_5(%arg0: i32, %arg1: memref<8x8xi32, #tpu.memory_space<smem>>) -> (i32, i32) {
    %c0_i32 = arith.constant 0 : i32
    %c0_i32_0 = arith.constant 0 : i32
    %c0_i32_1 = arith.constant 0 : i32
    return %c0_i32, %c0_i32_0 : i32, i32
  }
  func.func @transform_6(%arg0: i32, %arg1: memref<8x8xi32, #tpu.memory_space<smem>>) -> (i32, i32) {
    %c0_i32 = arith.constant 0 : i32
    %c0_i32_0 = arith.constant 0 : i32
    %c0_i32_1 = arith.constant 0 : i32
    return %c0_i32, %c0_i32_0 : i32, i32
  }
  func.func @transform_7(%arg0: i32, %arg1: memref<8x8xi32, #tpu.memory_space<smem>>) -> (i32, i32) {
    %c0_i32 = arith.constant 0 : i32
    %c0_i32_0 = arith.constant 0 : i32
    %c0_i32_1 = arith.constant 0 : i32
    return %c0_i32, %c0_i32_0 : i32, i32
  }
  func.func @transform_8(%arg0: i32, %arg1: memref<8x8xi32, #tpu.memory_space<smem>>) -> (i32, i32) {
    %c0_i32 = arith.constant 0 : i32
    %c0_i32_0 = arith.constant 0 : i32
    %c0_i32_1 = arith.constant 0 : i32
    return %c0_i32, %c0_i32_0 : i32, i32
  }
  func.func @transform_9(%arg0: i32, %arg1: memref<8x8xi32, #tpu.memory_space<smem>>) -> (i32, i32, i32) {
    %c0_i32 = arith.constant 0 : i32
    %c0_i32_0 = arith.constant 0 : i32
    %c0_i32_1 = arith.constant 0 : i32
    %c0_i32_2 = arith.constant 0 : i32
    return %c0_i32, %c0_i32_0, %c0_i32_1 : i32, i32, i32
  }
  func.func @transform_10(%arg0: i32, %arg1: memref<8x8xi32, #tpu.memory_space<smem>>) -> (i32, i32, i32) {
    %c0_i32 = arith.constant 0 : i32
    %c0_i32_0 = arith.constant 0 : i32
    %c0_i32_1 = arith.constant 0 : i32
    %c0_i32_2 = arith.constant 0 : i32
    return %c0_i32, %c0_i32_0, %c0_i32_1 : i32, i32, i32
  }
  func.func @transform_11(%arg0: i32, %arg1: memref<8x8xi32, #tpu.memory_space<smem>>) -> (i32, i32) {
    %c0_i32 = arith.constant 0 : i32
    %c0_i32_0 = arith.constant 0 : i32
    %c0_i32_1 = arith.constant 0 : i32
    return %c0_i32, %c0_i32_0 : i32, i32
  }
  func.func @transform_12(%arg0: i32, %arg1: memref<8x8xi32, #tpu.memory_space<smem>>) -> (i32, i32, i32) {
    %c0_i32 = arith.constant 0 : i32
    %c0_i32_0 = arith.constant 0 : i32
    %c0_i32_1 = arith.constant 0 : i32
    %c0_i32_2 = arith.constant 0 : i32
    return %c0_i32, %c0_i32_0, %c0_i32_1 : i32, i32, i32
  }
  func.func @transform_13(%arg0: i32, %arg1: memref<8x8xi32, #tpu.memory_space<smem>>) -> (i32, i32, i32) {
    %c0_i32 = arith.constant 0 : i32
    %c0_i32_0 = arith.constant 0 : i32
    %c0_i32_1 = arith.constant 0 : i32
    %c0_i32_2 = arith.constant 0 : i32
    return %c0_i32, %c0_i32_0, %c0_i32_1 : i32, i32, i32
  }
}

</mosaic_0001>

<llo_original>
// kernel: forward.1
$region0: #{forward.1}
  #allocation0 [shape = 'u32[]', space=smem, size = 0x4, offset = 0x4, fixed_abs, tag = 'smem constant byte address 0x4 - core index']
  #allocation1 [shape = 'u32[144,128]{1,0:T(1,128)}', space=vmem, size = 0x12000, scoped, tag = 'internal scratch']
  #allocation2 [shape = 's32[1]{0}', space=sflag, size = 0x4, scoped, tag = 'scoped memory for forward.1']
  #allocation3 [shape = 'u8[4096]{0}', space=smem, size = 0x1000, scoped, tag = 'prefetched SMEM operand 0']
  %s0 = inlined_call_operand.vmem [shape: s32[8,8], index: 0, kind: input, shape index: {}]
  %s1 = inlined_call_operand.vmem [shape: f32[64,32], index: 1, kind: input, shape index: {}]
  %s2 = inlined_call_operand.vmem [shape: f32[32,128], index: 2, kind: input, shape index: {}]
  %s3 = inlined_call_operand.vmem [shape: f32[32,128], index: 3, kind: input, shape index: {}]
  %s4 = inlined_call_operand.hbm [shape: f32[1,128], index: 4, kind: input, shape index: {}]
  %s5 = inlined_call_operand.vmem [shape: f32[32,128], index: 5, kind: input, shape index: {}]
  %s6 = inlined_call_operand.vmem [shape: f32[32,128], index: 6, kind: input, shape index: {}]
  %s7 = inlined_call_operand.vmem [shape: f32[1,128], index: 7, kind: input, shape index: {}]
  %s8 = inlined_call_operand.hbm [shape: f32[32,64], index: 8, kind: input, shape index: {}]
  %s9 = inlined_call_operand.hbm [shape: f32[1,64], index: 9, kind: input, shape index: {}]
  %s10 = inlined_call_operand.vmem [shape: f32[2,8,32], index: 10, kind: input, shape index: {}]
  %s11 = inlined_call_operand.vmem [shape: f32[2,8,32], index: 11, kind: input, shape index: {}]
  %s12 = inlined_call_operand.vmem [shape: f32[8,64], index: 12, kind: output, shape index: {0}]
  %s13 = inlined_call_operand.vmem [shape: f32[2,8,32], index: 13, kind: output, shape index: {1}]
  %s14 = inlined_call_operand.vmem [shape: f32[2,8,32], index: 14, kind: output, shape index: {2}]
  %15 = xla_tuple %s12, %s13, %s14
  %s16 = sld [smem:[#allocation0]]
  $region82: #{forward.1} parent=0
    _
  %s18 = ssub.s32 1, %s16
  %s19 = scalar_select 0, %s18, %s16
  %s20 = sshll.u32 %s0, 4
  %s21 = int_to_ptr.vmem [resolvable:$true] %s20
  %23 = dma.vmem_to_smem %s21, 128, [#allocation3], [#allocation2]
  %24 = dma.done [#allocation2], 128
  %25 = sfence
  $region1: #{forward.1} parent=0
    #allocation4 [shape = 'u8[512]{0}', space=vmem, size = 0x400, scoped, tag = 'input window, operand 4, single buffered']
    #allocation5 [shape = 's32[1]{0}', space=sflag, size = 0x4, scoped, tag = 'scoped memory for forward.1']
    #allocation6 [shape = 'u8[16384]{0}', space=vmem, size = 0x4000, scoped, tag = 'input window, operand 8, single buffered']
    #allocation7 [shape = 's32[1]{0}', space=sflag, size = 0x4, scoped, tag = 'scoped memory for forward.1']
    #allocation8 [shape = 'u8[512]{0}', space=vmem, size = 0x400, scoped, tag = 'input window, operand 9, single buffered']
    %26 = vsyncpa [#allocation5], 0
    %27 = vsyncpa [#allocation7], 0
    // Predicated region
    $region2: #{forward.1} parent=1 // pred_check
      _
    $region3: #{forward.1} parent=1 // pred_check_branch
      %29 = sbr.rel (0) target = $region5
    $region4: #{forward.1} parent=1 // pred_region
      _
    $region5: #{forward.1} parent=1 // pred_fallthru
      _
    // Predicated region
    $region6: #{forward.1} parent=1 // pred_check
      _
    $region7: #{forward.1} parent=1 // pred_check_branch
      %31 = sbr.rel (0) target = $region9
    $region8: #{forward.1} parent=1 // pred_region
      _
    $region9: #{forward.1} parent=1 // pred_fallthru
      _
    // Predicated region
    $region10: #{forward.1} parent=1 // pred_check
      _
    $region11: #{forward.1} parent=1 // pred_check_branch
      %33 = sbr.rel (0) target = $region13
    $region12: #{forward.1} parent=1 // pred_region
      _
    $region13: #{forward.1} parent=1 // pred_fallthru
      _
    // Predicated region
    $region14: #{forward.1} parent=1 // pred_check
      _
    $region15: #{forward.1} parent=1 // pred_check_branch
      %35 = sbr.rel (0) target = $region17
    $region16: #{forward.1} parent=1 // pred_region
      %s37 = ssub.s32 16, 16
      %38 = vsyncadd [#allocation5], %s37
      %s40 = sshll.u32 [#allocation4], 4
      %s41 = int_to_ptr.vmem [resolvable:$true] %s40
      %43 = dma.hbm_to_vmem [thread:$0]  %s4, 16, %s41, [#allocation5]
    $region17: #{forward.1} parent=1 // pred_fallthru
      _
    // Predicated region
    $region18: #{forward.1} parent=1 // pred_check
      _
    $region19: #{forward.1} parent=1 // pred_check_branch
      %45 = sbr.rel (0) target = $region21
    $region20: #{forward.1} parent=1 // pred_region
      _
    $region21: #{forward.1} parent=1 // pred_fallthru
      _
    // Predicated region
    $region22: #{forward.1} parent=1 // pred_check
      _
    $region23: #{forward.1} parent=1 // pred_check_branch
      %47 = sbr.rel (0) target = $region25
    $region24: #{forward.1} parent=1 // pred_region
      _
    $region25: #{forward.1} parent=1 // pred_fallthru
      _
    // Predicated region
    $region26: #{forward.1} parent=1 // pred_check
      _
    $region27: #{forward.1} parent=1 // pred_check_branch
      %49 = sbr.rel (0) target = $region29
    $region28: #{forward.1} parent=1 // pred_region
      _
    $region29: #{forward.1} parent=1 // pred_fallthru
      _
    // Predicated region
    $region30: #{forward.1} parent=1 // pred_check
      _
    $region31: #{forward.1} parent=1 // pred_check_branch
      %51 = sbr.rel (0) target = $region33
    $region32: #{forward.1} parent=1 // pred_region
      %s53 = ssub.s32 512, 512
      %54 = vsyncadd [#allocation7], %s53
      %s55 = sshll.u32 [#allocation6], 4
      %s56 = int_to_ptr.vmem [resolvable:$true] %s55
      %61 = dma.hbm_to_vmem [thread:$0]  %s8, 512, %s56, [#allocation7], 128, 128, 8
    $region33: #{forward.1} parent=1 // pred_fallthru
      _
    // Predicated region
    $region34: #{forward.1} parent=1 // pred_check
      _
    $region35: #{forward.1} parent=1 // pred_check_branch
      %63 = sbr.rel (0) target = $region37
    $region36: #{forward.1} parent=1 // pred_region
      %s65 = ssub.s32 16, 16
      %66 = vsyncadd [#allocation7], %s65
      %s68 = sshll.u32 [#allocation8], 4
      %s69 = int_to_ptr.vmem [resolvable:$true] %s68
      %71 = dma.hbm_to_vmem [thread:$0]  %s9, 16, %s69, [#allocation7]
    $region37: #{forward.1} parent=1 // pred_fallthru
      _
    // Predicated region
    $region38: #{forward.1} parent=1 // pred_check
      _
    $region39: #{forward.1} parent=1 // pred_check_branch
      %73 = sbr.rel (0) target = $region41
    $region40: #{forward.1} parent=1 // pred_region
      _
    $region41: #{forward.1} parent=1 // pred_fallthru
      _
    // Predicated region
    $region42: #{forward.1} parent=1 // pred_check
      _
    $region43: #{forward.1} parent=1 // pred_check_branch
      %75 = sbr.rel (0) target = $region45
    $region44: #{forward.1} parent=1 // pred_region
      _
    $region45: #{forward.1} parent=1 // pred_fallthru
      _
    // Predicated region
    $region46: #{forward.1} parent=1 // pred_check
      _
    $region47: #{forward.1} parent=1 // pred_check_branch
      %77 = sbr.rel (0) target = $region49
    $region48: #{forward.1} parent=1 // pred_region
      %78 = dma.done [#allocation5], 16
    $region49: #{forward.1} parent=1 // pred_fallthru
      _
    // Predicated region
    $region50: #{forward.1} parent=1 // pred_check
      _
    $region51: #{forward.1} parent=1 // pred_check_branch
      %80 = sbr.rel (0) target = $region53
    $region52: #{forward.1} parent=1 // pred_region
      %81 = dma.done [#allocation7], 512
    $region53: #{forward.1} parent=1 // pred_fallthru
      _
    // Predicated region
    $region54: #{forward.1} parent=1 // pred_check
      _
    $region55: #{forward.1} parent=1 // pred_check_branch
      %83 = sbr.rel (0) target = $region57
    $region56: #{forward.1} parent=1 // pred_region
      %84 = dma.done [#allocation7], 16
    $region57: #{forward.1} parent=1 // pred_fallthru
      _
    %s85 = sld [smem:[#allocation3]]
    %s86 = scalar_lea.vmem %s1, %s85
    %v87 = vld [vmem:[%s86] sm:$0x1]
    %s88 = sld [smem:[#allocation3 + $0x80]]
    %s89 = scalar_lea.vmem %s1, %s88
    %v90 = vld [vmem:[%s89] sm:$0x1]
    %s91 = sld [smem:[#allocation3 + $0x100]]
    %s92 = scalar_lea.vmem %s1, %s91
    %v93 = vld [vmem:[%s92] sm:$0x1]
    %s94 = sld [smem:[#allocation3 + $0x180]]
    %s95 = scalar_lea.vmem %s1, %s94
    %v96 = vld [vmem:[%s95] sm:$0x1]
    %s97 = sld [smem:[#allocation3 + $0x200]]
    %s98 = scalar_lea.vmem %s1, %s97
    %v99 = vld [vmem:[%s98] sm:$0x1]
    %s100 = sld [smem:[#allocation3 + $0x280]]
    %s101 = scalar_lea.vmem %s1, %s100
    %v102 = vld [vmem:[%s101] sm:$0x1]
    %s103 = sld [smem:[#allocation3 + $0x300]]
    %s104 = scalar_lea.vmem %s1, %s103
    %v105 = vld [vmem:[%s104] sm:$0x1]
    %s106 = sld [smem:[#allocation3 + $0x380]]
    %s107 = scalar_lea.vmem %s1, %s106
    %v108 = vld [vmem:[%s107] sm:$0x1]
    %v110 = vrot.slane %v90, 7
    %v113 = vrot.slane %v93, 6
    %v116 = vrot.slane %v96, 5
    %v119 = vrot.slane %v99, 4
    %v122 = vrot.slane %v102, 3
    %v125 = vrot.slane %v105, 2
    %v128 = vrot.slane %v108, 1
    %vm130 = vcmask 1040384
    %v131 = vsel %vm130, %v87, %v110
    %vm132 = vcmask 1041408
    %v133 = vsel %vm132, %v131, %v113
    %vm134 = vcmask 1042432
    %v135 = vsel %vm134, %v133, %v116
    %vm136 = vcmask 1043456
    %v137 = vsel %vm136, %v135, %v119
    %vm138 = vcmask 1044480
    %v139 = vsel %vm138, %v137, %v122
    %vm140 = vcmask 1045504
    %v141 = vsel %vm140, %v139, %v125
    %vm142 = vcmask 1046528
    %v143 = vsel %vm142, %v141, %v128
    %s144 = sld [smem:[#allocation3 + $0x1]]
    %s145 = scalar_lea.vmem %s1, %s144
    %v146 = vld [vmem:[%s145] sm:$0x1]
    %s147 = sld [smem:[#allocation3 + $0x81]]
    %s148 = scalar_lea.vmem %s1, %s147
    %v149 = vld [vmem:[%s148] sm:$0x1]
    %s150 = sld [smem:[#allocation3 + $0x101]]
    %s151 = scalar_lea.vmem %s1, %s150
    %v152 = vld [vmem:[%s151] sm:$0x1]
    %s153 = sld [smem:[#allocation3 + $0x181]]
    %s154 = scalar_lea.vmem %s1, %s153
    %v155 = vld [vmem:[%s154] sm:$0x1]
    %s156 = sld [smem:[#allocation3 + $0x201]]
    %s157 = scalar_lea.vmem %s1, %s156
    %v158 = vld [vmem:[%s157] sm:$0x1]
    %s159 = sld [smem:[#allocation3 + $0x281]]
    %s160 = scalar_lea.vmem %s1, %s159
    %v161 = vld [vmem:[%s160] sm:$0x1]
    %s162 = sld [smem:[#allocation3 + $0x301]]
    %s163 = scalar_lea.vmem %s1, %s162
    %v164 = vld [vmem:[%s163] sm:$0x1]
    %s165 = sld [smem:[#allocation3 + $0x381]]
    %s166 = scalar_lea.vmem %s1, %s165
    %v167 = vld [vmem:[%s166] sm:$0x1]
    %v169 = vrot.slane %v149, 7
    %v172 = vrot.slane %v152, 6
    %v175 = vrot.slane %v155, 5
    %v178 = vrot.slane %v158, 4
    %v181 = vrot.slane %v161, 3
    %v184 = vrot.slane %v164, 2
    %v187 = vrot.slane %v167, 1
    %v189 = vsel %vm130, %v146, %v169
    %v190 = vsel %vm132, %v189, %v172
    %v191 = vsel %vm134, %v190, %v175
    %v192 = vsel %vm136, %v191, %v178
    %v193 = vsel %vm138, %v192, %v181
    %v194 = vsel %vm140, %v193, %v184
    %v195 = vsel %vm142, %v194, %v187
    %s196 = sld [smem:[#allocation3 + $0x2]]
    %s197 = scalar_lea.vmem %s1, %s196
    %v198 = vld [vmem:[%s197] sm:$0x1]
    %s199 = sld [smem:[#allocation3 + $0x82]]
    %s200 = scalar_lea.vmem %s1, %s199
    %v201 = vld [vmem:[%s200] sm:$0x1]
    %s202 = sld [smem:[#allocation3 + $0x102]]
    %s203 = scalar_lea.vmem %s1, %s202
    %v204 = vld [vmem:[%s203] sm:$0x1]
    %s205 = sld [smem:[#allocation3 + $0x182]]
    %s206 = scalar_lea.vmem %s1, %s205
    %v207 = vld [vmem:[%s206] sm:$0x1]
    %s208 = sld [smem:[#allocation3 + $0x202]]
    %s209 = scalar_lea.vmem %s1, %s208
    %v210 = vld [vmem:[%s209] sm:$0x1]
    %s211 = sld [smem:[#allocation3 + $0x282]]
    %s212 = scalar_lea.vmem %s1, %s211
    %v213 = vld [vmem:[%s212] sm:$0x1]
    %s214 = sld [smem:[#allocation3 + $0x302]]
    %s215 = scalar_lea.vmem %s1, %s214
    %v216 = vld [vmem:[%s215] sm:$0x1]
    %s217 = sld [smem:[#allocation3 + $0x382]]
    %s218 = scalar_lea.vmem %s1, %s217
    %v219 = vld [vmem:[%s218] sm:$0x1]
    %v221 = vrot.slane %v201, 7
    %v224 = vrot.slane %v204, 6
    %v227 = vrot.slane %v207, 5
    %v230 = vrot.slane %v210, 4
    %v233 = vrot.slane %v213, 3
    %v236 = vrot.slane %v216, 2
    %v239 = vrot.slane %v219, 1
    %v241 = vsel %vm130, %v198, %v221
    %v242 = vsel %vm132, %v241, %v224
    %v243 = vsel %vm134, %v242, %v227
    %v244 = vsel %vm136, %v243, %v230
    %v245 = vsel %vm138, %v244, %v233
    %v246 = vsel %vm140, %v245, %v236
    %v247 = vsel %vm142, %v246, %v239
    %s248 = sld [smem:[#allocation3 + $0x3]]
    %s249 = scalar_lea.vmem %s1, %s248
    %v250 = vld [vmem:[%s249] sm:$0x1]
    %s251 = sld [smem:[#allocation3 + $0x83]]
    %s252 = scalar_lea.vmem %s1, %s251
    %v253 = vld [vmem:[%s252] sm:$0x1]
    %s254 = sld [smem:[#allocation3 + $0x103]]
    %s255 = scalar_lea.vmem %s1, %s254
    %v256 = vld [vmem:[%s255] sm:$0x1]
    %s257 = sld [smem:[#allocation3 + $0x183]]
    %s258 = scalar_lea.vmem %s1, %s257
    %v259 = vld [vmem:[%s258] sm:$0x1]
    %s260 = sld [smem:[#allocation3 + $0x203]]
    %s261 = scalar_lea.vmem %s1, %s260
    %v262 = vld [vmem:[%s261] sm:$0x1]
    %s263 = sld [smem:[#allocation3 + $0x283]]
    %s264 = scalar_lea.vmem %s1, %s263
    %v265 = vld [vmem:[%s264] sm:$0x1]
    %s266 = sld [smem:[#allocation3 + $0x303]]
    %s267 = scalar_lea.vmem %s1, %s266
    %v268 = vld [vmem:[%s267] sm:$0x1]
    %s269 = sld [smem:[#allocation3 + $0x383]]
    %s270 = scalar_lea.vmem %s1, %s269
    %v271 = vld [vmem:[%s270] sm:$0x1]
    %v273 = vrot.slane %v253, 7
    %v276 = vrot.slane %v256, 6
    %v279 = vrot.slane %v259, 5
    %v282 = vrot.slane %v262, 4
    %v285 = vrot.slane %v265, 3
    %v288 = vrot.slane %v268, 2
    %v291 = vrot.slane %v271, 1
    %v293 = vsel %vm130, %v250, %v273
    %v294 = vsel %vm132, %v293, %v276
    %v295 = vsel %vm134, %v294, %v279
    %v296 = vsel %vm136, %v295, %v282
    %v297 = vsel %vm138, %v296, %v285
    %v298 = vsel %vm140, %v297, %v288
    %v299 = vsel %vm142, %v298, %v291
    %s300 = sld [smem:[#allocation3 + $0x4]]
    %s301 = scalar_lea.vmem %s1, %s300
    %v302 = vld [vmem:[%s301] sm:$0x1]
    %s303 = sld [smem:[#allocation3 + $0x84]]
    %s304 = scalar_lea.vmem %s1, %s303
    %v305 = vld [vmem:[%s304] sm:$0x1]
    %s306 = sld [smem:[#allocation3 + $0x104]]
    %s307 = scalar_lea.vmem %s1, %s306
    %v308 = vld [vmem:[%s307] sm:$0x1]
    %s309 = sld [smem:[#allocation3 + $0x184]]
    %s310 = scalar_lea.vmem %s1, %s309
    %v311 = vld [vmem:[%s310] sm:$0x1]
    %s312 = sld [smem:[#allocation3 + $0x204]]
    %s313 = scalar_lea.vmem %s1, %s312
    %v314 = vld [vmem:[%s313] sm:$0x1]
    %s315 = sld [smem:[#allocation3 + $0x284]]
    %s316 = scalar_lea.vmem %s1, %s315
    %v317 = vld [vmem:[%s316] sm:$0x1]
    %s318 = sld [smem:[#allocation3 + $0x304]]
    %s319 = scalar_lea.vmem %s1, %s318
    %v320 = vld [vmem:[%s319] sm:$0x1]
    %s321 = sld [smem:[#allocation3 + $0x384]]
    %s322 = scalar_lea.vmem %s1, %s321
    %v323 = vld [vmem:[%s322] sm:$0x1]
    %v325 = vrot.slane %v305, 7
    %v328 = vrot.slane %v308, 6
    %v331 = vrot.slane %v311, 5
    %v334 = vrot.slane %v314, 4
    %v337 = vrot.slane %v317, 3
    %v340 = vrot.slane %v320, 2
    %v343 = vrot.slane %v323, 1
    %v345 = vsel %vm130, %v302, %v325
    %v346 = vsel %vm132, %v345, %v328
    %v347 = vsel %vm134, %v346, %v331
    %v348 = vsel %vm136, %v347, %v334
    %v349 = vsel %vm138, %v348, %v337
    %v350 = vsel %vm140, %v349, %v340
    %v351 = vsel %vm142, %v350, %v343
    %s352 = sld [smem:[#allocation3 + $0x5]]
    %s353 = scalar_lea.vmem %s1, %s352
    %v354 = vld [vmem:[%s353] sm:$0x1]
    %s355 = sld [smem:[#allocation3 + $0x85]]
    %s356 = scalar_lea.vmem %s1, %s355
    %v357 = vld [vmem:[%s356] sm:$0x1]
    %s358 = sld [smem:[#allocation3 + $0x105]]
    %s359 = scalar_lea.vmem %s1, %s358
    %v360 = vld [vmem:[%s359] sm:$0x1]
    %s361 = sld [smem:[#allocation3 + $0x185]]
    %s362 = scalar_lea.vmem %s1, %s361
    %v363 = vld [vmem:[%s362] sm:$0x1]
    %s364 = sld [smem:[#allocation3 + $0x205]]
    %s365 = scalar_lea.vmem %s1, %s364
    %v366 = vld [vmem:[%s365] sm:$0x1]
    %s367 = sld [smem:[#allocation3 + $0x285]]
    %s368 = scalar_lea.vmem %s1, %s367
    %v369 = vld [vmem:[%s368] sm:$0x1]
    %s370 = sld [smem:[#allocation3 + $0x305]]
    %s371 = scalar_lea.vmem %s1, %s370
    %v372 = vld [vmem:[%s371] sm:$0x1]
    %s373 = sld [smem:[#allocation3 + $0x385]]
    %s374 = scalar_lea.vmem %s1, %s373
    %v375 = vld [vmem:[%s374] sm:$0x1]
    %v377 = vrot.slane %v357, 7
    %v380 = vrot.slane %v360, 6
    %v383 = vrot.slane %v363, 5
    %v386 = vrot.slane %v366, 4
    %v389 = vrot.slane %v369, 3
    %v392 = vrot.slane %v372, 2
    %v395 = vrot.slane %v375, 1
    %v397 = vsel %vm130, %v354, %v377
    %v398 = vsel %vm132, %v397, %v380
    %v399 = vsel %vm134, %v398, %v383
    %v400 = vsel %vm136, %v399, %v386
    %v401 = vsel %vm138, %v400, %v389
    %v402 = vsel %vm140, %v401, %v392
    %v403 = vsel %vm142, %v402, %v395
    %s404 = sld [smem:[#allocation3 + $0x6]]
    %s405 = scalar_lea.vmem %s1, %s404
    %v406 = vld [vmem:[%s405] sm:$0x1]
    %s407 = sld [smem:[#allocation3 + $0x86]]
    %s408 = scalar_lea.vmem %s1, %s407
    %v409 = vld [vmem:[%s408] sm:$0x1]
    %s410 = sld [smem:[#allocation3 + $0x106]]
    %s411 = scalar_lea.vmem %s1, %s410
    %v412 = vld [vmem:[%s411] sm:$0x1]
    %s413 = sld [smem:[#allocation3 + $0x186]]
    %s414 = scalar_lea.vmem %s1, %s413
    %v415 = vld [vmem:[%s414] sm:$0x1]
    %s416 = sld [smem:[#allocation3 + $0x206]]
    %s417 = scalar_lea.vmem %s1, %s416
    %v418 = vld [vmem:[%s417] sm:$0x1]
    %s419 = sld [smem:[#allocation3 + $0x286]]
    %s420 = scalar_lea.vmem %s1, %s419
    %v421 = vld [vmem:[%s420] sm:$0x1]
    %s422 = sld [smem:[#allocation3 + $0x306]]
    %s423 = scalar_lea.vmem %s1, %s422
    %v424 = vld [vmem:[%s423] sm:$0x1]
    %s425 = sld [smem:[#allocation3 + $0x386]]
    %s426 = scalar_lea.vmem %s1, %s425
    %v427 = vld [vmem:[%s426] sm:$0x1]
    %v429 = vrot.slane %v409, 7
    %v432 = vrot.slane %v412, 6
    %v435 = vrot.slane %v415, 5
    %v438 = vrot.slane %v418, 4
    %v441 = vrot.slane %v421, 3
    %v444 = vrot.slane %v424, 2
    %v447 = vrot.slane %v427, 1
    %v449 = vsel %vm130, %v406, %v429
    %v450 = vsel %vm132, %v449, %v432
    %v451 = vsel %vm134, %v450, %v435
    %v452 = vsel %vm136, %v451, %v438
    %v453 = vsel %vm138, %v452, %v441
    %v454 = vsel %vm140, %v453, %v444
    %v455 = vsel %vm142, %v454, %v447
    %s456 = sld [smem:[#allocation3 + $0x7]]
    %s457 = scalar_lea.vmem %s1, %s456
    %v458 = vld [vmem:[%s457] sm:$0x1]
    %s459 = sld [smem:[#allocation3 + $0x87]]
    %s460 = scalar_lea.vmem %s1, %s459
    %v461 = vld [vmem:[%s460] sm:$0x1]
    %s462 = sld [smem:[#allocation3 + $0x107]]
    %s463 = scalar_lea.vmem %s1, %s462
    %v464 = vld [vmem:[%s463] sm:$0x1]
    %s465 = sld [smem:[#allocation3 + $0x187]]
    %s466 = scalar_lea.vmem %s1, %s465
    %v467 = vld [vmem:[%s466] sm:$0x1]
    %s468 = sld [smem:[#allocation3 + $0x207]]
    %s469 = scalar_lea.vmem %s1, %s468
    %v470 = vld [vmem:[%s469] sm:$0x1]
    %s471 = sld [smem:[#allocation3 + $0x287]]
    %s472 = scalar_lea.vmem %s1, %s471
    %v473 = vld [vmem:[%s472] sm:$0x1]
    %s474 = sld [smem:[#allocation3 + $0x307]]
    %s475 = scalar_lea.vmem %s1, %s474
    %v476 = vld [vmem:[%s475] sm:$0x1]
    %s477 = sld [smem:[#allocation3 + $0x387]]
    %s478 = scalar_lea.vmem %s1, %s477
    %v479 = vld [vmem:[%s478] sm:$0x1]
    %v481 = vrot.slane %v461, 7
    %v484 = vrot.slane %v464, 6
    %v487 = vrot.slane %v467, 5
    %v490 = vrot.slane %v470, 4
    %v493 = vrot.slane %v473, 3
    %v496 = vrot.slane %v476, 2
    %v499 = vrot.slane %v479, 1
    %v501 = vsel %vm130, %v458, %v481
    %v502 = vsel %vm132, %v501, %v484
    %v503 = vsel %vm134, %v502, %v487
    %v504 = vsel %vm136, %v503, %v490
    %v505 = vsel %vm138, %v504, %v493
    %v506 = vsel %vm140, %v505, %v496
    %v507 = vsel %vm142, %v506, %v499
    %v508 = vld [vmem:[%s2] sm:$0xff]
    %v509 = vld [vmem:[%s2 + $0x8] sm:$0xff]
    %v510 = vld [vmem:[%s2 + $0x10] sm:$0xff]
    %v511 = vld [vmem:[%s2 + $0x18] sm:$0xff]
    %v512 = vld [vmem:[%s10] sm:$0xff]
    %s513 = scalar_lea.vmem %s10, 8
    %v514 = vld [vmem:[%s513] sm:$0xff]
    %v515 = vld [vmem:[%s11] sm:$0xff]
    %s516 = scalar_lea.vmem %s11, 8
    %v517 = vld [vmem:[%s516] sm:$0xff]
    %v518 = vld [vmem:[%s3] sm:$0xff]
    %v519 = vld [vmem:[%s3 + $0x8] sm:$0xff]
    %v520 = vld [vmem:[%s3 + $0x10] sm:$0xff]
    %v521 = vld [vmem:[%s3 + $0x18] sm:$0xff]
    %vm522 = vcmask 261120
    %v524 = vsel %vm522, %v512, 0
    %526 = vmatprep.subr.mxu0 0.0
    %527 = vmatpush1.msra.mxu0 %v518
    %528 = vmatprep.subr.mxu0 0.0
    %529 = vmatpush1.msra.mxu0 %v519
    %530 = vmatprep.subr.mxu0 0.0
    %531 = vmatpush1.msra.mxu0 %v520
    %532 = vmatprep.subr.mxu0 0.0
    %533 = vmatpush1.msra.mxu0 %v521
    %534 = vmatprep.subr.mxu0 0.0
    %535 = vmatpush1.msra.mxu0 0.0
    %536 = vmatprep.subr.mxu0 0.0
    %537 = vmatpush1.msra.mxu0 0.0
    %538 = vmatprep.subr.mxu0 0.0
    %539 = vmatpush1.msra.mxu0 0.0
    %540 = vmatprep.subr.mxu0 0.0
    %541 = vmatpush1.msra.mxu0 0.0
    %542 = vmatprep.subr.mxu0 0.0
    %543 = vmatpush1.msra.mxu0 0.0
    %544 = vmatprep.subr.mxu0 0.0
    %545 = vmatpush1.msra.mxu0 0.0
    %546 = vmatprep.subr.mxu0 0.0
    %547 = vmatpush1.msra.mxu0 0.0
    %548 = vmatprep.subr.mxu0 0.0
    %549 = vmatpush1.msra.mxu0 0.0
    %550 = vmatprep.subr.mxu0 0.0
    %551 = vmatpush1.msra.mxu0 0.0
    %552 = vmatprep.subr.mxu0 0.0
    %553 = vmatpush1.msra.mxu0 0.0
    %554 = vmatprep.subr.mxu0 0.0
    %555 = vmatpush1.msra.mxu0 0.0
    %556 = vmatprep.subr.mxu0 0.0
    %557 = vmatpush1.msra.mxu0 0.0
    %558 = vmatprep.subr.mxu0 0.0
    %559 = vmatpush1.msra.mxu0 0.0
    %560 = vmatprep.subr.mxu0 0.0
    %561 = vmatpush1.msra.mxu0 0.0
    %562 = vmatprep.subr.mxu0 0.0
    %563 = vmatpush1.msra.mxu0 0.0
    %564 = vmatprep.subr.mxu0 0.0
    %565 = vmatpush1.msra.mxu0 0.0
    %566 = vmatprep.subr.mxu0 0.0
    %567 = vmatpush1.msra.mxu0 0.0
    %568 = vmatprep.subr.mxu0 0.0
    %569 = vmatpush1.msra.mxu0 0.0
    %570 = vmatprep.subr.mxu0 0.0
    %571 = vmatpush1.msra.mxu0 0.0
    %572 = vmatprep.subr.mxu0 0.0
    %573 = vmatpush1.msra.mxu0 0.0
    %574 = vmatprep.subr.mxu0 0.0
    %575 = vmatpush1.msra.mxu0 0.0
    %576 = vmatprep.subr.mxu0 0.0
    %577 = vmatpush1.msra.mxu0 0.0
    %578 = vmatprep.subr.mxu0 0.0
    %579 = vmatpush1.msra.mxu0 0.0
    %580 = vmatprep.subr.mxu0 0.0
    %581 = vmatpush1.msra.mxu0 0.0
    %582 = vmatprep.subr.mxu0 0.0
    %583 = vmatpush1.msra.mxu0 0.0
    %584 = vmatprep.subr.mxu0 0.0
    %585 = vmatpush1.msra.mxu0 0.0
    %586 = vmatprep.subr.mxu0 0.0
    %587 = vmatpush1.msra.mxu0 0.0
    %588 = vmatprep.subr.mxu0 0.0
    %589 = vmatpush1.msra.mxu0 0.0
    %590 = vmatprep.mubr.f32.mxu0 0.0
    %591 = vmatmul.mubr.f32.gmra.mrb[0].mxu0 %v524
    %v592 = vpop.f32.mrb[0].mxu0
    %v593 = vadd.f32 0.0, %v592
    %v594 = vpop.f32.mrb[0].mxu0
    %595 = vdwg.mxu0
    %v597 = vsel %vm522, %v143, 0
    %599 = vmatprep.subr.mxu0 0.0
    %600 = vmatpush1.msra.mxu0 %v508
    %601 = vmatprep.subr.mxu0 0.0
    %602 = vmatpush1.msra.mxu0 %v509
    %603 = vmatprep.subr.mxu0 0.0
    %604 = vmatpush1.msra.mxu0 %v510
    %605 = vmatprep.subr.mxu0 0.0
    %606 = vmatpush1.msra.mxu0 %v511
    %607 = vmatprep.subr.mxu0 0.0
    %608 = vmatpush1.msra.mxu0 0.0
    %609 = vmatprep.subr.mxu0 0.0
    %610 = vmatpush1.msra.mxu0 0.0
    %611 = vmatprep.subr.mxu0 0.0
    %612 = vmatpush1.msra.mxu0 0.0
    %613 = vmatprep.subr.mxu0 0.0
    %614 = vmatpush1.msra.mxu0 0.0
    %615 = vmatprep.subr.mxu0 0.0
    %616 = vmatpush1.msra.mxu0 0.0
    %617 = vmatprep.subr.mxu0 0.0
    %618 = vmatpush1.msra.mxu0 0.0
    %619 = vmatprep.subr.mxu0 0.0
    %620 = vmatpush1.msra.mxu0 0.0
    %621 = vmatprep.subr.mxu0 0.0
    %622 = vmatpush1.msra.mxu0 0.0
    %623 = vmatprep.subr.mxu0 0.0
    %624 = vmatpush1.msra.mxu0 0.0
    %625 = vmatprep.subr.mxu0 0.0
    %626 = vmatpush1.msra.mxu0 0.0
    %627 = vmatprep.subr.mxu0 0.0
    %628 = vmatpush1.msra.mxu0 0.0
    %629 = vmatprep.subr.mxu0 0.0
    %630 = vmatpush1.msra.mxu0 0.0
    %631 = vmatprep.subr.mxu0 0.0
    %632 = vmatpush1.msra.mxu0 0.0
    %633 = vmatprep.subr.mxu0 0.0
    %634 = vmatpush1.msra.mxu0 0.0
    %635 = vmatprep.subr.mxu0 0.0
    %636 = vmatpush1.msra.mxu0 0.0
    %637 = vmatprep.subr.mxu0 0.0
    %638 = vmatpush1.msra.mxu0 0.0
    %639 = vmatprep.subr.mxu0 0.0
    %640 = vmatpush1.msra.mxu0 0.0
    %641 = vmatprep.subr.mxu0 0.0
    %642 = vmatpush1.msra.mxu0 0.0
    %643 = vmatprep.subr.mxu0 0.0
    %644 = vmatpush1.msra.mxu0 0.0
    %645 = vmatprep.subr.mxu0 0.0
    %646 = vmatpush1.msra.mxu0 0.0
    %647 = vmatprep.subr.mxu0 0.0
    %648 = vmatpush1.msra.mxu0 0.0
    %649 = vmatprep.subr.mxu0 0.0
    %650 = vmatpush1.msra.mxu0 0.0
    %651 = vmatprep.subr.mxu0 0.0
    %652 = vmatpush1.msra.mxu0 0.0
    %653 = vmatprep.subr.mxu0 0.0
    %654 = vmatpush1.msra.mxu0 0.0
    %655 = vmatprep.subr.mxu0 0.0
    %656 = vmatpush1.msra.mxu0 0.0
    %657 = vmatprep.subr.mxu0 0.0
    %658 = vmatpush1.msra.mxu0 0.0
    %659 = vmatprep.subr.mxu0 0.0
    %660 = vmatpush1.msra.mxu0 0.0
    %661 = vmatprep.subr.mxu0 0.0
    %662 = vmatpush1.msra.mxu0 0.0
    %663 = vmatprep.mubr.f32.mxu0 0.0
    %664 = vmatmul.mubr.f32.gmra.mrb[0].mxu0 %v597
    %v665 = vpop.f32.mrb[0].mxu0
    %v666 = vadd.f32 %v593, %v665
    %v667 = vpop.f32.mrb[0].mxu0
    %668 = vdwg.mxu0
    %v669 = vld [vmem:[#allocation4] sm:$0x1]
    %v671 = vlaneseq
    %v672 = vshrl.u32 %v671, 7
    %v673 = vsub.s32 0, %v672
    %v674 = vrot.slane %v669, %v673
    %v676 = vadd.f32 %v666, %v674
    %v677 = vxor.u32 %v676, 2147483648
    %v678 = vmul.f32 %v677, 1.442695
    %v679 = vpow.pop %v678
    %v680 = vadd.f32 %v679, 1.0
    %v681 = vrcp.pop %v680
    %v682 = vmul.f32 1.0, %v681
    %v683 = vtanh.pop %v676
    %685 = vrot.lane.b32.xlu0 %v515, 32
    %v686 = vpop.permute.xlu0 %685
    %v688 = vmul.f32 %v682, %v686
    %690 = vrot.lane.b32.xlu0 %v683, 64
    %v691 = vpop.permute.xlu0 %690
    %v693 = vmul.f32 %v682, %v691
    %695 = vrot.lane.b32.xlu0 %v693, 32
    %v696 = vpop.permute.xlu0 %695
    %v698 = vadd.f32 %v688, %v696
    %v699 = vtanh.pop %v698
    %701 = vrot.lane.b32.xlu0 %v699, 64
    %v702 = vpop.permute.xlu0 %701
    %v704 = vmul.f32 %v682, %v702
    %v705 = vld [vmem:[%s5] sm:$0xff]
    %v706 = vld [vmem:[%s5 + $0x8] sm:$0xff]
    %v707 = vld [vmem:[%s5 + $0x10] sm:$0xff]
    %v708 = vld [vmem:[%s5 + $0x18] sm:$0xff]
    %v709 = vld [vmem:[%s6] sm:$0xff]
    %v710 = vld [vmem:[%s6 + $0x8] sm:$0xff]
    %v711 = vld [vmem:[%s6 + $0x10] sm:$0xff]
    %v712 = vld [vmem:[%s6 + $0x18] sm:$0xff]
    %v714 = vsel %vm522, %v514, 0
    %716 = vmatprep.subr.mxu0 0.0
    %717 = vmatpush1.msra.mxu0 %v709
    %718 = vmatprep.subr.mxu0 0.0
    %719 = vmatpush1.msra.mxu0 %v710
    %720 = vmatprep.subr.mxu0 0.0
    %721 = vmatpush1.msra.mxu0 %v711
    %722 = vmatprep.subr.mxu0 0.0
    %723 = vmatpush1.msra.mxu0 %v712
    %724 = vmatprep.subr.mxu0 0.0
    %725 = vmatpush1.msra.mxu0 0.0
    %726 = vmatprep.subr.mxu0 0.0
    %727 = vmatpush1.msra.mxu0 0.0
    %728 = vmatprep.subr.mxu0 0.0
    %729 = vmatpush1.msra.mxu0 0.0
    %730 = vmatprep.subr.mxu0 0.0
    %731 = vmatpush1.msra.mxu0 0.0
    %732 = vmatprep.subr.mxu0 0.0
    %733 = vmatpush1.msra.mxu0 0.0
    %734 = vmatprep.subr.mxu0 0.0
    %735 = vmatpush1.msra.mxu0 0.0
    %736 = vmatprep.subr.mxu0 0.0
    %737 = vmatpush1.msra.mxu0 0.0
    %738 = vmatprep.subr.mxu0 0.0
    %739 = vmatpush1.msra.mxu0 0.0
    %740 = vmatprep.subr.mxu0 0.0
    %741 = vmatpush1.msra.mxu0 0.0
    %742 = vmatprep.subr.mxu0 0.0
    %743 = vmatpush1.msra.mxu0 0.0
    %744 = vmatprep.subr.mxu0 0.0
    %745 = vmatpush1.msra.mxu0 0.0
    %746 = vmatprep.subr.mxu0 0.0
    %747 = vmatpush1.msra.mxu0 0.0
    %748 = vmatprep.subr.mxu0 0.0
    %749 = vmatpush1.msra.mxu0 0.0
    %750 = vmatprep.subr.mxu0 0.0
    %751 = vmatpush1.msra.mxu0 0.0
    %752 = vmatprep.subr.mxu0 0.0
    %753 = vmatpush1.msra.mxu0 0.0
    %754 = vmatprep.subr.mxu0 0.0
    %755 = vmatpush1.msra.mxu0 0.0
    %756 = vmatprep.subr.mxu0 0.0
    %757 = vmatpush1.msra.mxu0 0.0
    %758 = vmatprep.subr.mxu0 0.0
    %759 = vmatpush1.msra.mxu0 0.0
    %760 = vmatprep.subr.mxu0 0.0
    %761 = vmatpush1.msra.mxu0 0.0
    %762 = vmatprep.subr.mxu0 0.0
    %763 = vmatpush1.msra.mxu0 0.0
    %764 = vmatprep.subr.mxu0 0.0
    %765 = vmatpush1.msra.mxu0 0.0
    %766 = vmatprep.subr.mxu0 0.0
    %767 = vmatpush1.msra.mxu0 0.0
    %768 = vmatprep.subr.mxu0 0.0
    %769 = vmatpush1.msra.mxu0 0.0
    %770 = vmatprep.subr.mxu0 0.0
    %771 = vmatpush1.msra.mxu0 0.0
    %772 = vmatprep.subr.mxu0 0.0
    %773 = vmatpush1.msra.mxu0 0.0
    %774 = vmatprep.subr.mxu0 0.0
    %775 = vmatpush1.msra.mxu0 0.0
    %776 = vmatprep.subr.mxu0 0.0
    %777 = vmatpush1.msra.mxu0 0.0
    %778 = vmatprep.subr.mxu0 0.0
    %779 = vmatpush1.msra.mxu0 0.0
    %780 = vmatprep.mubr.f32.mxu0 0.0
    %781 = vmatmul.mubr.f32.gmra.mrb[0].mxu0 %v714
    %v782 = vpop.f32.mrb[0].mxu0
    %v783 = vadd.f32 0.0, %v782
    %v784 = vpop.f32.mrb[0].mxu0
    %785 = vdwg.mxu0
    %787 = vrot.lane.b32.xlu0 %v704, 32
    %v788 = vpop.permute.xlu0 %787
    %v789 = vsel %vm522, %v788, 0
    %791 = vmatprep.subr.mxu0 0.0
    %792 = vmatpush1.msra.mxu0 %v705
    %793 = vmatprep.subr.mxu0 0.0
    %794 = vmatpush1.msra.mxu0 %v706
    %795 = vmatprep.subr.mxu0 0.0
    %796 = vmatpush1.msra.mxu0 %v707
    %797 = vmatprep.subr.mxu0 0.0
    %798 = vmatpush1.msra.mxu0 %v708
    %799 = vmatprep.subr.mxu0 0.0
    %800 = vmatpush1.msra.mxu0 0.0
    %801 = vmatprep.subr.mxu0 0.0
    %802 = vmatpush1.msra.mxu0 0.0
    %803 = vmatprep.subr.mxu0 0.0
    %804 = vmatpush1.msra.mxu0 0.0
    %805 = vmatprep.subr.mxu0 0.0
    %806 = vmatpush1.msra.mxu0 0.0
    %807 = vmatprep.subr.mxu0 0.0
    %808 = vmatpush1.msra.mxu0 0.0
    %809 = vmatprep.subr.mxu0 0.0
    %810 = vmatpush1.msra.mxu0 0.0
    %811 = vmatprep.subr.mxu0 0.0
    %812 = vmatpush1.msra.mxu0 0.0
    %813 = vmatprep.subr.mxu0 0.0
    %814 = vmatpush1.msra.mxu0 0.0
    %815 = vmatprep.subr.mxu0 0.0
    %816 = vmatpush1.msra.mxu0 0.0
    %817 = vmatprep.subr.mxu0 0.0
    %818 = vmatpush1.msra.mxu0 0.0
    %819 = vmatprep.subr.mxu0 0.0
    %820 = vmatpush1.msra.mxu0 0.0
    %821 = vmatprep.subr.mxu0 0.0
    %822 = vmatpush1.msra.mxu0 0.0
    %823 = vmatprep.subr.mxu0 0.0
    %824 = vmatpush1.msra.mxu0 0.0
    %825 = vmatprep.subr.mxu0 0.0
    %826 = vmatpush1.msra.mxu0 0.0
    %827 = vmatprep.subr.mxu0 0.0
    %828 = vmatpush1.msra.mxu0 0.0
    %829 = vmatprep.subr.mxu0 0.0
    %830 = vmatpush1.msra.mxu0 0.0
    %831 = vmatprep.subr.mxu0 0.0
    %832 = vmatpush1.msra.mxu0 0.0
    %833 = vmatprep.subr.mxu0 0.0
    %834 = vmatpush1.msra.mxu0 0.0
    %835 = vmatprep.subr.mxu0 0.0
    %836 = vmatpush1.msra.mxu0 0.0
    %837 = vmatprep.subr.mxu0 0.0
    %838 = vmatpush1.msra.mxu0 0.0
    %839 = vmatprep.subr.mxu0 0.0
    %840 = vmatpush1.msra.mxu0 0.0
    %841 = vmatprep.subr.mxu0 0.0
    %842 = vmatpush1.msra.mxu0 0.0
    %843 = vmatprep.subr.mxu0 0.0
    %844 = vmatpush1.msra.mxu0 0.0
    %845 = vmatprep.subr.mxu0 0.0
    %846 = vmatpush1.msra.mxu0 0.0
    %847 = vmatprep.subr.mxu0 0.0
    %848 = vmatpush1.msra.mxu0 0.0
    %849 = vmatprep.subr.mxu0 0.0
    %850 = vmatpush1.msra.mxu0 0.0
    %851 = vmatprep.subr.mxu0 0.0
    %852 = vmatpush1.msra.mxu0 0.0
    %853 = vmatprep.subr.mxu0 0.0
    %854 = vmatpush1.msra.mxu0 0.0
    %855 = vmatprep.mubr.f32.mxu0 0.0
    %856 = vmatmul.mubr.f32.gmra.mrb[0].mxu0 %v789
    %v857 = vpop.f32.mrb[0].mxu0
    %v858 = vadd.f32 %v783, %v857
    %v859 = vpop.f32.mrb[0].mxu0
    %860 = vdwg.mxu0
    %v861 = vld [vmem:[%s7] sm:$0x1]
    %v863 = vlaneseq
    %v864 = vshrl.u32 %v863, 7
    %v865 = vsub.s32 0, %v864
    %v866 = vrot.slane %v861, %v865
    %v868 = vadd.f32 %v858, %v866
    %v869 = vxor.u32 %v868, 2147483648
    %v870 = vmul.f32 %v869, 1.442695
    %v871 = vpow.pop %v870
    %v872 = vadd.f32 %v871, 1.0
    %v873 = vrcp.pop %v872
    %v874 = vmul.f32 1.0, %v873
    %v875 = vtanh.pop %v868
    %877 = vrot.lane.b32.xlu0 %v517, 32
    %v878 = vpop.permute.xlu0 %877
    %v880 = vmul.f32 %v874, %v878
    %882 = vrot.lane.b32.xlu0 %v875, 64
    %v883 = vpop.permute.xlu0 %882
    %v885 = vmul.f32 %v874, %v883
    %887 = vrot.lane.b32.xlu0 %v885, 32
    %v888 = vpop.permute.xlu0 %887
    %v890 = vadd.f32 %v880, %v888
    %v891 = vtanh.pop %v890
    %893 = vrot.lane.b32.xlu0 %v891, 64
    %v894 = vpop.permute.xlu0 %893
    %v896 = vmul.f32 %v874, %v894
    %897 = vmatprep.subr.mxu0 0.0
    %898 = vmatpush1.msra.mxu0 %v518
    %899 = vmatprep.subr.mxu0 0.0
    %900 = vmatpush1.msra.mxu0 %v519
    %901 = vmatprep.subr.mxu0 0.0
    %902 = vmatpush1.msra.mxu0 %v520
    %903 = vmatprep.subr.mxu0 0.0
    %904 = vmatpush1.msra.mxu0 %v521
    %905 = vmatprep.subr.mxu0 0.0
    %906 = vmatpush1.msra.mxu0 0.0
    %907 = vmatprep.subr.mxu0 0.0
    %908 = vmatpush1.msra.mxu0 0.0
    %909 = vmatprep.subr.mxu0 0.0
    %910 = vmatpush1.msra.mxu0 0.0
    %911 = vmatprep.subr.mxu0 0.0
    %912 = vmatpush1.msra.mxu0 0.0
    %913 = vmatprep.subr.mxu0 0.0
    %914 = vmatpush1.msra.mxu0 0.0
    %915 = vmatprep.subr.mxu0 0.0
    %916 = vmatpush1.msra.mxu0 0.0
    %917 = vmatprep.subr.mxu0 0.0
    %918 = vmatpush1.msra.mxu0 0.0
    %919 = vmatprep.subr.mxu0 0.0
    %920 = vmatpush1.msra.mxu0 0.0
    %921 = vmatprep.subr.mxu0 0.0
    %922 = vmatpush1.msra.mxu0 0.0
    %923 = vmatprep.subr.mxu0 0.0
    %924 = vmatpush1.msra.mxu0 0.0
    %925 = vmatprep.subr.mxu0 0.0
    %926 = vmatpush1.msra.mxu0 0.0
    %927 = vmatprep.subr.mxu0 0.0
    %928 = vmatpush1.msra.mxu0 0.0
    %929 = vmatprep.subr.mxu0 0.0
    %930 = vmatpush1.msra.mxu0 0.0
    %931 = vmatprep.subr.mxu0 0.0
    %932 = vmatpush1.msra.mxu0 0.0
    %933 = vmatprep.subr.mxu0 0.0
    %934 = vmatpush1.msra.mxu0 0.0
    %935 = vmatprep.subr.mxu0 0.0
    %936 = vmatpush1.msra.mxu0 0.0
    %937 = vmatprep.subr.mxu0 0.0
    %938 = vmatpush1.msra.mxu0 0.0
    %939 = vmatprep.subr.mxu0 0.0
    %940 = vmatpush1.msra.mxu0 0.0
    %941 = vmatprep.subr.mxu0 0.0
    %942 = vmatpush1.msra.mxu0 0.0
    %943 = vmatprep.subr.mxu0 0.0
    %944 = vmatpush1.msra.mxu0 0.0
    %945 = vmatprep.subr.mxu0 0.0
    %946 = vmatpush1.msra.mxu0 0.0
    %947 = vmatprep.subr.mxu0 0.0
    %948 = vmatpush1.msra.mxu0 0.0
    %949 = vmatprep.subr.mxu0 0.0
    %950 = vmatpush1.msra.mxu0 0.0
    %951 = vmatprep.subr.mxu0 0.0
    %952 = vmatpush1.msra.mxu0 0.0
    %953 = vmatprep.subr.mxu0 0.0
    %954 = vmatpush1.msra.mxu0 0.0
    %955 = vmatprep.subr.mxu0 0.0
    %956 = vmatpush1.msra.mxu0 0.0
    %957 = vmatprep.subr.mxu0 0.0
    %958 = vmatpush1.msra.mxu0 0.0
    %959 = vmatprep.subr.mxu0 0.0
    %960 = vmatpush1.msra.mxu0 0.0
    %961 = vmatprep.mubr.f32.mxu0 0.0
    %962 = vmatmul.mubr.f32.gmra.mrb[0].mxu0 %v789
    %v963 = vpop.f32.mrb[0].mxu0
    %v964 = vadd.f32 0.0, %v963
    %v965 = vpop.f32.mrb[0].mxu0
    %966 = vdwg.mxu0
    %v968 = vsel %vm522, %v195, 0
    %970 = vmatprep.subr.mxu0 0.0
    %971 = vmatpush1.msra.mxu0 %v508
    %972 = vmatprep.subr.mxu0 0.0
    %973 = vmatpush1.msra.mxu0 %v509
    %974 = vmatprep.subr.mxu0 0.0
    %975 = vmatpush1.msra.mxu0 %v510
    %976 = vmatprep.subr.mxu0 0.0
    %977 = vmatpush1.msra.mxu0 %v511
    %978 = vmatprep.subr.mxu0 0.0
    %979 = vmatpush1.msra.mxu0 0.0
    %980 = vmatprep.subr.mxu0 0.0
    %981 = vmatpush1.msra.mxu0 0.0
    %982 = vmatprep.subr.mxu0 0.0
    %983 = vmatpush1.msra.mxu0 0.0
    %984 = vmatprep.subr.mxu0 0.0
    %985 = vmatpush1.msra.mxu0 0.0
    %986 = vmatprep.subr.mxu0 0.0
    %987 = vmatpush1.msra.mxu0 0.0
    %988 = vmatprep.subr.mxu0 0.0
    %989 = vmatpush1.msra.mxu0 0.0
    %990 = vmatprep.subr.mxu0 0.0
    %991 = vmatpush1.msra.mxu0 0.0
    %992 = vmatprep.subr.mxu0 0.0
    %993 = vmatpush1.msra.mxu0 0.0
    %994 = vmatprep.subr.mxu0 0.0
    %995 = vmatpush1.msra.mxu0 0.0
    %996 = vmatprep.subr.mxu0 0.0
    %997 = vmatpush1.msra.mxu0 0.0
    %998 = vmatprep.subr.mxu0 0.0
    %999 = vmatpush1.msra.mxu0 0.0
    %1000 = vmatprep.subr.mxu0 0.0
    %1001 = vmatpush1.msra.mxu0 0.0
    %1002 = vmatprep.subr.mxu0 0.0
    %1003 = vmatpush1.msra.mxu0 0.0
    %1004 = vmatprep.subr.mxu0 0.0
    %1005 = vmatpush1.msra.mxu0 0.0
    %1006 = vmatprep.subr.mxu0 0.0
    %1007 = vmatpush1.msra.mxu0 0.0
    %1008 = vmatprep.subr.mxu0 0.0
    %1009 = vmatpush1.msra.mxu0 0.0
    %1010 = vmatprep.subr.mxu0 0.0
    %1011 = vmatpush1.msra.mxu0 0.0
    %1012 = vmatprep.subr.mxu0 0.0
    %1013 = vmatpush1.msra.mxu0 0.0
    %1014 = vmatprep.subr.mxu0 0.0
    %1015 = vmatpush1.msra.mxu0 0.0
    %1016 = vmatprep.subr.mxu0 0.0
    %1017 = vmatpush1.msra.mxu0 0.0
    %1018 = vmatprep.subr.mxu0 0.0
    %1019 = vmatpush1.msra.mxu0 0.0
    %1020 = vmatprep.subr.mxu0 0.0
    %1021 = vmatpush1.msra.mxu0 0.0
    %1022 = vmatprep.subr.mxu0 0.0
    %1023 = vmatpush1.msra.mxu0 0.0
    %1024 = vmatprep.subr.mxu0 0.0
    %1025 = vmatpush1.msra.mxu0 0.0
    %1026 = vmatprep.subr.mxu0 0.0
    %1027 = vmatpush1.msra.mxu0 0.0
    %1028 = vmatprep.subr.mxu0 0.0
    %1029 = vmatpush1.msra.mxu0 0.0
    %1030 = vmatprep.subr.mxu0 0.0
    %1031 = vmatpush1.msra.mxu0 0.0
    %1032 = vmatprep.subr.mxu0 0.0
    %1033 = vmatpush1.msra.mxu0 0.0
    %1034 = vmatprep.mubr.f32.mxu0 0.0
    %1035 = vmatmul.mubr.f32.gmra.mrb[0].mxu0 %v968
    %v1036 = vpop.f32.mrb[0].mxu0
    %v1037 = vadd.f32 %v964, %v1036
    %v1038 = vpop.f32.mrb[0].mxu0
    %1039 = vdwg.mxu0
    %v1040 = vadd.f32 %v1037, %v674
    %v1041 = vxor.u32 %v1040, 2147483648
    %v1042 = vmul.f32 %v1041, 1.442695
    %v1043 = vpow.pop %v1042
    %v1044 = vadd.f32 %v1043, 1.0
    %v1045 = vrcp.pop %v1044
    %v1046 = vmul.f32 1.0, %v1045
    %v1047 = vtanh.pop %v1040
    %v1048 = vmul.f32 %v1046, %v698
    %1050 = vrot.lane.b32.xlu0 %v1047, 64
    %v1051 = vpop.permute.xlu0 %1050
    %v1053 = vmul.f32 %v1046, %v1051
    %1055 = vrot.lane.b32.xlu0 %v1053, 32
    %v1056 = vpop.permute.xlu0 %1055
    %v1058 = vadd.f32 %v1048, %v1056
    %v1059 = vtanh.pop %v1058
    %1061 = vrot.lane.b32.xlu0 %v1059, 64
    %v1062 = vpop.permute.xlu0 %1061
    %v1064 = vmul.f32 %v1046, %v1062
    %1066 = vrot.lane.b32.xlu0 %v896, 32
    %v1067 = vpop.permute.xlu0 %1066
    %v1068 = vsel %vm522, %v1067, 0
    %1070 = vmatprep.subr.mxu0 0.0
    %1071 = vmatpush1.msra.mxu0 %v709
    %1072 = vmatprep.subr.mxu0 0.0
    %1073 = vmatpush1.msra.mxu0 %v710
    %1074 = vmatprep.subr.mxu0 0.0
    %1075 = vmatpush1.msra.mxu0 %v711
    %1076 = vmatprep.subr.mxu0 0.0
    %1077 = vmatpush1.msra.mxu0 %v712
    %1078 = vmatprep.subr.mxu0 0.0
    %1079 = vmatpush1.msra.mxu0 0.0
    %1080 = vmatprep.subr.mxu0 0.0
    %1081 = vmatpush1.msra.mxu0 0.0
    %1082 = vmatprep.subr.mxu0 0.0
    %1083 = vmatpush1.msra.mxu0 0.0
    %1084 = vmatprep.subr.mxu0 0.0
    %1085 = vmatpush1.msra.mxu0 0.0
    %1086 = vmatprep.subr.mxu0 0.0
    %1087 = vmatpush1.msra.mxu0 0.0
    %1088 = vmatprep.subr.mxu0 0.0
    %1089 = vmatpush1.msra.mxu0 0.0
    %1090 = vmatprep.subr.mxu0 0.0
    %1091 = vmatpush1.msra.mxu0 0.0
    %1092 = vmatprep.subr.mxu0 0.0
    %1093 = vmatpush1.msra.mxu0 0.0
    %1094 = vmatprep.subr.mxu0 0.0
    %1095 = vmatpush1.msra.mxu0 0.0
    %1096 = vmatprep.subr.mxu0 0.0
    %1097 = vmatpush1.msra.mxu0 0.0
    %1098 = vmatprep.subr.mxu0 0.0
    %1099 = vmatpush1.msra.mxu0 0.0
    %1100 = vmatprep.subr.mxu0 0.0
    %1101 = vmatpush1.msra.mxu0 0.0
    %1102 = vmatprep.subr.mxu0 0.0
    %1103 = vmatpush1.msra.mxu0 0.0
    %1104 = vmatprep.subr.mxu0 0.0
    %1105 = vmatpush1.msra.mxu0 0.0
    %1106 = vmatprep.subr.mxu0 0.0
    %1107 = vmatpush1.msra.mxu0 0.0
    %1108 = vmatprep.subr.mxu0 0.0
    %1109 = vmatpush1.msra.mxu0 0.0
    %1110 = vmatprep.subr.mxu0 0.0
    %1111 = vmatpush1.msra.mxu0 0.0
    %1112 = vmatprep.subr.mxu0 0.0
    %1113 = vmatpush1.msra.mxu0 0.0
    %1114 = vmatprep.subr.mxu0 0.0
    %1115 = vmatpush1.msra.mxu0 0.0
    %1116 = vmatprep.subr.mxu0 0.0
    %1117 = vmatpush1.msra.mxu0 0.0
    %1118 = vmatprep.subr.mxu0 0.0
    %1119 = vmatpush1.msra.mxu0 0.0
    %1120 = vmatprep.subr.mxu0 0.0
    %1121 = vmatpush1.msra.mxu0 0.0
    %1122 = vmatprep.subr.mxu0 0.0
    %1123 = vmatpush1.msra.mxu0 0.0
    %1124 = vmatprep.subr.mxu0 0.0
    %1125 = vmatpush1.msra.mxu0 0.0
    %1126 = vmatprep.subr.mxu0 0.0
    %1127 = vmatpush1.msra.mxu0 0.0
    %1128 = vmatprep.subr.mxu0 0.0
    %1129 = vmatpush1.msra.mxu0 0.0
    %1130 = vmatprep.subr.mxu0 0.0
    %1131 = vmatpush1.msra.mxu0 0.0
    %1132 = vmatprep.subr.mxu0 0.0
    %1133 = vmatpush1.msra.mxu0 0.0
    %1134 = vmatprep.mubr.f32.mxu0 0.0
    %1135 = vmatmul.mubr.f32.gmra.mrb[0].mxu0 %v1068
    %v1136 = vpop.f32.mrb[0].mxu0
    %v1137 = vadd.f32 0.0, %v1136
    %v1138 = vpop.f32.mrb[0].mxu0
    %1139 = vdwg.mxu0
    %1141 = vrot.lane.b32.xlu0 %v1064, 32
    %v1142 = vpop.permute.xlu0 %1141
    %v1143 = vsel %vm522, %v1142, 0
    %1145 = vmatprep.subr.mxu0 0.0
    %1146 = vmatpush1.msra.mxu0 %v705
    %1147 = vmatprep.subr.mxu0 0.0
    %1148 = vmatpush1.msra.mxu0 %v706
    %1149 = vmatprep.subr.mxu0 0.0
    %1150 = vmatpush1.msra.mxu0 %v707
    %1151 = vmatprep.subr.mxu0 0.0
    %1152 = vmatpush1.msra.mxu0 %v708
    %1153 = vmatprep.subr.mxu0 0.0
    %1154 = vmatpush1.msra.mxu0 0.0
    %1155 = vmatprep.subr.mxu0 0.0
    %1156 = vmatpush1.msra.mxu0 0.0
    %1157 = vmatprep.subr.mxu0 0.0
    %1158 = vmatpush1.msra.mxu0 0.0
    %1159 = vmatprep.subr.mxu0 0.0
    %1160 = vmatpush1.msra.mxu0 0.0
    %1161 = vmatprep.subr.mxu0 0.0
    %1162 = vmatpush1.msra.mxu0 0.0
    %1163 = vmatprep.subr.mxu0 0.0
    %1164 = vmatpush1.msra.mxu0 0.0
    %1165 = vmatprep.subr.mxu0 0.0
    %1166 = vmatpush1.msra.mxu0 0.0
    %1167 = vmatprep.subr.mxu0 0.0
    %1168 = vmatpush1.msra.mxu0 0.0
    %1169 = vmatprep.subr.mxu0 0.0
    %1170 = vmatpush1.msra.mxu0 0.0
    %1171 = vmatprep.subr.mxu0 0.0
    %1172 = vmatpush1.msra.mxu0 0.0
    %1173 = vmatprep.subr.mxu0 0.0
    %1174 = vmatpush1.msra.mxu0 0.0
    %1175 = vmatprep.subr.mxu0 0.0
    %1176 = vmatpush1.msra.mxu0 0.0
    %1177 = vmatprep.subr.mxu0 0.0
    %1178 = vmatpush1.msra.mxu0 0.0
    %1179 = vmatprep.subr.mxu0 0.0
    %1180 = vmatpush1.msra.mxu0 0.0
    %1181 = vmatprep.subr.mxu0 0.0
    %1182 = vmatpush1.msra.mxu0 0.0
    %1183 = vmatprep.subr.mxu0 0.0
    %1184 = vmatpush1.msra.mxu0 0.0
    %1185 = vmatprep.subr.mxu0 0.0
    %1186 = vmatpush1.msra.mxu0 0.0
    %1187 = vmatprep.subr.mxu0 0.0
    %1188 = vmatpush1.msra.mxu0 0.0
    %1189 = vmatprep.subr.mxu0 0.0
    %1190 = vmatpush1.msra.mxu0 0.0
    %1191 = vmatprep.subr.mxu0 0.0
    %1192 = vmatpush1.msra.mxu0 0.0
    %1193 = vmatprep.subr.mxu0 0.0
    %1194 = vmatpush1.msra.mxu0 0.0
    %1195 = vmatprep.subr.mxu0 0.0
    %1196 = vmatpush1.msra.mxu0 0.0
    %1197 = vmatprep.subr.mxu0 0.0
    %1198 = vmatpush1.msra.mxu0 0.0
    %1199 = vmatprep.subr.mxu0 0.0
    %1200 = vmatpush1.msra.mxu0 0.0
    %1201 = vmatprep.subr.mxu0 0.0
    %1202 = vmatpush1.msra.mxu0 0.0
    %1203 = vmatprep.subr.mxu0 0.0
    %1204 = vmatpush1.msra.mxu0 0.0
    %1205 = vmatprep.subr.mxu0 0.0
    %1206 = vmatpush1.msra.mxu0 0.0
    %1207 = vmatprep.subr.mxu0 0.0
    %1208 = vmatpush1.msra.mxu0 0.0
    %1209 = vmatprep.mubr.f32.mxu0 0.0
    %1210 = vmatmul.mubr.f32.gmra.mrb[0].mxu0 %v1143
    %v1211 = vpop.f32.mrb[0].mxu0
    %v1212 = vadd.f32 %v1137, %v1211
    %v1213 = vpop.f32.mrb[0].mxu0
    %1214 = vdwg.mxu0
    %v1215 = vadd.f32 %v1212, %v866
    %v1216 = vxor.u32 %v1215, 2147483648
    %v1217 = vmul.f32 %v1216, 1.442695
    %v1218 = vpow.pop %v1217
    %v1219 = vadd.f32 %v1218, 1.0
    %v1220 = vrcp.pop %v1219
    %v1221 = vmul.f32 1.0, %v1220
    %v1222 = vtanh.pop %v1215
    %v1223 = vmul.f32 %v1221, %v890
    %1225 = vrot.lane.b32.xlu0 %v1222, 64
    %v1226 = vpop.permute.xlu0 %1225
    %v1228 = vmul.f32 %v1221, %v1226
    %1230 = vrot.lane.b32.xlu0 %v1228, 32
    %v1231 = vpop.permute.xlu0 %1230
    %v1233 = vadd.f32 %v1223, %v1231
    %v1234 = vtanh.pop %v1233
    %1236 = vrot.lane.b32.xlu0 %v1234, 64
    %v1237 = vpop.permute.xlu0 %1236
    %v1239 = vmul.f32 %v1221, %v1237
    %1240 = vmatprep.subr.mxu0 0.0
    %1241 = vmatpush1.msra.mxu0 %v518
    %1242 = vmatprep.subr.mxu0 0.0
    %1243 = vmatpush1.msra.mxu0 %v519
    %1244 = vmatprep.subr.mxu0 0.0
    %1245 = vmatpush1.msra.mxu0 %v520
    %1246 = vmatprep.subr.mxu0 0.0
    %1247 = vmatpush1.msra.mxu0 %v521
    %1248 = vmatprep.subr.mxu0 0.0
    %1249 = vmatpush1.msra.mxu0 0.0
    %1250 = vmatprep.subr.mxu0 0.0
    %1251 = vmatpush1.msra.mxu0 0.0
    %1252 = vmatprep.subr.mxu0 0.0
    %1253 = vmatpush1.msra.mxu0 0.0
    %1254 = vmatprep.subr.mxu0 0.0
    %1255 = vmatpush1.msra.mxu0 0.0
    %1256 = vmatprep.subr.mxu0 0.0
    %1257 = vmatpush1.msra.mxu0 0.0
    %1258 = vmatprep.subr.mxu0 0.0
    %1259 = vmatpush1.msra.mxu0 0.0
    %1260 = vmatprep.subr.mxu0 0.0
    %1261 = vmatpush1.msra.mxu0 0.0
    %1262 = vmatprep.subr.mxu0 0.0
    %1263 = vmatpush1.msra.mxu0 0.0
    %1264 = vmatprep.subr.mxu0 0.0
    %1265 = vmatpush1.msra.mxu0 0.0
    %1266 = vmatprep.subr.mxu0 0.0
    %1267 = vmatpush1.msra.mxu0 0.0
    %1268 = vmatprep.subr.mxu0 0.0
    %1269 = vmatpush1.msra.mxu0 0.0
    %1270 = vmatprep.subr.mxu0 0.0
    %1271 = vmatpush1.msra.mxu0 0.0
    %1272 = vmatprep.subr.mxu0 0.0
    %1273 = vmatpush1.msra.mxu0 0.0
    %1274 = vmatprep.subr.mxu0 0.0
    %1275 = vmatpush1.msra.mxu0 0.0
    %1276 = vmatprep.subr.mxu0 0.0
    %1277 = vmatpush1.msra.mxu0 0.0
    %1278 = vmatprep.subr.mxu0 0.0
    %1279 = vmatpush1.msra.mxu0 0.0
    %1280 = vmatprep.subr.mxu0 0.0
    %1281 = vmatpush1.msra.mxu0 0.0
    %1282 = vmatprep.subr.mxu0 0.0
    %1283 = vmatpush1.msra.mxu0 0.0
    %1284 = vmatprep.subr.mxu0 0.0
    %1285 = vmatpush1.msra.mxu0 0.0
    %1286 = vmatprep.subr.mxu0 0.0
    %1287 = vmatpush1.msra.mxu0 0.0
    %1288 = vmatprep.subr.mxu0 0.0
    %1289 = vmatpush1.msra.mxu0 0.0
    %1290 = vmatprep.subr.mxu0 0.0
    %1291 = vmatpush1.msra.mxu0 0.0
    %1292 = vmatprep.subr.mxu0 0.0
    %1293 = vmatpush1.msra.mxu0 0.0
    %1294 = vmatprep.subr.mxu0 0.0
    %1295 = vmatpush1.msra.mxu0 0.0
    %1296 = vmatprep.subr.mxu0 0.0
    %1297 = vmatpush1.msra.mxu0 0.0
    %1298 = vmatprep.subr.mxu0 0.0
    %1299 = vmatpush1.msra.mxu0 0.0
    %1300 = vmatprep.subr.mxu0 0.0
    %1301 = vmatpush1.msra.mxu0 0.0
    %1302 = vmatprep.subr.mxu0 0.0
    %1303 = vmatpush1.msra.mxu0 0.0
    %1304 = vmatprep.mubr.f32.mxu0 0.0
    %1305 = vmatmul.mubr.f32.gmra.mrb[0].mxu0 %v1143
    %v1306 = vpop.f32.mrb[0].mxu0
    %v1307 = vadd.f32 0.0, %v1306
    %v1308 = vpop.f32.mrb[0].mxu0
    %1309 = vdwg.mxu0
    %v1311 = vsel %vm522, %v247, 0
    %1313 = vmatprep.subr.mxu0 0.0
    %1314 = vmatpush1.msra.mxu0 %v508
    %1315 = vmatprep.subr.mxu0 0.0
    %1316 = vmatpush1.msra.mxu0 %v509
    %1317 = vmatprep.subr.mxu0 0.0
    %1318 = vmatpush1.msra.mxu0 %v510
    %1319 = vmatprep.subr.mxu0 0.0
    %1320 = vmatpush1.msra.mxu0 %v511
    %1321 = vmatprep.subr.mxu0 0.0
    %1322 = vmatpush1.msra.mxu0 0.0
    %1323 = vmatprep.subr.mxu0 0.0
    %1324 = vmatpush1.msra.mxu0 0.0
    %1325 = vmatprep.subr.mxu0 0.0
    %1326 = vmatpush1.msra.mxu0 0.0
    %1327 = vmatprep.subr.mxu0 0.0
    %1328 = vmatpush1.msra.mxu0 0.0
    %1329 = vmatprep.subr.mxu0 0.0
    %1330 = vmatpush1.msra.mxu0 0.0
    %1331 = vmatprep.subr.mxu0 0.0
    %1332 = vmatpush1.msra.mxu0 0.0
    %1333 = vmatprep.subr.mxu0 0.0
    %1334 = vmatpush1.msra.mxu0 0.0
    %1335 = vmatprep.subr.mxu0 0.0
    %1336 = vmatpush1.msra.mxu0 0.0
    %1337 = vmatprep.subr.mxu0 0.0
    %1338 = vmatpush1.msra.mxu0 0.0
    %1339 = vmatprep.subr.mxu0 0.0
    %1340 = vmatpush1.msra.mxu0 0.0
    %1341 = vmatprep.subr.mxu0 0.0
    %1342 = vmatpush1.msra.mxu0 0.0
    %1343 = vmatprep.subr.mxu0 0.0
    %1344 = vmatpush1.msra.mxu0 0.0
    %1345 = vmatprep.subr.mxu0 0.0
    %1346 = vmatpush1.msra.mxu0 0.0
    %1347 = vmatprep.subr.mxu0 0.0
    %1348 = vmatpush1.msra.mxu0 0.0
    %1349 = vmatprep.subr.mxu0 0.0
    %1350 = vmatpush1.msra.mxu0 0.0
    %1351 = vmatprep.subr.mxu0 0.0
    %1352 = vmatpush1.msra.mxu0 0.0
    %1353 = vmatprep.subr.mxu0 0.0
    %1354 = vmatpush1.msra.mxu0 0.0
    %1355 = vmatprep.subr.mxu0 0.0
    %1356 = vmatpush1.msra.mxu0 0.0
    %1357 = vmatprep.subr.mxu0 0.0
    %1358 = vmatpush1.msra.mxu0 0.0
    %1359 = vmatprep.subr.mxu0 0.0
    %1360 = vmatpush1.msra.mxu0 0.0
    %1361 = vmatprep.subr.mxu0 0.0
    %1362 = vmatpush1.msra.mxu0 0.0
    %1363 = vmatprep.subr.mxu0 0.0
    %1364 = vmatpush1.msra.mxu0 0.0
    %1365 = vmatprep.subr.mxu0 0.0
    %1366 = vmatpush1.msra.mxu0 0.0
    %1367 = vmatprep.subr.mxu0 0.0
    %1368 = vmatpush1.msra.mxu0 0.0
    %1369 = vmatprep.subr.mxu0 0.0
    %1370 = vmatpush1.msra.mxu0 0.0
    %1371 = vmatprep.subr.mxu0 0.0
    %1372 = vmatpush1.msra.mxu0 0.0
    %1373 = vmatprep.subr.mxu0 0.0
    %1374 = vmatpush1.msra.mxu0 0.0
    %1375 = vmatprep.subr.mxu0 0.0
    %1376 = vmatpush1.msra.mxu0 0.0
    %1377 = vmatprep.mubr.f32.mxu0 0.0
    %1378 = vmatmul.mubr.f32.gmra.mrb[0].mxu0 %v1311
    %v1379 = vpop.f32.mrb[0].mxu0
    %v1380 = vadd.f32 %v1307, %v1379
    %v1381 = vpop.f32.mrb[0].mxu0
    %1382 = vdwg.mxu0
    %v1383 = vadd.f32 %v1380, %v674
    %v1384 = vxor.u32 %v1383, 2147483648
    %v1385 = vmul.f32 %v1384, 1.442695
    %v1386 = vpow.pop %v1385
    %v1387 = vadd.f32 %v1386, 1.0
    %v1388 = vrcp.pop %v1387
    %v1389 = vmul.f32 1.0, %v1388
    %v1390 = vtanh.pop %v1383
    %v1391 = vmul.f32 %v1389, %v1058
    %1393 = vrot.lane.b32.xlu0 %v1390, 64
    %v1394 = vpop.permute.xlu0 %1393
    %v1396 = vmul.f32 %v1389, %v1394
    %1398 = vrot.lane.b32.xlu0 %v1396, 32
    %v1399 = vpop.permute.xlu0 %1398
    %v1401 = vadd.f32 %v1391, %v1399
    %v1402 = vtanh.pop %v1401
    %1404 = vrot.lane.b32.xlu0 %v1402, 64
    %v1405 = vpop.permute.xlu0 %1404
    %v1407 = vmul.f32 %v1389, %v1405
    %1409 = vrot.lane.b32.xlu0 %v1239, 32
    %v1410 = vpop.permute.xlu0 %1409
    %v1411 = vsel %vm522, %v1410, 0
    %1413 = vmatprep.subr.mxu0 0.0
    %1414 = vmatpush1.msra.mxu0 %v709
    %1415 = vmatprep.subr.mxu0 0.0
    %1416 = vmatpush1.msra.mxu0 %v710
    %1417 = vmatprep.subr.mxu0 0.0
    %1418 = vmatpush1.msra.mxu0 %v711
    %1419 = vmatprep.subr.mxu0 0.0
    %1420 = vmatpush1.msra.mxu0 %v712
    %1421 = vmatprep.subr.mxu0 0.0
    %1422 = vmatpush1.msra.mxu0 0.0
    %1423 = vmatprep.subr.mxu0 0.0
    %1424 = vmatpush1.msra.mxu0 0.0
    %1425 = vmatprep.subr.mxu0 0.0
    %1426 = vmatpush1.msra.mxu0 0.0
    %1427 = vmatprep.subr.mxu0 0.0
    %1428 = vmatpush1.msra.mxu0 0.0
    %1429 = vmatprep.subr.mxu0 0.0
    %1430 = vmatpush1.msra.mxu0 0.0
    %1431 = vmatprep.subr.mxu0 0.0
    %1432 = vmatpush1.msra.mxu0 0.0
    %1433 = vmatprep.subr.mxu0 0.0
    %1434 = vmatpush1.msra.mxu0 0.0
    %1435 = vmatprep.subr.mxu0 0.0
    %1436 = vmatpush1.msra.mxu0 0.0
    %1437 = vmatprep.subr.mxu0 0.0
    %1438 = vmatpush1.msra.mxu0 0.0
    %1439 = vmatprep.subr.mxu0 0.0
    %1440 = vmatpush1.msra.mxu0 0.0
    %1441 = vmatprep.subr.mxu0 0.0
    %1442 = vmatpush1.msra.mxu0 0.0
    %1443 = vmatprep.subr.mxu0 0.0
    %1444 = vmatpush1.msra.mxu0 0.0
    %1445 = vmatprep.subr.mxu0 0.0
    %1446 = vmatpush1.msra.mxu0 0.0
    %1447 = vmatprep.subr.mxu0 0.0
    %1448 = vmatpush1.msra.mxu0 0.0
    %1449 = vmatprep.subr.mxu0 0.0
    %1450 = vmatpush1.msra.mxu0 0.0
    %1451 = vmatprep.subr.mxu0 0.0
    %1452 = vmatpush1.msra.mxu0 0.0
    %1453 = vmatprep.subr.mxu0 0.0
    %1454 = vmatpush1.msra.mxu0 0.0
    %1455 = vmatprep.subr.mxu0 0.0
    %1456 = vmatpush1.msra.mxu0 0.0
    %1457 = vmatprep.subr.mxu0 0.0
    %1458 = vmatpush1.msra.mxu0 0.0
    %1459 = vmatprep.subr.mxu0 0.0
    %1460 = vmatpush1.msra.mxu0 0.0
    %1461 = vmatprep.subr.mxu0 0.0
    %1462 = vmatpush1.msra.mxu0 0.0
    %1463 = vmatprep.subr.mxu0 0.0
    %1464 = vmatpush1.msra.mxu0 0.0
    %1465 = vmatprep.subr.mxu0 0.0
    %1466 = vmatpush1.msra.mxu0 0.0
    %1467 = vmatprep.subr.mxu0 0.0
    %1468 = vmatpush1.msra.mxu0 0.0
    %1469 = vmatprep.subr.mxu0 0.0
    %1470 = vmatpush1.msra.mxu0 0.0
    %1471 = vmatprep.subr.mxu0 0.0
    %1472 = vmatpush1.msra.mxu0 0.0
    %1473 = vmatprep.subr.mxu0 0.0
    %1474 = vmatpush1.msra.mxu0 0.0
    %1475 = vmatprep.subr.mxu0 0.0
    %1476 = vmatpush1.msra.mxu0 0.0
    %1477 = vmatprep.mubr.f32.mxu0 0.0
    %1478 = vmatmul.mubr.f32.gmra.mrb[0].mxu0 %v1411
    %v1479 = vpop.f32.mrb[0].mxu0
    %v1480 = vadd.f32 0.0, %v1479
    %v1481 = vpop.f32.mrb[0].mxu0
    %1482 = vdwg.mxu0
    %1484 = vrot.lane.b32.xlu0 %v1407, 32
    %v1485 = vpop.permute.xlu0 %1484
    %v1486 = vsel %vm522, %v1485, 0
    %1488 = vmatprep.subr.mxu0 0.0
    %1489 = vmatpush1.msra.mxu0 %v705
    %1490 = vmatprep.subr.mxu0 0.0
    %1491 = vmatpush1.msra.mxu0 %v706
    %1492 = vmatprep.subr.mxu0 0.0
    %1493 = vmatpush1.msra.mxu0 %v707
    %1494 = vmatprep.subr.mxu0 0.0
    %1495 = vmatpush1.msra.mxu0 %v708
    %1496 = vmatprep.subr.mxu0 0.0
    %1497 = vmatpush1.msra.mxu0 0.0
    %1498 = vmatprep.subr.mxu0 0.0
    %1499 = vmatpush1.msra.mxu0 0.0
    %1500 = vmatprep.subr.mxu0 0.0
    %1501 = vmatpush1.msra.mxu0 0.0
    %1502 = vmatprep.subr.mxu0 0.0
    %1503 = vmatpush1.msra.mxu0 0.0
    %1504 = vmatprep.subr.mxu0 0.0
    %1505 = vmatpush1.msra.mxu0 0.0
    %1506 = vmatprep.subr.mxu0 0.0
    %1507 = vmatpush1.msra.mxu0 0.0
    %1508 = vmatprep.subr.mxu0 0.0
    %1509 = vmatpush1.msra.mxu0 0.0
    %1510 = vmatprep.subr.mxu0 0.0
    %1511 = vmatpush1.msra.mxu0 0.0
    %1512 = vmatprep.subr.mxu0 0.0
    %1513 = vmatpush1.msra.mxu0 0.0
    %1514 = vmatprep.subr.mxu0 0.0
    %1515 = vmatpush1.msra.mxu0 0.0
    %1516 = vmatprep.subr.mxu0 0.0
    %1517 = vmatpush1.msra.mxu0 0.0
    %1518 = vmatprep.subr.mxu0 0.0
    %1519 = vmatpush1.msra.mxu0 0.0
    %1520 = vmatprep.subr.mxu0 0.0
    %1521 = vmatpush1.msra.mxu0 0.0
    %1522 = vmatprep.subr.mxu0 0.0
    %1523 = vmatpush1.msra.mxu0 0.0
    %1524 = vmatprep.subr.mxu0 0.0
    %1525 = vmatpush1.msra.mxu0 0.0
    %1526 = vmatprep.subr.mxu0 0.0
    %1527 = vmatpush1.msra.mxu0 0.0
    %1528 = vmatprep.subr.mxu0 0.0
    %1529 = vmatpush1.msra.mxu0 0.0
    %1530 = vmatprep.subr.mxu0 0.0
    %1531 = vmatpush1.msra.mxu0 0.0
    %1532 = vmatprep.subr.mxu0 0.0
    %1533 = vmatpush1.msra.mxu0 0.0
    %1534 = vmatprep.subr.mxu0 0.0
    %1535 = vmatpush1.msra.mxu0 0.0
    %1536 = vmatprep.subr.mxu0 0.0
    %1537 = vmatpush1.msra.mxu0 0.0
    %1538 = vmatprep.subr.mxu0 0.0
    %1539 = vmatpush1.msra.mxu0 0.0
    %1540 = vmatprep.subr.mxu0 0.0
    %1541 = vmatpush1.msra.mxu0 0.0
    %1542 = vmatprep.subr.mxu0 0.0
    %1543 = vmatpush1.msra.mxu0 0.0
    %1544 = vmatprep.subr.mxu0 0.0
    %1545 = vmatpush1.msra.mxu0 0.0
    %1546 = vmatprep.subr.mxu0 0.0
    %1547 = vmatpush1.msra.mxu0 0.0
    %1548 = vmatprep.subr.mxu0 0.0
    %1549 = vmatpush1.msra.mxu0 0.0
    %1550 = vmatprep.subr.mxu0 0.0
    %1551 = vmatpush1.msra.mxu0 0.0
    %1552 = vmatprep.mubr.f32.mxu0 0.0
    %1553 = vmatmul.mubr.f32.gmra.mrb[0].mxu0 %v1486
    %v1554 = vpop.f32.mrb[0].mxu0
    %v1555 = vadd.f32 %v1480, %v1554
    %v1556 = vpop.f32.mrb[0].mxu0
    %1557 = vdwg.mxu0
    %v1558 = vadd.f32 %v1555, %v866
    %v1559 = vxor.u32 %v1558, 2147483648
    %v1560 = vmul.f32 %v1559, 1.442695
    %v1561 = vpow.pop %v1560
    %v1562 = vadd.f32 %v1561, 1.0
    %v1563 = vrcp.pop %v1562
    %v1564 = vmul.f32 1.0, %v1563
    %v1565 = vtanh.pop %v1558
    %v1566 = vmul.f32 %v1564, %v1233
    %1568 = vrot.lane.b32.xlu0 %v1565, 64
    %v1569 = vpop.permute.xlu0 %1568
    %v1571 = vmul.f32 %v1564, %v1569
    %1573 = vrot.lane.b32.xlu0 %v1571, 32
    %v1574 = vpop.permute.xlu0 %1573
    %v1576 = vadd.f32 %v1566, %v1574
    %v1577 = vtanh.pop %v1576
    %1579 = vrot.lane.b32.xlu0 %v1577, 64
    %v1580 = vpop.permute.xlu0 %1579
    %v1582 = vmul.f32 %v1564, %v1580
    %1583 = vmatprep.subr.mxu0 0.0
    %1584 = vmatpush1.msra.mxu0 %v518
    %1585 = vmatprep.subr.mxu0 0.0
    %1586 = vmatpush1.msra.mxu0 %v519
    %1587 = vmatprep.subr.mxu0 0.0
    %1588 = vmatpush1.msra.mxu0 %v520
    %1589 = vmatprep.subr.mxu0 0.0
    %1590 = vmatpush1.msra.mxu0 %v521
    %1591 = vmatprep.subr.mxu0 0.0
    %1592 = vmatpush1.msra.mxu0 0.0
    %1593 = vmatprep.subr.mxu0 0.0
    %1594 = vmatpush1.msra.mxu0 0.0
    %1595 = vmatprep.subr.mxu0 0.0
    %1596 = vmatpush1.msra.mxu0 0.0
    %1597 = vmatprep.subr.mxu0 0.0
    %1598 = vmatpush1.msra.mxu0 0.0
    %1599 = vmatprep.subr.mxu0 0.0
    %1600 = vmatpush1.msra.mxu0 0.0
    %1601 = vmatprep.subr.mxu0 0.0
    %1602 = vmatpush1.msra.mxu0 0.0
    %1603 = vmatprep.subr.mxu0 0.0
    %1604 = vmatpush1.msra.mxu0 0.0
    %1605 = vmatprep.subr.mxu0 0.0
    %1606 = vmatpush1.msra.mxu0 0.0
    %1607 = vmatprep.subr.mxu0 0.0
    %1608 = vmatpush1.msra.mxu0 0.0
    %1609 = vmatprep.subr.mxu0 0.0
    %1610 = vmatpush1.msra.mxu0 0.0
    %1611 = vmatprep.subr.mxu0 0.0
    %1612 = vmatpush1.msra.mxu0 0.0
    %1613 = vmatprep.subr.mxu0 0.0
    %1614 = vmatpush1.msra.mxu0 0.0
    %1615 = vmatprep.subr.mxu0 0.0
    %1616 = vmatpush1.msra.mxu0 0.0
    %1617 = vmatprep.subr.mxu0 0.0
    %1618 = vmatpush1.msra.mxu0 0.0
    %1619 = vmatprep.subr.mxu0 0.0
    %1620 = vmatpush1.msra.mxu0 0.0
    %1621 = vmatprep.subr.mxu0 0.0
    %1622 = vmatpush1.msra.mxu0 0.0
    %1623 = vmatprep.subr.mxu0 0.0
    %1624 = vmatpush1.msra.mxu0 0.0
    %1625 = vmatprep.subr.mxu0 0.0
    %1626 = vmatpush1.msra.mxu0 0.0
    %1627 = vmatprep.subr.mxu0 0.0
    %1628 = vmatpush1.msra.mxu0 0.0
    %1629 = vmatprep.subr.mxu0 0.0
    %1630 = vmatpush1.msra.mxu0 0.0
    %1631 = vmatprep.subr.mxu0 0.0
    %1632 = vmatpush1.msra.mxu0 0.0
    %1633 = vmatprep.subr.mxu0 0.0
    %1634 = vmatpush1.msra.mxu0 0.0
    %1635 = vmatprep.subr.mxu0 0.0
    %1636 = vmatpush1.msra.mxu0 0.0
    %1637 = vmatprep.subr.mxu0 0.0
    %1638 = vmatpush1.msra.mxu0 0.0
    %1639 = vmatprep.subr.mxu0 0.0
    %1640 = vmatpush1.msra.mxu0 0.0
    %1641 = vmatprep.subr.mxu0 0.0
    %1642 = vmatpush1.msra.mxu0 0.0
    %1643 = vmatprep.subr.mxu0 0.0
    %1644 = vmatpush1.msra.mxu0 0.0
    %1645 = vmatprep.subr.mxu0 0.0
    %1646 = vmatpush1.msra.mxu0 0.0
    %1647 = vmatprep.mubr.f32.mxu0 0.0
    %1648 = vmatmul.mubr.f32.gmra.mrb[0].mxu0 %v1486
    %v1649 = vpop.f32.mrb[0].mxu0
    %v1650 = vadd.f32 0.0, %v1649
    %v1651 = vpop.f32.mrb[0].mxu0
    %1652 = vdwg.mxu0
    %v1654 = vsel %vm522, %v299, 0
    %1656 = vmatprep.subr.mxu0 0.0
    %1657 = vmatpush1.msra.mxu0 %v508
    %1658 = vmatprep.subr.mxu0 0.0
    %1659 = vmatpush1.msra.mxu0 %v509
    %1660 = vmatprep.subr.mxu0 0.0
    %1661 = vmatpush1.msra.mxu0 %v510
    %1662 = vmatprep.subr.mxu0 0.0
    %1663 = vmatpush1.msra.mxu0 %v511
    %1664 = vmatprep.subr.mxu0 0.0
    %1665 = vmatpush1.msra.mxu0 0.0
    %1666 = vmatprep.subr.mxu0 0.0
    %1667 = vmatpush1.msra.mxu0 0.0
    %1668 = vmatprep.subr.mxu0 0.0
    %1669 = vmatpush1.msra.mxu0 0.0
    %1670 = vmatprep.subr.mxu0 0.0
    %1671 = vmatpush1.msra.mxu0 0.0
    %1672 = vmatprep.subr.mxu0 0.0
    %1673 = vmatpush1.msra.mxu0 0.0
    %1674 = vmatprep.subr.mxu0 0.0
    %1675 = vmatpush1.msra.mxu0 0.0
    %1676 = vmatprep.subr.mxu0 0.0
    %1677 = vmatpush1.msra.mxu0 0.0
    %1678 = vmatprep.subr.mxu0 0.0
    %1679 = vmatpush1.msra.mxu0 0.0
    %1680 = vmatprep.subr.mxu0 0.0
    %1681 = vmatpush1.msra.mxu0 0.0
    %1682 = vmatprep.subr.mxu0 0.0
    %1683 = vmatpush1.msra.mxu0 0.0
    %1684 = vmatprep.subr.mxu0 0.0
    %1685 = vmatpush1.msra.mxu0 0.0
    %1686 = vmatprep.subr.mxu0 0.0
    %1687 = vmatpush1.msra.mxu0 0.0
    %1688 = vmatprep.subr.mxu0 0.0
    %1689 = vmatpush1.msra.mxu0 0.0
    %1690 = vmatprep.subr.mxu0 0.0
    %1691 = vmatpush1.msra.mxu0 0.0
    %1692 = vmatprep.subr.mxu0 0.0
    %1693 = vmatpush1.msra.mxu0 0.0
    %1694 = vmatprep.subr.mxu0 0.0
    %1695 = vmatpush1.msra.mxu0 0.0
    %1696 = vmatprep.subr.mxu0 0.0
    %1697 = vmatpush1.msra.mxu0 0.0
    %1698 = vmatprep.subr.mxu0 0.0
    %1699 = vmatpush1.msra.mxu0 0.0
    %1700 = vmatprep.subr.mxu0 0.0
    %1701 = vmatpush1.msra.mxu0 0.0
    %1702 = vmatprep.subr.mxu0 0.0
    %1703 = vmatpush1.msra.mxu0 0.0
    %1704 = vmatprep.subr.mxu0 0.0
    %1705 = vmatpush1.msra.mxu0 0.0
    %1706 = vmatprep.subr.mxu0 0.0
    %1707 = vmatpush1.msra.mxu0 0.0
    %1708 = vmatprep.subr.mxu0 0.0
    %1709 = vmatpush1.msra.mxu0 0.0
    %1710 = vmatprep.subr.mxu0 0.0
    %1711 = vmatpush1.msra.mxu0 0.0
    %1712 = vmatprep.subr.mxu0 0.0
    %1713 = vmatpush1.msra.mxu0 0.0
    %1714 = vmatprep.subr.mxu0 0.0
    %1715 = vmatpush1.msra.mxu0 0.0
    %1716 = vmatprep.subr.mxu0 0.0
    %1717 = vmatpush1.msra.mxu0 0.0
    %1718 = vmatprep.subr.mxu0 0.0
    %1719 = vmatpush1.msra.mxu0 0.0
    %1720 = vmatprep.mubr.f32.mxu0 0.0
    %1721 = vmatmul.mubr.f32.gmra.mrb[0].mxu0 %v1654
    %v1722 = vpop.f32.mrb[0].mxu0
    %v1723 = vadd.f32 %v1650, %v1722
    %v1724 = vpop.f32.mrb[0].mxu0
    %1725 = vdwg.mxu0
    %v1726 = vadd.f32 %v1723, %v674
    %v1727 = vxor.u32 %v1726, 2147483648
    %v1728 = vmul.f32 %v1727, 1.442695
    %v1729 = vpow.pop %v1728
    %v1730 = vadd.f32 %v1729, 1.0
    %v1731 = vrcp.pop %v1730
    %v1732 = vmul.f32 1.0, %v1731
    %v1733 = vtanh.pop %v1726
    %v1734 = vmul.f32 %v1732, %v1401
    %1736 = vrot.lane.b32.xlu0 %v1733, 64
    %v1737 = vpop.permute.xlu0 %1736
    %v1739 = vmul.f32 %v1732, %v1737
    %1741 = vrot.lane.b32.xlu0 %v1739, 32
    %v1742 = vpop.permute.xlu0 %1741
    %v1744 = vadd.f32 %v1734, %v1742
    %v1745 = vtanh.pop %v1744
    %1747 = vrot.lane.b32.xlu0 %v1745, 64
    %v1748 = vpop.permute.xlu0 %1747
    %v1750 = vmul.f32 %v1732, %v1748
    %1752 = vrot.lane.b32.xlu0 %v1582, 32
    %v1753 = vpop.permute.xlu0 %1752
    %v1754 = vsel %vm522, %v1753, 0
    %1756 = vmatprep.subr.mxu0 0.0
    %1757 = vmatpush1.msra.mxu0 %v709
    %1758 = vmatprep.subr.mxu0 0.0
    %1759 = vmatpush1.msra.mxu0 %v710
    %1760 = vmatprep.subr.mxu0 0.0
    %1761 = vmatpush1.msra.mxu0 %v711
    %1762 = vmatprep.subr.mxu0 0.0
    %1763 = vmatpush1.msra.mxu0 %v712
    %1764 = vmatprep.subr.mxu0 0.0
    %1765 = vmatpush1.msra.mxu0 0.0
    %1766 = vmatprep.subr.mxu0 0.0
    %1767 = vmatpush1.msra.mxu0 0.0
    %1768 = vmatprep.subr.mxu0 0.0
    %1769 = vmatpush1.msra.mxu0 0.0
    %1770 = vmatprep.subr.mxu0 0.0
    %1771 = vmatpush1.msra.mxu0 0.0
    %1772 = vmatprep.subr.mxu0 0.0
    %1773 = vmatpush1.msra.mxu0 0.0
    %1774 = vmatprep.subr.mxu0 0.0
    %1775 = vmatpush1.msra.mxu0 0.0
    %1776 = vmatprep.subr.mxu0 0.0
    %1777 = vmatpush1.msra.mxu0 0.0
    %1778 = vmatprep.subr.mxu0 0.0
    %1779 = vmatpush1.msra.mxu0 0.0
    %1780 = vmatprep.subr.mxu0 0.0
    %1781 = vmatpush1.msra.mxu0 0.0
    %1782 = vmatprep.subr.mxu0 0.0
    %1783 = vmatpush1.msra.mxu0 0.0
    %1784 = vmatprep.subr.mxu0 0.0
    %1785 = vmatpush1.msra.mxu0 0.0
    %1786 = vmatprep.subr.mxu0 0.0
    %1787 = vmatpush1.msra.mxu0 0.0
    %1788 = vmatprep.subr.mxu0 0.0
    %1789 = vmatpush1.msra.mxu0 0.0
    %1790 = vmatprep.subr.mxu0 0.0
    %1791 = vmatpush1.msra.mxu0 0.0
    %1792 = vmatprep.subr.mxu0 0.0
    %1793 = vmatpush1.msra.mxu0 0.0
    %1794 = vmatprep.subr.mxu0 0.0
    %1795 = vmatpush1.msra.mxu0 0.0
    %1796 = vmatprep.subr.mxu0 0.0
    %1797 = vmatpush1.msra.mxu0 0.0
    %1798 = vmatprep.subr.mxu0 0.0
    %1799 = vmatpush1.msra.mxu0 0.0
    %1800 = vmatprep.subr.mxu0 0.0
    %1801 = vmatpush1.msra.mxu0 0.0
    %1802 = vmatprep.subr.mxu0 0.0
    %1803 = vmatpush1.msra.mxu0 0.0
    %1804 = vmatprep.subr.mxu0 0.0
    %1805 = vmatpush1.msra.mxu0 0.0
    %1806 = vmatprep.subr.mxu0 0.0
    %1807 = vmatpush1.msra.mxu0 0.0
    %1808 = vmatprep.subr.mxu0 0.0
    %1809 = vmatpush1.msra.mxu0 0.0
    %1810 = vmatprep.subr.mxu0 0.0
    %1811 = vmatpush1.msra.mxu0 0.0
    %1812 = vmatprep.subr.mxu0 0.0
    %1813 = vmatpush1.msra.mxu0 0.0
    %1814 = vmatprep.subr.mxu0 0.0
    %1815 = vmatpush1.msra.mxu0 0.0
    %1816 = vmatprep.subr.mxu0 0.0
    %1817 = vmatpush1.msra.mxu0 0.0
    %1818 = vmatprep.subr.mxu0 0.0
    %1819 = vmatpush1.msra.mxu0 0.0
    %1820 = vmatprep.mubr.f32.mxu0 0.0
    %1821 = vmatmul.mubr.f32.gmra.mrb[0].mxu0 %v1754
    %v1822 = vpop.f32.mrb[0].mxu0
    %v1823 = vadd.f32 0.0, %v1822
    %v1824 = vpop.f32.mrb[0].mxu0
    %1825 = vdwg.mxu0
    %1827 = vrot.lane.b32.xlu0 %v1750, 32
    %v1828 = vpop.permute.xlu0 %1827
    %v1829 = vsel %vm522, %v1828, 0
    %1831 = vmatprep.subr.mxu0 0.0
    %1832 = vmatpush1.msra.mxu0 %v705
    %1833 = vmatprep.subr.mxu0 0.0
    %1834 = vmatpush1.msra.mxu0 %v706
    %1835 = vmatprep.subr.mxu0 0.0
    %1836 = vmatpush1.msra.mxu0 %v707
    %1837 = vmatprep.subr.mxu0 0.0
    %1838 = vmatpush1.msra.mxu0 %v708
    %1839 = vmatprep.subr.mxu0 0.0
    %1840 = vmatpush1.msra.mxu0 0.0
    %1841 = vmatprep.subr.mxu0 0.0
    %1842 = vmatpush1.msra.mxu0 0.0
    %1843 = vmatprep.subr.mxu0 0.0
    %1844 = vmatpush1.msra.mxu0 0.0
    %1845 = vmatprep.subr.mxu0 0.0
    %1846 = vmatpush1.msra.mxu0 0.0
    %1847 = vmatprep.subr.mxu0 0.0
    %1848 = vmatpush1.msra.mxu0 0.0
    %1849 = vmatprep.subr.mxu0 0.0
    %1850 = vmatpush1.msra.mxu0 0.0
    %1851 = vmatprep.subr.mxu0 0.0
    %1852 = vmatpush1.msra.mxu0 0.0
    %1853 = vmatprep.subr.mxu0 0.0
    %1854 = vmatpush1.msra.mxu0 0.0
    %1855 = vmatprep.subr.mxu0 0.0
    %1856 = vmatpush1.msra.mxu0 0.0
    %1857 = vmatprep.subr.mxu0 0.0
    %1858 = vmatpush1.msra.mxu0 0.0
    %1859 = vmatprep.subr.mxu0 0.0
    %1860 = vmatpush1.msra.mxu0 0.0
    %1861 = vmatprep.subr.mxu0 0.0
    %1862 = vmatpush1.msra.mxu0 0.0
    %1863 = vmatprep.subr.mxu0 0.0
    %1864 = vmatpush1.msra.mxu0 0.0
    %1865 = vmatprep.subr.mxu0 0.0
    %1866 = vmatpush1.msra.mxu0 0.0
    %1867 = vmatprep.subr.mxu0 0.0
    %1868 = vmatpush1.msra.mxu0 0.0
    %1869 = vmatprep.subr.mxu0 0.0
    %1870 = vmatpush1.msra.mxu0 0.0
    %1871 = vmatprep.subr.mxu0 0.0
    %1872 = vmatpush1.msra.mxu0 0.0
    %1873 = vmatprep.subr.mxu0 0.0
    %1874 = vmatpush1.msra.mxu0 0.0
    %1875 = vmatprep.subr.mxu0 0.0
    %1876 = vmatpush1.msra.mxu0 0.0
    %1877 = vmatprep.subr.mxu0 0.0
    %1878 = vmatpush1.msra.mxu0 0.0
    %1879 = vmatprep.subr.mxu0 0.0
    %1880 = vmatpush1.msra.mxu0 0.0
    %1881 = vmatprep.subr.mxu0 0.0
    %1882 = vmatpush1.msra.mxu0 0.0
    %1883 = vmatprep.subr.mxu0 0.0
    %1884 = vmatpush1.msra.mxu0 0.0
    %1885 = vmatprep.subr.mxu0 0.0
    %1886 = vmatpush1.msra.mxu0 0.0
    %1887 = vmatprep.subr.mxu0 0.0
    %1888 = vmatpush1.msra.mxu0 0.0
    %1889 = vmatprep.subr.mxu0 0.0
    %1890 = vmatpush1.msra.mxu0 0.0
    %1891 = vmatprep.subr.mxu0 0.0
    %1892 = vmatpush1.msra.mxu0 0.0
    %1893 = vmatprep.subr.mxu0 0.0
    %1894 = vmatpush1.msra.mxu0 0.0
    %1895 = vmatprep.mubr.f32.mxu0 0.0
    %1896 = vmatmul.mubr.f32.gmra.mrb[0].mxu0 %v1829
    %v1897 = vpop.f32.mrb[0].mxu0
    %v1898 = vadd.f32 %v1823, %v1897
    %v1899 = vpop.f32.mrb[0].mxu0
    %1900 = vdwg.mxu0
    %v1901 = vadd.f32 %v1898, %v866
    %v1902 = vxor.u32 %v1901, 2147483648
    %v1903 = vmul.f32 %v1902, 1.442695
    %v1904 = vpow.pop %v1903
    %v1905 = vadd.f32 %v1904, 1.0
    %v1906 = vrcp.pop %v1905
    %v1907 = vmul.f32 1.0, %v1906
    %v1908 = vtanh.pop %v1901
    %v1909 = vmul.f32 %v1907, %v1576
    %1911 = vrot.lane.b32.xlu0 %v1908, 64
    %v1912 = vpop.permute.xlu0 %1911
    %v1914 = vmul.f32 %v1907, %v1912
    %1916 = vrot.lane.b32.xlu0 %v1914, 32
    %v1917 = vpop.permute.xlu0 %1916
    %v1919 = vadd.f32 %v1909, %v1917
    %v1920 = vtanh.pop %v1919
    %1922 = vrot.lane.b32.xlu0 %v1920, 64
    %v1923 = vpop.permute.xlu0 %1922
    %v1925 = vmul.f32 %v1907, %v1923
    %1926 = vmatprep.subr.mxu0 0.0
    %1927 = vmatpush1.msra.mxu0 %v518
    %1928 = vmatprep.subr.mxu0 0.0
    %1929 = vmatpush1.msra.mxu0 %v519
    %1930 = vmatprep.subr.mxu0 0.0
    %1931 = vmatpush1.msra.mxu0 %v520
    %1932 = vmatprep.subr.mxu0 0.0
    %1933 = vmatpush1.msra.mxu0 %v521
    %1934 = vmatprep.subr.mxu0 0.0
    %1935 = vmatpush1.msra.mxu0 0.0
    %1936 = vmatprep.subr.mxu0 0.0
    %1937 = vmatpush1.msra.mxu0 0.0
    %1938 = vmatprep.subr.mxu0 0.0
    %1939 = vmatpush1.msra.mxu0 0.0
    %1940 = vmatprep.subr.mxu0 0.0
    %1941 = vmatpush1.msra.mxu0 0.0
    %1942 = vmatprep.subr.mxu0 0.0
    %1943 = vmatpush1.msra.mxu0 0.0
    %1944 = vmatprep.subr.mxu0 0.0
    %1945 = vmatpush1.msra.mxu0 0.0
    %1946 = vmatprep.subr.mxu0 0.0
    %1947 = vmatpush1.msra.mxu0 0.0
    %1948 = vmatprep.subr.mxu0 0.0
    %1949 = vmatpush1.msra.mxu0 0.0
    %1950 = vmatprep.subr.mxu0 0.0
    %1951 = vmatpush1.msra.mxu0 0.0
    %1952 = vmatprep.subr.mxu0 0.0
    %1953 = vmatpush1.msra.mxu0 0.0
    %1954 = vmatprep.subr.mxu0 0.0
    %1955 = vmatpush1.msra.mxu0 0.0
    %1956 = vmatprep.subr.mxu0 0.0
    %1957 = vmatpush1.msra.mxu0 0.0
    %1958 = vmatprep.subr.mxu0 0.0
    %1959 = vmatpush1.msra.mxu0 0.0
    %1960 = vmatprep.subr.mxu0 0.0
    %1961 = vmatpush1.msra.mxu0 0.0
    %1962 = vmatprep.subr.mxu0 0.0
    %1963 = vmatpush1.msra.mxu0 0.0
    %1964 = vmatprep.subr.mxu0 0.0
    %1965 = vmatpush1.msra.mxu0 0.0
    %1966 = vmatprep.subr.mxu0 0.0
    %1967 = vmatpush1.msra.mxu0 0.0
    %1968 = vmatprep.subr.mxu0 0.0
    %1969 = vmatpush1.msra.mxu0 0.0
    %1970 = vmatprep.subr.mxu0 0.0
    %1971 = vmatpush1.msra.mxu0 0.0
    %1972 = vmatprep.subr.mxu0 0.0
    %1973 = vmatpush1.msra.mxu0 0.0
    %1974 = vmatprep.subr.mxu0 0.0
    %1975 = vmatpush1.msra.mxu0 0.0
    %1976 = vmatprep.subr.mxu0 0.0
    %1977 = vmatpush1.msra.mxu0 0.0
    %1978 = vmatprep.subr.mxu0 0.0
    %1979 = vmatpush1.msra.mxu0 0.0
    %1980 = vmatprep.subr.mxu0 0.0
    %1981 = vmatpush1.msra.mxu0 0.0
    %1982 = vmatprep.subr.mxu0 0.0
    %1983 = vmatpush1.msra.mxu0 0.0
    %1984 = vmatprep.subr.mxu0 0.0
    %1985 = vmatpush1.msra.mxu0 0.0
    %1986 = vmatprep.subr.mxu0 0.0
    %1987 = vmatpush1.msra.mxu0 0.0
    %1988 = vmatprep.subr.mxu0 0.0
    %1989 = vmatpush1.msra.mxu0 0.0
    %1990 = vmatprep.mubr.f32.mxu0 0.0
    %1991 = vmatmul.mubr.f32.gmra.mrb[0].mxu0 %v1829
    %v1992 = vpop.f32.mrb[0].mxu0
    %v1993 = vadd.f32 0.0, %v1992
    %v1994 = vpop.f32.mrb[0].mxu0
    %1995 = vdwg.mxu0
    %v1997 = vsel %vm522, %v351, 0
    %1999 = vmatprep.subr.mxu0 0.0
    %2000 = vmatpush1.msra.mxu0 %v508
    %2001 = vmatprep.subr.mxu0 0.0
    %2002 = vmatpush1.msra.mxu0 %v509
    %2003 = vmatprep.subr.mxu0 0.0
    %2004 = vmatpush1.msra.mxu0 %v510
    %2005 = vmatprep.subr.mxu0 0.0
    %2006 = vmatpush1.msra.mxu0 %v511
    %2007 = vmatprep.subr.mxu0 0.0
    %2008 = vmatpush1.msra.mxu0 0.0
    %2009 = vmatprep.subr.mxu0 0.0
    %2010 = vmatpush1.msra.mxu0 0.0
    %2011 = vmatprep.subr.mxu0 0.0
    %2012 = vmatpush1.msra.mxu0 0.0
    %2013 = vmatprep.subr.mxu0 0.0
    %2014 = vmatpush1.msra.mxu0 0.0
    %2015 = vmatprep.subr.mxu0 0.0
    %2016 = vmatpush1.msra.mxu0 0.0
    %2017 = vmatprep.subr.mxu0 0.0
    %2018 = vmatpush1.msra.mxu0 0.0
    %2019 = vmatprep.subr.mxu0 0.0
    %2020 = vmatpush1.msra.mxu0 0.0
    %2021 = vmatprep.subr.mxu0 0.0
    %2022 = vmatpush1.msra.mxu0 0.0
    %2023 = vmatprep.subr.mxu0 0.0
    %2024 = vmatpush1.msra.mxu0 0.0
    %2025 = vmatprep.subr.mxu0 0.0
    %2026 = vmatpush1.msra.mxu0 0.0
    %2027 = vmatprep.subr.mxu0 0.0
    %2028 = vmatpush1.msra.mxu0 0.0
    %2029 = vmatprep.subr.mxu0 0.0
    %2030 = vmatpush1.msra.mxu0 0.0
    %2031 = vmatprep.subr.mxu0 0.0
    %2032 = vmatpush1.msra.mxu0 0.0
    %2033 = vmatprep.subr.mxu0 0.0
    %2034 = vmatpush1.msra.mxu0 0.0
    %2035 = vmatprep.subr.mxu0 0.0
    %2036 = vmatpush1.msra.mxu0 0.0
    %2037 = vmatprep.subr.mxu0 0.0
    %2038 = vmatpush1.msra.mxu0 0.0
    %2039 = vmatprep.subr.mxu0 0.0
    %2040 = vmatpush1.msra.mxu0 0.0
    %2041 = vmatprep.subr.mxu0 0.0
    %2042 = vmatpush1.msra.mxu0 0.0
    %2043 = vmatprep.subr.mxu0 0.0
    %2044 = vmatpush1.msra.mxu0 0.0
    %2045 = vmatprep.subr.mxu0 0.0
    %2046 = vmatpush1.msra.mxu0 0.0
    %2047 = vmatprep.subr.mxu0 0.0
    %2048 = vmatpush1.msra.mxu0 0.0
    %2049 = vmatprep.subr.mxu0 0.0
    %2050 = vmatpush1.msra.mxu0 0.0
    %2051 = vmatprep.subr.mxu0 0.0
    %2052 = vmatpush1.msra.mxu0 0.0
    %2053 = vmatprep.subr.mxu0 0.0
    %2054 = vmatpush1.msra.mxu0 0.0
    %2055 = vmatprep.subr.mxu0 0.0
    %2056 = vmatpush1.msra.mxu0 0.0
    %2057 = vmatprep.subr.mxu0 0.0
    %2058 = vmatpush1.msra.mxu0 0.0
    %2059 = vmatprep.subr.mxu0 0.0
    %2060 = vmatpush1.msra.mxu0 0.0
    %2061 = vmatprep.subr.mxu0 0.0
    %2062 = vmatpush1.msra.mxu0 0.0
    %2063 = vmatprep.mubr.f32.mxu0 0.0
    %2064 = vmatmul.mubr.f32.gmra.mrb[0].mxu0 %v1997
    %v2065 = vpop.f32.mrb[0].mxu0
    %v2066 = vadd.f32 %v1993, %v2065
    %v2067 = vpop.f32.mrb[0].mxu0
    %2068 = vdwg.mxu0
    %v2069 = vadd.f32 %v2066, %v674
    %v2070 = vxor.u32 %v2069, 2147483648
    %v2071 = vmul.f32 %v2070, 1.442695
    %v2072 = vpow.pop %v2071
    %v2073 = vadd.f32 %v2072, 1.0
    %v2074 = vrcp.pop %v2073
    %v2075 = vmul.f32 1.0, %v2074
    %v2076 = vtanh.pop %v2069
    %v2077 = vmul.f32 %v2075, %v1744
    %2079 = vrot.lane.b32.xlu0 %v2076, 64
    %v2080 = vpop.permute.xlu0 %2079
    %v2082 = vmul.f32 %v2075, %v2080
    %2084 = vrot.lane.b32.xlu0 %v2082, 32
    %v2085 = vpop.permute.xlu0 %2084
    %v2087 = vadd.f32 %v2077, %v2085
    %v2088 = vtanh.pop %v2087
    %2090 = vrot.lane.b32.xlu0 %v2088, 64
    %v2091 = vpop.permute.xlu0 %2090
    %v2093 = vmul.f32 %v2075, %v2091
    %2095 = vrot.lane.b32.xlu0 %v1925, 32
    %v2096 = vpop.permute.xlu0 %2095
    %v2097 = vsel %vm522, %v2096, 0
    %2099 = vmatprep.subr.mxu0 0.0
    %2100 = vmatpush1.msra.mxu0 %v709
    %2101 = vmatprep.subr.mxu0 0.0
    %2102 = vmatpush1.msra.mxu0 %v710
    %2103 = vmatprep.subr.mxu0 0.0
    %2104 = vmatpush1.msra.mxu0 %v711
    %2105 = vmatprep.subr.mxu0 0.0
    %2106 = vmatpush1.msra.mxu0 %v712
    %2107 = vmatprep.subr.mxu0 0.0
    %2108 = vmatpush1.msra.mxu0 0.0
    %2109 = vmatprep.subr.mxu0 0.0
    %2110 = vmatpush1.msra.mxu0 0.0
    %2111 = vmatprep.subr.mxu0 0.0
    %2112 = vmatpush1.msra.mxu0 0.0
    %2113 = vmatprep.subr.mxu0 0.0
    %2114 = vmatpush1.msra.mxu0 0.0
    %2115 = vmatprep.subr.mxu0 0.0
    %2116 = vmatpush1.msra.mxu0 0.0
    %2117 = vmatprep.subr.mxu0 0.0
    %2118 = vmatpush1.msra.mxu0 0.0
    %2119 = vmatprep.subr.mxu0 0.0
    %2120 = vmatpush1.msra.mxu0 0.0
    %2121 = vmatprep.subr.mxu0 0.0
    %2122 = vmatpush1.msra.mxu0 0.0
    %2123 = vmatprep.subr.mxu0 0.0
    %2124 = vmatpush1.msra.mxu0 0.0
    %2125 = vmatprep.subr.mxu0 0.0
    %2126 = vmatpush1.msra.mxu0 0.0
    %2127 = vmatprep.subr.mxu0 0.0
    %2128 = vmatpush1.msra.mxu0 0.0
    %2129 = vmatprep.subr.mxu0 0.0
    %2130 = vmatpush1.msra.mxu0 0.0
    %2131 = vmatprep.subr.mxu0 0.0
    %2132 = vmatpush1.msra.mxu0 0.0
    %2133 = vmatprep.subr.mxu0 0.0
    %2134 = vmatpush1.msra.mxu0 0.0
    %2135 = vmatprep.subr.mxu0 0.0
    %2136 = vmatpush1.msra.mxu0 0.0
    %2137 = vmatprep.subr.mxu0 0.0
    %2138 = vmatpush1.msra.mxu0 0.0
    %2139 = vmatprep.subr.mxu0 0.0
    %2140 = vmatpush1.msra.mxu0 0.0
    %2141 = vmatprep.subr.mxu0 0.0
    %2142 = vmatpush1.msra.mxu0 0.0
    %2143 = vmatprep.subr.mxu0 0.0
    %2144 = vmatpush1.msra.mxu0 0.0
    %2145 = vmatprep.subr.mxu0 0.0
    %2146 = vmatpush1.msra.mxu0 0.0
    %2147 = vmatprep.subr.mxu0 0.0
    %2148 = vmatpush1.msra.mxu0 0.0
    %2149 = vmatprep.subr.mxu0 0.0
    %2150 = vmatpush1.msra.mxu0 0.0
    %2151 = vmatprep.subr.mxu0 0.0
    %2152 = vmatpush1.msra.mxu0 0.0
    %2153 = vmatprep.subr.mxu0 0.0
    %2154 = vmatpush1.msra.mxu0 0.0
    %2155 = vmatprep.subr.mxu0 0.0
    %2156 = vmatpush1.msra.mxu0 0.0
    %2157 = vmatprep.subr.mxu0 0.0
    %2158 = vmatpush1.msra.mxu0 0.0
    %2159 = vmatprep.subr.mxu0 0.0
    %2160 = vmatpush1.msra.mxu0 0.0
    %2161 = vmatprep.subr.mxu0 0.0
    %2162 = vmatpush1.msra.mxu0 0.0
    %2163 = vmatprep.mubr.f32.mxu0 0.0
    %2164 = vmatmul.mubr.f32.gmra.mrb[0].mxu0 %v2097
    %v2165 = vpop.f32.mrb[0].mxu0
    %v2166 = vadd.f32 0.0, %v2165
    %v2167 = vpop.f32.mrb[0].mxu0
    %2168 = vdwg.mxu0
    %2170 = vrot.lane.b32.xlu0 %v2093, 32
    %v2171 = vpop.permute.xlu0 %2170
    %v2172 = vsel %vm522, %v2171, 0
    %2174 = vmatprep.subr.mxu0 0.0
    %2175 = vmatpush1.msra.mxu0 %v705
    %2176 = vmatprep.subr.mxu0 0.0
    %2177 = vmatpush1.msra.mxu0 %v706
    %2178 = vmatprep.subr.mxu0 0.0
    %2179 = vmatpush1.msra.mxu0 %v707
    %2180 = vmatprep.subr.mxu0 0.0
    %2181 = vmatpush1.msra.mxu0 %v708
    %2182 = vmatprep.subr.mxu0 0.0
    %2183 = vmatpush1.msra.mxu0 0.0
    %2184 = vmatprep.subr.mxu0 0.0
    %2185 = vmatpush1.msra.mxu0 0.0
    %2186 = vmatprep.subr.mxu0 0.0
    %2187 = vmatpush1.msra.mxu0 0.0
    %2188 = vmatprep.subr.mxu0 0.0
    %2189 = vmatpush1.msra.mxu0 0.0
    %2190 = vmatprep.subr.mxu0 0.0
    %2191 = vmatpush1.msra.mxu0 0.0
    %2192 = vmatprep.subr.mxu0 0.0
    %2193 = vmatpush1.msra.mxu0 0.0
    %2194 = vmatprep.subr.mxu0 0.0
    %2195 = vmatpush1.msra.mxu0 0.0
    %2196 = vmatprep.subr.mxu0 0.0
    %2197 = vmatpush1.msra.mxu0 0.0
    %2198 = vmatprep.subr.mxu0 0.0
    %2199 = vmatpush1.msra.mxu0 0.0
    %2200 = vmatprep.subr.mxu0 0.0
    %2201 = vmatpush1.msra.mxu0 0.0
    %2202 = vmatprep.subr.mxu0 0.0
    %2203 = vmatpush1.msra.mxu0 0.0
    %2204 = vmatprep.subr.mxu0 0.0
    %2205 = vmatpush1.msra.mxu0 0.0
    %2206 = vmatprep.subr.mxu0 0.0
    %2207 = vmatpush1.msra.mxu0 0.0
    %2208 = vmatprep.subr.mxu0 0.0
    %2209 = vmatpush1.msra.mxu0 0.0
    %2210 = vmatprep.subr.mxu0 0.0
    %2211 = vmatpush1.msra.mxu0 0.0
    %2212 = vmatprep.subr.mxu0 0.0
    %2213 = vmatpush1.msra.mxu0 0.0
    %2214 = vmatprep.subr.mxu0 0.0
    %2215 = vmatpush1.msra.mxu0 0.0
    %2216 = vmatprep.subr.mxu0 0.0
    %2217 = vmatpush1.msra.mxu0 0.0
    %2218 = vmatprep.subr.mxu0 0.0
    %2219 = vmatpush1.msra.mxu0 0.0
    %2220 = vmatprep.subr.mxu0 0.0
    %2221 = vmatpush1.msra.mxu0 0.0
    %2222 = vmatprep.subr.mxu0 0.0
    %2223 = vmatpush1.msra.mxu0 0.0
    %2224 = vmatprep.subr.mxu0 0.0
    %2225 = vmatpush1.msra.mxu0 0.0
    %2226 = vmatprep.subr.mxu0 0.0
    %2227 = vmatpush1.msra.mxu0 0.0
    %2228 = vmatprep.subr.mxu0 0.0
    %2229 = vmatpush1.msra.mxu0 0.0
    %2230 = vmatprep.subr.mxu0 0.0
    %2231 = vmatpush1.msra.mxu0 0.0
    %2232 = vmatprep.subr.mxu0 0.0
    %2233 = vmatpush1.msra.mxu0 0.0
    %2234 = vmatprep.subr.mxu0 0.0
    %2235 = vmatpush1.msra.mxu0 0.0
    %2236 = vmatprep.subr.mxu0 0.0
    %2237 = vmatpush1.msra.mxu0 0.0
    %2238 = vmatprep.mubr.f32.mxu0 0.0
    %2239 = vmatmul.mubr.f32.gmra.mrb[0].mxu0 %v2172
    %v2240 = vpop.f32.mrb[0].mxu0
    %v2241 = vadd.f32 %v2166, %v2240
    %v2242 = vpop.f32.mrb[0].mxu0
    %2243 = vdwg.mxu0
    %v2244 = vadd.f32 %v2241, %v866
    %v2245 = vxor.u32 %v2244, 2147483648
    %v2246 = vmul.f32 %v2245, 1.442695
    %v2247 = vpow.pop %v2246
    %v2248 = vadd.f32 %v2247, 1.0
    %v2249 = vrcp.pop %v2248
    %v2250 = vmul.f32 1.0, %v2249
    %v2251 = vtanh.pop %v2244
    %v2252 = vmul.f32 %v2250, %v1919
    %2254 = vrot.lane.b32.xlu0 %v2251, 64
    %v2255 = vpop.permute.xlu0 %2254
    %v2257 = vmul.f32 %v2250, %v2255
    %2259 = vrot.lane.b32.xlu0 %v2257, 32
    %v2260 = vpop.permute.xlu0 %2259
    %v2262 = vadd.f32 %v2252, %v2260
    %v2263 = vtanh.pop %v2262
    %2265 = vrot.lane.b32.xlu0 %v2263, 64
    %v2266 = vpop.permute.xlu0 %2265
    %v2268 = vmul.f32 %v2250, %v2266
    %2269 = vmatprep.subr.mxu0 0.0
    %2270 = vmatpush1.msra.mxu0 %v518
    %2271 = vmatprep.subr.mxu0 0.0
    %2272 = vmatpush1.msra.mxu0 %v519
    %2273 = vmatprep.subr.mxu0 0.0
    %2274 = vmatpush1.msra.mxu0 %v520
    %2275 = vmatprep.subr.mxu0 0.0
    %2276 = vmatpush1.msra.mxu0 %v521
    %2277 = vmatprep.subr.mxu0 0.0
    %2278 = vmatpush1.msra.mxu0 0.0
    %2279 = vmatprep.subr.mxu0 0.0
    %2280 = vmatpush1.msra.mxu0 0.0
    %2281 = vmatprep.subr.mxu0 0.0
    %2282 = vmatpush1.msra.mxu0 0.0
    %2283 = vmatprep.subr.mxu0 0.0
    %2284 = vmatpush1.msra.mxu0 0.0
    %2285 = vmatprep.subr.mxu0 0.0
    %2286 = vmatpush1.msra.mxu0 0.0
    %2287 = vmatprep.subr.mxu0 0.0
    %2288 = vmatpush1.msra.mxu0 0.0
    %2289 = vmatprep.subr.mxu0 0.0
    %2290 = vmatpush1.msra.mxu0 0.0
    %2291 = vmatprep.subr.mxu0 0.0
    %2292 = vmatpush1.msra.mxu0 0.0
    %2293 = vmatprep.subr.mxu0 0.0
    %2294 = vmatpush1.msra.mxu0 0.0
    %2295 = vmatprep.subr.mxu0 0.0
    %2296 = vmatpush1.msra.mxu0 0.0
    %2297 = vmatprep.subr.mxu0 0.0
    %2298 = vmatpush1.msra.mxu0 0.0
    %2299 = vmatprep.subr.mxu0 0.0
    %2300 = vmatpush1.msra.mxu0 0.0
    %2301 = vmatprep.subr.mxu0 0.0
    %2302 = vmatpush1.msra.mxu0 0.0
    %2303 = vmatprep.subr.mxu0 0.0
    %2304 = vmatpush1.msra.mxu0 0.0
    %2305 = vmatprep.subr.mxu0 0.0
    %2306 = vmatpush1.msra.mxu0 0.0
    %2307 = vmatprep.subr.mxu0 0.0
    %2308 = vmatpush1.msra.mxu0 0.0
    %2309 = vmatprep.subr.mxu0 0.0
    %2310 = vmatpush1.msra.mxu0 0.0
    %2311 = vmatprep.subr.mxu0 0.0
    %2312 = vmatpush1.msra.mxu0 0.0
    %2313 = vmatprep.subr.mxu0 0.0
    %2314 = vmatpush1.msra.mxu0 0.0
    %2315 = vmatprep.subr.mxu0 0.0
    %2316 = vmatpush1.msra.mxu0 0.0
    %2317 = vmatprep.subr.mxu0 0.0
    %2318 = vmatpush1.msra.mxu0 0.0
    %2319 = vmatprep.subr.mxu0 0.0
    %2320 = vmatpush1.msra.mxu0 0.0
    %2321 = vmatprep.subr.mxu0 0.0
    %2322 = vmatpush1.msra.mxu0 0.0
    %2323 = vmatprep.subr.mxu0 0.0
    %2324 = vmatpush1.msra.mxu0 0.0
    %2325 = vmatprep.subr.mxu0 0.0
    %2326 = vmatpush1.msra.mxu0 0.0
    %2327 = vmatprep.subr.mxu0 0.0
    %2328 = vmatpush1.msra.mxu0 0.0
    %2329 = vmatprep.subr.mxu0 0.0
    %2330 = vmatpush1.msra.mxu0 0.0
    %2331 = vmatprep.subr.mxu0 0.0
    %2332 = vmatpush1.msra.mxu0 0.0
    %2333 = vmatprep.mubr.f32.mxu0 0.0
    %2334 = vmatmul.mubr.f32.gmra.mrb[0].mxu0 %v2172
    %v2335 = vpop.f32.mrb[0].mxu0
    %v2336 = vadd.f32 0.0, %v2335
    %v2337 = vpop.f32.mrb[0].mxu0
    %2338 = vdwg.mxu0
    %v2340 = vsel %vm522, %v403, 0
    %2342 = vmatprep.subr.mxu0 0.0
    %2343 = vmatpush1.msra.mxu0 %v508
    %2344 = vmatprep.subr.mxu0 0.0
    %2345 = vmatpush1.msra.mxu0 %v509
    %2346 = vmatprep.subr.mxu0 0.0
    %2347 = vmatpush1.msra.mxu0 %v510
    %2348 = vmatprep.subr.mxu0 0.0
    %2349 = vmatpush1.msra.mxu0 %v511
    %2350 = vmatprep.subr.mxu0 0.0
    %2351 = vmatpush1.msra.mxu0 0.0
    %2352 = vmatprep.subr.mxu0 0.0
    %2353 = vmatpush1.msra.mxu0 0.0
    %2354 = vmatprep.subr.mxu0 0.0
    %2355 = vmatpush1.msra.mxu0 0.0
    %2356 = vmatprep.subr.mxu0 0.0
    %2357 = vmatpush1.msra.mxu0 0.0
    %2358 = vmatprep.subr.mxu0 0.0
    %2359 = vmatpush1.msra.mxu0 0.0
    %2360 = vmatprep.subr.mxu0 0.0
    %2361 = vmatpush1.msra.mxu0 0.0
    %2362 = vmatprep.subr.mxu0 0.0
    %2363 = vmatpush1.msra.mxu0 0.0
    %2364 = vmatprep.subr.mxu0 0.0
    %2365 = vmatpush1.msra.mxu0 0.0
    %2366 = vmatprep.subr.mxu0 0.0
    %2367 = vmatpush1.msra.mxu0 0.0
    %2368 = vmatprep.subr.mxu0 0.0
    %2369 = vmatpush1.msra.mxu0 0.0
    %2370 = vmatprep.subr.mxu0 0.0
    %2371 = vmatpush1.msra.mxu0 0.0
    %2372 = vmatprep.subr.mxu0 0.0
    %2373 = vmatpush1.msra.mxu0 0.0
    %2374 = vmatprep.subr.mxu0 0.0
    %2375 = vmatpush1.msra.mxu0 0.0
    %2376 = vmatprep.subr.mxu0 0.0
    %2377 = vmatpush1.msra.mxu0 0.0
    %2378 = vmatprep.subr.mxu0 0.0
    %2379 = vmatpush1.msra.mxu0 0.0
    %2380 = vmatprep.subr.mxu0 0.0
    %2381 = vmatpush1.msra.mxu0 0.0
    %2382 = vmatprep.subr.mxu0 0.0
    %2383 = vmatpush1.msra.mxu0 0.0
    %2384 = vmatprep.subr.mxu0 0.0
    %2385 = vmatpush1.msra.mxu0 0.0
    %2386 = vmatprep.subr.mxu0 0.0
    %2387 = vmatpush1.msra.mxu0 0.0
    %2388 = vmatprep.subr.mxu0 0.0
    %2389 = vmatpush1.msra.mxu0 0.0
    %2390 = vmatprep.subr.mxu0 0.0
    %2391 = vmatpush1.msra.mxu0 0.0
    %2392 = vmatprep.subr.mxu0 0.0
    %2393 = vmatpush1.msra.mxu0 0.0
    %2394 = vmatprep.subr.mxu0 0.0
    %2395 = vmatpush1.msra.mxu0 0.0
    %2396 = vmatprep.subr.mxu0 0.0
    %2397 = vmatpush1.msra.mxu0 0.0
    %2398 = vmatprep.subr.mxu0 0.0
    %2399 = vmatpush1.msra.mxu0 0.0
    %2400 = vmatprep.subr.mxu0 0.0
    %2401 = vmatpush1.msra.mxu0 0.0
    %2402 = vmatprep.subr.mxu0 0.0
    %2403 = vmatpush1.msra.mxu0 0.0
    %2404 = vmatprep.subr.mxu0 0.0
    %2405 = vmatpush1.msra.mxu0 0.0
    %2406 = vmatprep.mubr.f32.mxu0 0.0
    %2407 = vmatmul.mubr.f32.gmra.mrb[0].mxu0 %v2340
    %v2408 = vpop.f32.mrb[0].mxu0
    %v2409 = vadd.f32 %v2336, %v2408
    %v2410 = vpop.f32.mrb[0].mxu0
    %2411 = vdwg.mxu0
    %v2412 = vadd.f32 %v2409, %v674
    %v2413 = vxor.u32 %v2412, 2147483648
    %v2414 = vmul.f32 %v2413, 1.442695
    %v2415 = vpow.pop %v2414
    %v2416 = vadd.f32 %v2415, 1.0
    %v2417 = vrcp.pop %v2416
    %v2418 = vmul.f32 1.0, %v2417
    %v2419 = vtanh.pop %v2412
    %v2420 = vmul.f32 %v2418, %v2087
    %2422 = vrot.lane.b32.xlu0 %v2419, 64
    %v2423 = vpop.permute.xlu0 %2422
    %v2425 = vmul.f32 %v2418, %v2423
    %2427 = vrot.lane.b32.xlu0 %v2425, 32
    %v2428 = vpop.permute.xlu0 %2427
    %v2430 = vadd.f32 %v2420, %v2428
    %v2431 = vtanh.pop %v2430
    %2433 = vrot.lane.b32.xlu0 %v2431, 64
    %v2434 = vpop.permute.xlu0 %2433
    %v2436 = vmul.f32 %v2418, %v2434
    %2438 = vrot.lane.b32.xlu0 %v2268, 32
    %v2439 = vpop.permute.xlu0 %2438
    %v2440 = vsel %vm522, %v2439, 0
    %2442 = vmatprep.subr.mxu0 0.0
    %2443 = vmatpush1.msra.mxu0 %v709
    %2444 = vmatprep.subr.mxu0 0.0
    %2445 = vmatpush1.msra.mxu0 %v710
    %2446 = vmatprep.subr.mxu0 0.0
    %2447 = vmatpush1.msra.mxu0 %v711
    %2448 = vmatprep.subr.mxu0 0.0
    %2449 = vmatpush1.msra.mxu0 %v712
    %2450 = vmatprep.subr.mxu0 0.0
    %2451 = vmatpush1.msra.mxu0 0.0
    %2452 = vmatprep.subr.mxu0 0.0
    %2453 = vmatpush1.msra.mxu0 0.0
    %2454 = vmatprep.subr.mxu0 0.0
    %2455 = vmatpush1.msra.mxu0 0.0
    %2456 = vmatprep.subr.mxu0 0.0
    %2457 = vmatpush1.msra.mxu0 0.0
    %2458 = vmatprep.subr.mxu0 0.0
    %2459 = vmatpush1.msra.mxu0 0.0
    %2460 = vmatprep.subr.mxu0 0.0
    %2461 = vmatpush1.msra.mxu0 0.0
    %2462 = vmatprep.subr.mxu0 0.0
    %2463 = vmatpush1.msra.mxu0 0.0
    %2464 = vmatprep.subr.mxu0 0.0
    %2465 = vmatpush1.msra.mxu0 0.0
    %2466 = vmatprep.subr.mxu0 0.0
    %2467 = vmatpush1.msra.mxu0 0.0
    %2468 = vmatprep.subr.mxu0 0.0
    %2469 = vmatpush1.msra.mxu0 0.0
    %2470 = vmatprep.subr.mxu0 0.0
    %2471 = vmatpush1.msra.mxu0 0.0
    %2472 = vmatprep.subr.mxu0 0.0
    %2473 = vmatpush1.msra.mxu0 0.0
    %2474 = vmatprep.subr.mxu0 0.0
    %2475 = vmatpush1.msra.mxu0 0.0
    %2476 = vmatprep.subr.mxu0 0.0
    %2477 = vmatpush1.msra.mxu0 0.0
    %2478 = vmatprep.subr.mxu0 0.0
    %2479 = vmatpush1.msra.mxu0 0.0
    %2480 = vmatprep.subr.mxu0 0.0
    %2481 = vmatpush1.msra.mxu0 0.0
    %2482 = vmatprep.subr.mxu0 0.0
    %2483 = vmatpush1.msra.mxu0 0.0
    %2484 = vmatprep.subr.mxu0 0.0
    %2485 = vmatpush1.msra.mxu0 0.0
    %2486 = vmatprep.subr.mxu0 0.0
    %2487 = vmatpush1.msra.mxu0 0.0
    %2488 = vmatprep.subr.mxu0 0.0
    %2489 = vmatpush1.msra.mxu0 0.0
    %2490 = vmatprep.subr.mxu0 0.0
    %2491 = vmatpush1.msra.mxu0 0.0
    %2492 = vmatprep.subr.mxu0 0.0
    %2493 = vmatpush1.msra.mxu0 0.0
    %2494 = vmatprep.subr.mxu0 0.0
    %2495 = vmatpush1.msra.mxu0 0.0
    %2496 = vmatprep.subr.mxu0 0.0
    %2497 = vmatpush1.msra.mxu0 0.0
    %2498 = vmatprep.subr.mxu0 0.0
    %2499 = vmatpush1.msra.mxu0 0.0
    %2500 = vmatprep.subr.mxu0 0.0
    %2501 = vmatpush1.msra.mxu0 0.0
    %2502 = vmatprep.subr.mxu0 0.0
    %2503 = vmatpush1.msra.mxu0 0.0
    %2504 = vmatprep.subr.mxu0 0.0
    %2505 = vmatpush1.msra.mxu0 0.0
    %2506 = vmatprep.mubr.f32.mxu0 0.0
    %2507 = vmatmul.mubr.f32.gmra.mrb[0].mxu0 %v2440
    %v2508 = vpop.f32.mrb[0].mxu0
    %v2509 = vadd.f32 0.0, %v2508
    %v2510 = vpop.f32.mrb[0].mxu0
    %2511 = vdwg.mxu0
    %2513 = vrot.lane.b32.xlu0 %v2436, 32
    %v2514 = vpop.permute.xlu0 %2513
    %v2515 = vsel %vm522, %v2514, 0
    %2517 = vmatprep.subr.mxu0 0.0
    %2518 = vmatpush1.msra.mxu0 %v705
    %2519 = vmatprep.subr.mxu0 0.0
    %2520 = vmatpush1.msra.mxu0 %v706
    %2521 = vmatprep.subr.mxu0 0.0
    %2522 = vmatpush1.msra.mxu0 %v707
    %2523 = vmatprep.subr.mxu0 0.0
    %2524 = vmatpush1.msra.mxu0 %v708
    %2525 = vmatprep.subr.mxu0 0.0
    %2526 = vmatpush1.msra.mxu0 0.0
    %2527 = vmatprep.subr.mxu0 0.0
    %2528 = vmatpush1.msra.mxu0 0.0
    %2529 = vmatprep.subr.mxu0 0.0
    %2530 = vmatpush1.msra.mxu0 0.0
    %2531 = vmatprep.subr.mxu0 0.0
    %2532 = vmatpush1.msra.mxu0 0.0
    %2533 = vmatprep.subr.mxu0 0.0
    %2534 = vmatpush1.msra.mxu0 0.0
    %2535 = vmatprep.subr.mxu0 0.0
    %2536 = vmatpush1.msra.mxu0 0.0
    %2537 = vmatprep.subr.mxu0 0.0
    %2538 = vmatpush1.msra.mxu0 0.0
    %2539 = vmatprep.subr.mxu0 0.0
    %2540 = vmatpush1.msra.mxu0 0.0
    %2541 = vmatprep.subr.mxu0 0.0
    %2542 = vmatpush1.msra.mxu0 0.0
    %2543 = vmatprep.subr.mxu0 0.0
    %2544 = vmatpush1.msra.mxu0 0.0
    %2545 = vmatprep.subr.mxu0 0.0
    %2546 = vmatpush1.msra.mxu0 0.0
    %2547 = vmatprep.subr.mxu0 0.0
    %2548 = vmatpush1.msra.mxu0 0.0
    %2549 = vmatprep.subr.mxu0 0.0
    %2550 = vmatpush1.msra.mxu0 0.0
    %2551 = vmatprep.subr.mxu0 0.0
    %2552 = vmatpush1.msra.mxu0 0.0
    %2553 = vmatprep.subr.mxu0 0.0
    %2554 = vmatpush1.msra.mxu0 0.0
    %2555 = vmatprep.subr.mxu0 0.0
    %2556 = vmatpush1.msra.mxu0 0.0
    %2557 = vmatprep.subr.mxu0 0.0
    %2558 = vmatpush1.msra.mxu0 0.0
    %2559 = vmatprep.subr.mxu0 0.0
    %2560 = vmatpush1.msra.mxu0 0.0
    %2561 = vmatprep.subr.mxu0 0.0
    %2562 = vmatpush1.msra.mxu0 0.0
    %2563 = vmatprep.subr.mxu0 0.0
    %2564 = vmatpush1.msra.mxu0 0.0
    %2565 = vmatprep.subr.mxu0 0.0
    %2566 = vmatpush1.msra.mxu0 0.0
    %2567 = vmatprep.subr.mxu0 0.0
    %2568 = vmatpush1.msra.mxu0 0.0
    %2569 = vmatprep.subr.mxu0 0.0
    %2570 = vmatpush1.msra.mxu0 0.0
    %2571 = vmatprep.subr.mxu0 0.0
    %2572 = vmatpush1.msra.mxu0 0.0
    %2573 = vmatprep.subr.mxu0 0.0
    %2574 = vmatpush1.msra.mxu0 0.0
    %2575 = vmatprep.subr.mxu0 0.0
    %2576 = vmatpush1.msra.mxu0 0.0
    %2577 = vmatprep.subr.mxu0 0.0
    %2578 = vmatpush1.msra.mxu0 0.0
    %2579 = vmatprep.subr.mxu0 0.0
    %2580 = vmatpush1.msra.mxu0 0.0
    %2581 = vmatprep.mubr.f32.mxu0 0.0
    %2582 = vmatmul.mubr.f32.gmra.mrb[0].mxu0 %v2515
    %v2583 = vpop.f32.mrb[0].mxu0
    %v2584 = vadd.f32 %v2509, %v2583
    %v2585 = vpop.f32.mrb[0].mxu0
    %2586 = vdwg.mxu0
    %v2587 = vadd.f32 %v2584, %v866
    %v2588 = vxor.u32 %v2587, 2147483648
    %v2589 = vmul.f32 %v2588, 1.442695
    %v2590 = vpow.pop %v2589
    %v2591 = vadd.f32 %v2590, 1.0
    %v2592 = vrcp.pop %v2591
    %v2593 = vmul.f32 1.0, %v2592
    %v2594 = vtanh.pop %v2587
    %v2595 = vmul.f32 %v2593, %v2262
    %2597 = vrot.lane.b32.xlu0 %v2594, 64
    %v2598 = vpop.permute.xlu0 %2597
    %v2600 = vmul.f32 %v2593, %v2598
    %2602 = vrot.lane.b32.xlu0 %v2600, 32
    %v2603 = vpop.permute.xlu0 %2602
    %v2605 = vadd.f32 %v2595, %v2603
    %v2606 = vtanh.pop %v2605
    %2608 = vrot.lane.b32.xlu0 %v2606, 64
    %v2609 = vpop.permute.xlu0 %2608
    %v2611 = vmul.f32 %v2593, %v2609
    %2612 = vmatprep.subr.mxu0 0.0
    %2613 = vmatpush1.msra.mxu0 %v518
    %2614 = vmatprep.subr.mxu0 0.0
    %2615 = vmatpush1.msra.mxu0 %v519
    %2616 = vmatprep.subr.mxu0 0.0
    %2617 = vmatpush1.msra.mxu0 %v520
    %2618 = vmatprep.subr.mxu0 0.0
    %2619 = vmatpush1.msra.mxu0 %v521
    %2620 = vmatprep.subr.mxu0 0.0
    %2621 = vmatpush1.msra.mxu0 0.0
    %2622 = vmatprep.subr.mxu0 0.0
    %2623 = vmatpush1.msra.mxu0 0.0
    %2624 = vmatprep.subr.mxu0 0.0
    %2625 = vmatpush1.msra.mxu0 0.0
    %2626 = vmatprep.subr.mxu0 0.0
    %2627 = vmatpush1.msra.mxu0 0.0
    %2628 = vmatprep.subr.mxu0 0.0
    %2629 = vmatpush1.msra.mxu0 0.0
    %2630 = vmatprep.subr.mxu0 0.0
    %2631 = vmatpush1.msra.mxu0 0.0
    %2632 = vmatprep.subr.mxu0 0.0
    %2633 = vmatpush1.msra.mxu0 0.0
    %2634 = vmatprep.subr.mxu0 0.0
    %2635 = vmatpush1.msra.mxu0 0.0
    %2636 = vmatprep.subr.mxu0 0.0
    %2637 = vmatpush1.msra.mxu0 0.0
    %2638 = vmatprep.subr.mxu0 0.0
    %2639 = vmatpush1.msra.mxu0 0.0
    %2640 = vmatprep.subr.mxu0 0.0
    %2641 = vmatpush1.msra.mxu0 0.0
    %2642 = vmatprep.subr.mxu0 0.0
    %2643 = vmatpush1.msra.mxu0 0.0
    %2644 = vmatprep.subr.mxu0 0.0
    %2645 = vmatpush1.msra.mxu0 0.0
    %2646 = vmatprep.subr.mxu0 0.0
    %2647 = vmatpush1.msra.mxu0 0.0
    %2648 = vmatprep.subr.mxu0 0.0
    %2649 = vmatpush1.msra.mxu0 0.0
    %2650 = vmatprep.subr.mxu0 0.0
    %2651 = vmatpush1.msra.mxu0 0.0
    %2652 = vmatprep.subr.mxu0 0.0
    %2653 = vmatpush1.msra.mxu0 0.0
    %2654 = vmatprep.subr.mxu0 0.0
    %2655 = vmatpush1.msra.mxu0 0.0
    %2656 = vmatprep.subr.mxu0 0.0
    %2657 = vmatpush1.msra.mxu0 0.0
    %2658 = vmatprep.subr.mxu0 0.0
    %2659 = vmatpush1.msra.mxu0 0.0
    %2660 = vmatprep.subr.mxu0 0.0
    %2661 = vmatpush1.msra.mxu0 0.0
    %2662 = vmatprep.subr.mxu0 0.0
    %2663 = vmatpush1.msra.mxu0 0.0
    %2664 = vmatprep.subr.mxu0 0.0
    %2665 = vmatpush1.msra.mxu0 0.0
    %2666 = vmatprep.subr.mxu0 0.0
    %2667 = vmatpush1.msra.mxu0 0.0
    %2668 = vmatprep.subr.mxu0 0.0
    %2669 = vmatpush1.msra.mxu0 0.0
    %2670 = vmatprep.subr.mxu0 0.0
    %2671 = vmatpush1.msra.mxu0 0.0
    %2672 = vmatprep.subr.mxu0 0.0
    %2673 = vmatpush1.msra.mxu0 0.0
    %2674 = vmatprep.subr.mxu0 0.0
    %2675 = vmatpush1.msra.mxu0 0.0
    %2676 = vmatprep.mubr.f32.mxu0 0.0
    %2677 = vmatmul.mubr.f32.gmra.mrb[0].mxu0 %v2515
    %v2678 = vpop.f32.mrb[0].mxu0
    %v2679 = vadd.f32 0.0, %v2678
    %v2680 = vpop.f32.mrb[0].mxu0
    %2681 = vdwg.mxu0
    %v2683 = vsel %vm522, %v455, 0
    %2685 = vmatprep.subr.mxu0 0.0
    %2686 = vmatpush1.msra.mxu0 %v508
    %2687 = vmatprep.subr.mxu0 0.0
    %2688 = vmatpush1.msra.mxu0 %v509
    %2689 = vmatprep.subr.mxu0 0.0
    %2690 = vmatpush1.msra.mxu0 %v510
    %2691 = vmatprep.subr.mxu0 0.0
    %2692 = vmatpush1.msra.mxu0 %v511
    %2693 = vmatprep.subr.mxu0 0.0
    %2694 = vmatpush1.msra.mxu0 0.0
    %2695 = vmatprep.subr.mxu0 0.0
    %2696 = vmatpush1.msra.mxu0 0.0
    %2697 = vmatprep.subr.mxu0 0.0
    %2698 = vmatpush1.msra.mxu0 0.0
    %2699 = vmatprep.subr.mxu0 0.0
    %2700 = vmatpush1.msra.mxu0 0.0
    %2701 = vmatprep.subr.mxu0 0.0
    %2702 = vmatpush1.msra.mxu0 0.0
    %2703 = vmatprep.subr.mxu0 0.0
    %2704 = vmatpush1.msra.mxu0 0.0
    %2705 = vmatprep.subr.mxu0 0.0
    %2706 = vmatpush1.msra.mxu0 0.0
    %2707 = vmatprep.subr.mxu0 0.0
    %2708 = vmatpush1.msra.mxu0 0.0
    %2709 = vmatprep.subr.mxu0 0.0
    %2710 = vmatpush1.msra.mxu0 0.0
    %2711 = vmatprep.subr.mxu0 0.0
    %2712 = vmatpush1.msra.mxu0 0.0
    %2713 = vmatprep.subr.mxu0 0.0
    %2714 = vmatpush1.msra.mxu0 0.0
    %2715 = vmatprep.subr.mxu0 0.0
    %2716 = vmatpush1.msra.mxu0 0.0
    %2717 = vmatprep.subr.mxu0 0.0
    %2718 = vmatpush1.msra.mxu0 0.0
    %2719 = vmatprep.subr.mxu0 0.0
    %2720 = vmatpush1.msra.mxu0 0.0
    %2721 = vmatprep.subr.mxu0 0.0
    %2722 = vmatpush1.msra.mxu0 0.0
    %2723 = vmatprep.subr.mxu0 0.0
    %2724 = vmatpush1.msra.mxu0 0.0
    %2725 = vmatprep.subr.mxu0 0.0
    %2726 = vmatpush1.msra.mxu0 0.0
    %2727 = vmatprep.subr.mxu0 0.0
    %2728 = vmatpush1.msra.mxu0 0.0
    %2729 = vmatprep.subr.mxu0 0.0
    %2730 = vmatpush1.msra.mxu0 0.0
    %2731 = vmatprep.subr.mxu0 0.0
    %2732 = vmatpush1.msra.mxu0 0.0
    %2733 = vmatprep.subr.mxu0 0.0
    %2734 = vmatpush1.msra.mxu0 0.0
    %2735 = vmatprep.subr.mxu0 0.0
    %2736 = vmatpush1.msra.mxu0 0.0
    %2737 = vmatprep.subr.mxu0 0.0
    %2738 = vmatpush1.msra.mxu0 0.0
    %2739 = vmatprep.subr.mxu0 0.0
    %2740 = vmatpush1.msra.mxu0 0.0
    %2741 = vmatprep.subr.mxu0 0.0
    %2742 = vmatpush1.msra.mxu0 0.0
    %2743 = vmatprep.subr.mxu0 0.0
    %2744 = vmatpush1.msra.mxu0 0.0
    %2745 = vmatprep.subr.mxu0 0.0
    %2746 = vmatpush1.msra.mxu0 0.0
    %2747 = vmatprep.subr.mxu0 0.0
    %2748 = vmatpush1.msra.mxu0 0.0
    %2749 = vmatprep.mubr.f32.mxu0 0.0
    %2750 = vmatmul.mubr.f32.gmra.mrb[0].mxu0 %v2683
    %v2751 = vpop.f32.mrb[0].mxu0
    %v2752 = vadd.f32 %v2679, %v2751
    %v2753 = vpop.f32.mrb[0].mxu0
    %2754 = vdwg.mxu0
    %v2755 = vadd.f32 %v2752, %v674
    %v2756 = vxor.u32 %v2755, 2147483648
    %v2757 = vmul.f32 %v2756, 1.442695
    %v2758 = vpow.pop %v2757
    %v2759 = vadd.f32 %v2758, 1.0
    %v2760 = vrcp.pop %v2759
    %v2761 = vmul.f32 1.0, %v2760
    %v2762 = vtanh.pop %v2755
    %v2763 = vmul.f32 %v2761, %v2430
    %2765 = vrot.lane.b32.xlu0 %v2762, 64
    %v2766 = vpop.permute.xlu0 %2765
    %v2768 = vmul.f32 %v2761, %v2766
    %2770 = vrot.lane.b32.xlu0 %v2768, 32
    %v2771 = vpop.permute.xlu0 %2770
    %v2773 = vadd.f32 %v2763, %v2771
    %v2774 = vtanh.pop %v2773
    %2776 = vrot.lane.b32.xlu0 %v2774, 64
    %v2777 = vpop.permute.xlu0 %2776
    %v2779 = vmul.f32 %v2761, %v2777
    %2781 = vrot.lane.b32.xlu0 %v2611, 32
    %v2782 = vpop.permute.xlu0 %2781
    %v2783 = vsel %vm522, %v2782, 0
    %2785 = vmatprep.subr.mxu0 0.0
    %2786 = vmatpush1.msra.mxu0 %v709
    %2787 = vmatprep.subr.mxu0 0.0
    %2788 = vmatpush1.msra.mxu0 %v710
    %2789 = vmatprep.subr.mxu0 0.0
    %2790 = vmatpush1.msra.mxu0 %v711
    %2791 = vmatprep.subr.mxu0 0.0
    %2792 = vmatpush1.msra.mxu0 %v712
    %2793 = vmatprep.subr.mxu0 0.0
    %2794 = vmatpush1.msra.mxu0 0.0
    %2795 = vmatprep.subr.mxu0 0.0
    %2796 = vmatpush1.msra.mxu0 0.0
    %2797 = vmatprep.subr.mxu0 0.0
    %2798 = vmatpush1.msra.mxu0 0.0
    %2799 = vmatprep.subr.mxu0 0.0
    %2800 = vmatpush1.msra.mxu0 0.0
    %2801 = vmatprep.subr.mxu0 0.0
    %2802 = vmatpush1.msra.mxu0 0.0
    %2803 = vmatprep.subr.mxu0 0.0
    %2804 = vmatpush1.msra.mxu0 0.0
    %2805 = vmatprep.subr.mxu0 0.0
    %2806 = vmatpush1.msra.mxu0 0.0
    %2807 = vmatprep.subr.mxu0 0.0
    %2808 = vmatpush1.msra.mxu0 0.0
    %2809 = vmatprep.subr.mxu0 0.0
    %2810 = vmatpush1.msra.mxu0 0.0
    %2811 = vmatprep.subr.mxu0 0.0
    %2812 = vmatpush1.msra.mxu0 0.0
    %2813 = vmatprep.subr.mxu0 0.0
    %2814 = vmatpush1.msra.mxu0 0.0
    %2815 = vmatprep.subr.mxu0 0.0
    %2816 = vmatpush1.msra.mxu0 0.0
    %2817 = vmatprep.subr.mxu0 0.0
    %2818 = vmatpush1.msra.mxu0 0.0
    %2819 = vmatprep.subr.mxu0 0.0
    %2820 = vmatpush1.msra.mxu0 0.0
    %2821 = vmatprep.subr.mxu0 0.0
    %2822 = vmatpush1.msra.mxu0 0.0
    %2823 = vmatprep.subr.mxu0 0.0
    %2824 = vmatpush1.msra.mxu0 0.0
    %2825 = vmatprep.subr.mxu0 0.0
    %2826 = vmatpush1.msra.mxu0 0.0
    %2827 = vmatprep.subr.mxu0 0.0
    %2828 = vmatpush1.msra.mxu0 0.0
    %2829 = vmatprep.subr.mxu0 0.0
    %2830 = vmatpush1.msra.mxu0 0.0
    %2831 = vmatprep.subr.mxu0 0.0
    %2832 = vmatpush1.msra.mxu0 0.0
    %2833 = vmatprep.subr.mxu0 0.0
    %2834 = vmatpush1.msra.mxu0 0.0
    %2835 = vmatprep.subr.mxu0 0.0
    %2836 = vmatpush1.msra.mxu0 0.0
    %2837 = vmatprep.subr.mxu0 0.0
    %2838 = vmatpush1.msra.mxu0 0.0
    %2839 = vmatprep.subr.mxu0 0.0
    %2840 = vmatpush1.msra.mxu0 0.0
    %2841 = vmatprep.subr.mxu0 0.0
    %2842 = vmatpush1.msra.mxu0 0.0
    %2843 = vmatprep.subr.mxu0 0.0
    %2844 = vmatpush1.msra.mxu0 0.0
    %2845 = vmatprep.subr.mxu0 0.0
    %2846 = vmatpush1.msra.mxu0 0.0
    %2847 = vmatprep.subr.mxu0 0.0
    %2848 = vmatpush1.msra.mxu0 0.0
    %2849 = vmatprep.mubr.f32.mxu0 0.0
    %2850 = vmatmul.mubr.f32.gmra.mrb[0].mxu0 %v2783
    %v2851 = vpop.f32.mrb[0].mxu0
    %v2852 = vadd.f32 0.0, %v2851
    %v2853 = vpop.f32.mrb[0].mxu0
    %2854 = vdwg.mxu0
    %2856 = vrot.lane.b32.xlu0 %v2779, 32
    %v2857 = vpop.permute.xlu0 %2856
    %v2858 = vsel %vm522, %v2857, 0
    %2860 = vmatprep.subr.mxu0 0.0
    %2861 = vmatpush1.msra.mxu0 %v705
    %2862 = vmatprep.subr.mxu0 0.0
    %2863 = vmatpush1.msra.mxu0 %v706
    %2864 = vmatprep.subr.mxu0 0.0
    %2865 = vmatpush1.msra.mxu0 %v707
    %2866 = vmatprep.subr.mxu0 0.0
    %2867 = vmatpush1.msra.mxu0 %v708
    %2868 = vmatprep.subr.mxu0 0.0
    %2869 = vmatpush1.msra.mxu0 0.0
    %2870 = vmatprep.subr.mxu0 0.0
    %2871 = vmatpush1.msra.mxu0 0.0
    %2872 = vmatprep.subr.mxu0 0.0
    %2873 = vmatpush1.msra.mxu0 0.0
    %2874 = vmatprep.subr.mxu0 0.0
    %2875 = vmatpush1.msra.mxu0 0.0
    %2876 = vmatprep.subr.mxu0 0.0
    %2877 = vmatpush1.msra.mxu0 0.0
    %2878 = vmatprep.subr.mxu0 0.0
    %2879 = vmatpush1.msra.mxu0 0.0
    %2880 = vmatprep.subr.mxu0 0.0
    %2881 = vmatpush1.msra.mxu0 0.0
    %2882 = vmatprep.subr.mxu0 0.0
    %2883 = vmatpush1.msra.mxu0 0.0
    %2884 = vmatprep.subr.mxu0 0.0
    %2885 = vmatpush1.msra.mxu0 0.0
    %2886 = vmatprep.subr.mxu0 0.0
    %2887 = vmatpush1.msra.mxu0 0.0
    %2888 = vmatprep.subr.mxu0 0.0
    %2889 = vmatpush1.msra.mxu0 0.0
    %2890 = vmatprep.subr.mxu0 0.0
    %2891 = vmatpush1.msra.mxu0 0.0
    %2892 = vmatprep.subr.mxu0 0.0
    %2893 = vmatpush1.msra.mxu0 0.0
    %2894 = vmatprep.subr.mxu0 0.0
    %2895 = vmatpush1.msra.mxu0 0.0
    %2896 = vmatprep.subr.mxu0 0.0
    %2897 = vmatpush1.msra.mxu0 0.0
    %2898 = vmatprep.subr.mxu0 0.0
    %2899 = vmatpush1.msra.mxu0 0.0
    %2900 = vmatprep.subr.mxu0 0.0
    %2901 = vmatpush1.msra.mxu0 0.0
    %2902 = vmatprep.subr.mxu0 0.0
    %2903 = vmatpush1.msra.mxu0 0.0
    %2904 = vmatprep.subr.mxu0 0.0
    %2905 = vmatpush1.msra.mxu0 0.0
    %2906 = vmatprep.subr.mxu0 0.0
    %2907 = vmatpush1.msra.mxu0 0.0
    %2908 = vmatprep.subr.mxu0 0.0
    %2909 = vmatpush1.msra.mxu0 0.0
    %2910 = vmatprep.subr.mxu0 0.0
    %2911 = vmatpush1.msra.mxu0 0.0
    %2912 = vmatprep.subr.mxu0 0.0
    %2913 = vmatpush1.msra.mxu0 0.0
    %2914 = vmatprep.subr.mxu0 0.0
    %2915 = vmatpush1.msra.mxu0 0.0
    %2916 = vmatprep.subr.mxu0 0.0
    %2917 = vmatpush1.msra.mxu0 0.0
    %2918 = vmatprep.subr.mxu0 0.0
    %2919 = vmatpush1.msra.mxu0 0.0
    %2920 = vmatprep.subr.mxu0 0.0
    %2921 = vmatpush1.msra.mxu0 0.0
    %2922 = vmatprep.subr.mxu0 0.0
    %2923 = vmatpush1.msra.mxu0 0.0
    %2924 = vmatprep.mubr.f32.mxu0 0.0
    %2925 = vmatmul.mubr.f32.gmra.mrb[0].mxu0 %v2858
    %v2926 = vpop.f32.mrb[0].mxu0
    %v2927 = vadd.f32 %v2852, %v2926
    %v2928 = vpop.f32.mrb[0].mxu0
    %2929 = vdwg.mxu0
    %v2930 = vadd.f32 %v2927, %v866
    %v2931 = vxor.u32 %v2930, 2147483648
    %v2932 = vmul.f32 %v2931, 1.442695
    %v2933 = vpow.pop %v2932
    %v2934 = vadd.f32 %v2933, 1.0
    %v2935 = vrcp.pop %v2934
    %v2936 = vmul.f32 1.0, %v2935
    %v2937 = vtanh.pop %v2930
    %v2938 = vmul.f32 %v2936, %v2605
    %2940 = vrot.lane.b32.xlu0 %v2937, 64
    %v2941 = vpop.permute.xlu0 %2940
    %v2943 = vmul.f32 %v2936, %v2941
    %2945 = vrot.lane.b32.xlu0 %v2943, 32
    %v2946 = vpop.permute.xlu0 %2945
    %v2948 = vadd.f32 %v2938, %v2946
    %v2949 = vtanh.pop %v2948
    %2951 = vrot.lane.b32.xlu0 %v2949, 64
    %v2952 = vpop.permute.xlu0 %2951
    %v2954 = vmul.f32 %v2936, %v2952
    %2955 = vmatprep.subr.mxu0 0.0
    %2956 = vmatpush1.msra.mxu0 %v518
    %2957 = vmatprep.subr.mxu0 0.0
    %2958 = vmatpush1.msra.mxu0 %v519
    %2959 = vmatprep.subr.mxu0 0.0
    %2960 = vmatpush1.msra.mxu0 %v520
    %2961 = vmatprep.subr.mxu0 0.0
    %2962 = vmatpush1.msra.mxu0 %v521
    %2963 = vmatprep.subr.mxu0 0.0
    %2964 = vmatpush1.msra.mxu0 0.0
    %2965 = vmatprep.subr.mxu0 0.0
    %2966 = vmatpush1.msra.mxu0 0.0
    %2967 = vmatprep.subr.mxu0 0.0
    %2968 = vmatpush1.msra.mxu0 0.0
    %2969 = vmatprep.subr.mxu0 0.0
    %2970 = vmatpush1.msra.mxu0 0.0
    %2971 = vmatprep.subr.mxu0 0.0
    %2972 = vmatpush1.msra.mxu0 0.0
    %2973 = vmatprep.subr.mxu0 0.0
    %2974 = vmatpush1.msra.mxu0 0.0
    %2975 = vmatprep.subr.mxu0 0.0
    %2976 = vmatpush1.msra.mxu0 0.0
    %2977 = vmatprep.subr.mxu0 0.0
    %2978 = vmatpush1.msra.mxu0 0.0
    %2979 = vmatprep.subr.mxu0 0.0
    %2980 = vmatpush1.msra.mxu0 0.0
    %2981 = vmatprep.subr.mxu0 0.0
    %2982 = vmatpush1.msra.mxu0 0.0
    %2983 = vmatprep.subr.mxu0 0.0
    %2984 = vmatpush1.msra.mxu0 0.0
    %2985 = vmatprep.subr.mxu0 0.0
    %2986 = vmatpush1.msra.mxu0 0.0
    %2987 = vmatprep.subr.mxu0 0.0
    %2988 = vmatpush1.msra.mxu0 0.0
    %2989 = vmatprep.subr.mxu0 0.0
    %2990 = vmatpush1.msra.mxu0 0.0
    %2991 = vmatprep.subr.mxu0 0.0
    %2992 = vmatpush1.msra.mxu0 0.0
    %2993 = vmatprep.subr.mxu0 0.0
    %2994 = vmatpush1.msra.mxu0 0.0
    %2995 = vmatprep.subr.mxu0 0.0
    %2996 = vmatpush1.msra.mxu0 0.0
    %2997 = vmatprep.subr.mxu0 0.0
    %2998 = vmatpush1.msra.mxu0 0.0
    %2999 = vmatprep.subr.mxu0 0.0
    %3000 = vmatpush1.msra.mxu0 0.0
    %3001 = vmatprep.subr.mxu0 0.0
    %3002 = vmatpush1.msra.mxu0 0.0
    %3003 = vmatprep.subr.mxu0 0.0
    %3004 = vmatpush1.msra.mxu0 0.0
    %3005 = vmatprep.subr.mxu0 0.0
    %3006 = vmatpush1.msra.mxu0 0.0
    %3007 = vmatprep.subr.mxu0 0.0
    %3008 = vmatpush1.msra.mxu0 0.0
    %3009 = vmatprep.subr.mxu0 0.0
    %3010 = vmatpush1.msra.mxu0 0.0
    %3011 = vmatprep.subr.mxu0 0.0
    %3012 = vmatpush1.msra.mxu0 0.0
    %3013 = vmatprep.subr.mxu0 0.0
    %3014 = vmatpush1.msra.mxu0 0.0
    %3015 = vmatprep.subr.mxu0 0.0
    %3016 = vmatpush1.msra.mxu0 0.0
    %3017 = vmatprep.subr.mxu0 0.0
    %3018 = vmatpush1.msra.mxu0 0.0
    %3019 = vmatprep.mubr.f32.mxu0 0.0
    %3020 = vmatmul.mubr.f32.gmra.mrb[0].mxu0 %v2858
    %v3021 = vpop.f32.mrb[0].mxu0
    %v3022 = vadd.f32 0.0, %v3021
    %v3023 = vpop.f32.mrb[0].mxu0
    %3024 = vdwg.mxu0
    %v3026 = vsel %vm522, %v507, 0
    %3028 = vmatprep.subr.mxu0 0.0
    %3029 = vmatpush1.msra.mxu0 %v508
    %3030 = vmatprep.subr.mxu0 0.0
    %3031 = vmatpush1.msra.mxu0 %v509
    %3032 = vmatprep.subr.mxu0 0.0
    %3033 = vmatpush1.msra.mxu0 %v510
    %3034 = vmatprep.subr.mxu0 0.0
    %3035 = vmatpush1.msra.mxu0 %v511
    %3036 = vmatprep.subr.mxu0 0.0
    %3037 = vmatpush1.msra.mxu0 0.0
    %3038 = vmatprep.subr.mxu0 0.0
    %3039 = vmatpush1.msra.mxu0 0.0
    %3040 = vmatprep.subr.mxu0 0.0
    %3041 = vmatpush1.msra.mxu0 0.0
    %3042 = vmatprep.subr.mxu0 0.0
    %3043 = vmatpush1.msra.mxu0 0.0
    %3044 = vmatprep.subr.mxu0 0.0
    %3045 = vmatpush1.msra.mxu0 0.0
    %3046 = vmatprep.subr.mxu0 0.0
    %3047 = vmatpush1.msra.mxu0 0.0
    %3048 = vmatprep.subr.mxu0 0.0
    %3049 = vmatpush1.msra.mxu0 0.0
    %3050 = vmatprep.subr.mxu0 0.0
    %3051 = vmatpush1.msra.mxu0 0.0
    %3052 = vmatprep.subr.mxu0 0.0
    %3053 = vmatpush1.msra.mxu0 0.0
    %3054 = vmatprep.subr.mxu0 0.0
    %3055 = vmatpush1.msra.mxu0 0.0
    %3056 = vmatprep.subr.mxu0 0.0
    %3057 = vmatpush1.msra.mxu0 0.0
    %3058 = vmatprep.subr.mxu0 0.0
    %3059 = vmatpush1.msra.mxu0 0.0
    %3060 = vmatprep.subr.mxu0 0.0
    %3061 = vmatpush1.msra.mxu0 0.0
    %3062 = vmatprep.subr.mxu0 0.0
    %3063 = vmatpush1.msra.mxu0 0.0
    %3064 = vmatprep.subr.mxu0 0.0
    %3065 = vmatpush1.msra.mxu0 0.0
    %3066 = vmatprep.subr.mxu0 0.0
    %3067 = vmatpush1.msra.mxu0 0.0
    %3068 = vmatprep.subr.mxu0 0.0
    %3069 = vmatpush1.msra.mxu0 0.0
    %3070 = vmatprep.subr.mxu0 0.0
    %3071 = vmatpush1.msra.mxu0 0.0
    %3072 = vmatprep.subr.mxu0 0.0
    %3073 = vmatpush1.msra.mxu0 0.0
    %3074 = vmatprep.subr.mxu0 0.0
    %3075 = vmatpush1.msra.mxu0 0.0
    %3076 = vmatprep.subr.mxu0 0.0
    %3077 = vmatpush1.msra.mxu0 0.0
    %3078 = vmatprep.subr.mxu0 0.0
    %3079 = vmatpush1.msra.mxu0 0.0
    %3080 = vmatprep.subr.mxu0 0.0
    %3081 = vmatpush1.msra.mxu0 0.0
    %3082 = vmatprep.subr.mxu0 0.0
    %3083 = vmatpush1.msra.mxu0 0.0
    %3084 = vmatprep.subr.mxu0 0.0
    %3085 = vmatpush1.msra.mxu0 0.0
    %3086 = vmatprep.subr.mxu0 0.0
    %3087 = vmatpush1.msra.mxu0 0.0
    %3088 = vmatprep.subr.mxu0 0.0
    %3089 = vmatpush1.msra.mxu0 0.0
    %3090 = vmatprep.subr.mxu0 0.0
    %3091 = vmatpush1.msra.mxu0 0.0
    %3092 = vmatprep.mubr.f32.mxu0 0.0
    %3093 = vmatmul.mubr.f32.gmra.mrb[0].mxu0 %v3026
    %v3094 = vpop.f32.mrb[0].mxu0
    %v3095 = vadd.f32 %v3022, %v3094
    %v3096 = vpop.f32.mrb[0].mxu0
    %3097 = vdwg.mxu0
    %v3098 = vadd.f32 %v3095, %v674
    %v3099 = vxor.u32 %v3098, 2147483648
    %v3100 = vmul.f32 %v3099, 1.442695
    %v3101 = vpow.pop %v3100
    %v3102 = vadd.f32 %v3101, 1.0
    %v3103 = vrcp.pop %v3102
    %v3104 = vmul.f32 1.0, %v3103
    %v3105 = vtanh.pop %v3098
    %v3106 = vmul.f32 %v3104, %v2773
    %3108 = vrot.lane.b32.xlu0 %v3105, 64
    %v3109 = vpop.permute.xlu0 %3108
    %v3111 = vmul.f32 %v3104, %v3109
    %3113 = vrot.lane.b32.xlu0 %v3111, 32
    %v3114 = vpop.permute.xlu0 %3113
    %v3116 = vadd.f32 %v3106, %v3114
    %v3117 = vtanh.pop %v3116
    %3119 = vrot.lane.b32.xlu0 %v3117, 64
    %v3120 = vpop.permute.xlu0 %3119
    %v3122 = vmul.f32 %v3104, %v3120
    %3124 = vrot.lane.b32.xlu0 %v2954, 32
    %v3125 = vpop.permute.xlu0 %3124
    %v3126 = vsel %vm522, %v3125, 0
    %3128 = vmatprep.subr.mxu0 0.0
    %3129 = vmatpush1.msra.mxu0 %v709
    %3130 = vmatprep.subr.mxu0 0.0
    %3131 = vmatpush1.msra.mxu0 %v710
    %3132 = vmatprep.subr.mxu0 0.0
    %3133 = vmatpush1.msra.mxu0 %v711
    %3134 = vmatprep.subr.mxu0 0.0
    %3135 = vmatpush1.msra.mxu0 %v712
    %3136 = vmatprep.subr.mxu0 0.0
    %3137 = vmatpush1.msra.mxu0 0.0
    %3138 = vmatprep.subr.mxu0 0.0
    %3139 = vmatpush1.msra.mxu0 0.0
    %3140 = vmatprep.subr.mxu0 0.0
    %3141 = vmatpush1.msra.mxu0 0.0
    %3142 = vmatprep.subr.mxu0 0.0
    %3143 = vmatpush1.msra.mxu0 0.0
    %3144 = vmatprep.subr.mxu0 0.0
    %3145 = vmatpush1.msra.mxu0 0.0
    %3146 = vmatprep.subr.mxu0 0.0
    %3147 = vmatpush1.msra.mxu0 0.0
    %3148 = vmatprep.subr.mxu0 0.0
    %3149 = vmatpush1.msra.mxu0 0.0
    %3150 = vmatprep.subr.mxu0 0.0
    %3151 = vmatpush1.msra.mxu0 0.0
    %3152 = vmatprep.subr.mxu0 0.0
    %3153 = vmatpush1.msra.mxu0 0.0
    %3154 = vmatprep.subr.mxu0 0.0
    %3155 = vmatpush1.msra.mxu0 0.0
    %3156 = vmatprep.subr.mxu0 0.0
    %3157 = vmatpush1.msra.mxu0 0.0
    %3158 = vmatprep.subr.mxu0 0.0
    %3159 = vmatpush1.msra.mxu0 0.0
    %3160 = vmatprep.subr.mxu0 0.0
    %3161 = vmatpush1.msra.mxu0 0.0
    %3162 = vmatprep.subr.mxu0 0.0
    %3163 = vmatpush1.msra.mxu0 0.0
    %3164 = vmatprep.subr.mxu0 0.0
    %3165 = vmatpush1.msra.mxu0 0.0
    %3166 = vmatprep.subr.mxu0 0.0
    %3167 = vmatpush1.msra.mxu0 0.0
    %3168 = vmatprep.subr.mxu0 0.0
    %3169 = vmatpush1.msra.mxu0 0.0
    %3170 = vmatprep.subr.mxu0 0.0
    %3171 = vmatpush1.msra.mxu0 0.0
    %3172 = vmatprep.subr.mxu0 0.0
    %3173 = vmatpush1.msra.mxu0 0.0
    %3174 = vmatprep.subr.mxu0 0.0
    %3175 = vmatpush1.msra.mxu0 0.0
    %3176 = vmatprep.subr.mxu0 0.0
    %3177 = vmatpush1.msra.mxu0 0.0
    %3178 = vmatprep.subr.mxu0 0.0
    %3179 = vmatpush1.msra.mxu0 0.0
    %3180 = vmatprep.subr.mxu0 0.0
    %3181 = vmatpush1.msra.mxu0 0.0
    %3182 = vmatprep.subr.mxu0 0.0
    %3183 = vmatpush1.msra.mxu0 0.0
    %3184 = vmatprep.subr.mxu0 0.0
    %3185 = vmatpush1.msra.mxu0 0.0
    %3186 = vmatprep.subr.mxu0 0.0
    %3187 = vmatpush1.msra.mxu0 0.0
    %3188 = vmatprep.subr.mxu0 0.0
    %3189 = vmatpush1.msra.mxu0 0.0
    %3190 = vmatprep.subr.mxu0 0.0
    %3191 = vmatpush1.msra.mxu0 0.0
    %3192 = vmatprep.mubr.f32.mxu0 0.0
    %3193 = vmatmul.mubr.f32.gmra.mrb[0].mxu0 %v3126
    %v3194 = vpop.f32.mrb[0].mxu0
    %v3195 = vadd.f32 0.0, %v3194
    %v3196 = vpop.f32.mrb[0].mxu0
    %3197 = vdwg.mxu0
    %3199 = vrot.lane.b32.xlu0 %v3122, 32
    %v3200 = vpop.permute.xlu0 %3199
    %v3201 = vsel %vm522, %v3200, 0
    %3203 = vmatprep.subr.mxu0 0.0
    %3204 = vmatpush1.msra.mxu0 %v705
    %3205 = vmatprep.subr.mxu0 0.0
    %3206 = vmatpush1.msra.mxu0 %v706
    %3207 = vmatprep.subr.mxu0 0.0
    %3208 = vmatpush1.msra.mxu0 %v707
    %3209 = vmatprep.subr.mxu0 0.0
    %3210 = vmatpush1.msra.mxu0 %v708
    %3211 = vmatprep.subr.mxu0 0.0
    %3212 = vmatpush1.msra.mxu0 0.0
    %3213 = vmatprep.subr.mxu0 0.0
    %3214 = vmatpush1.msra.mxu0 0.0
    %3215 = vmatprep.subr.mxu0 0.0
    %3216 = vmatpush1.msra.mxu0 0.0
    %3217 = vmatprep.subr.mxu0 0.0
    %3218 = vmatpush1.msra.mxu0 0.0
    %3219 = vmatprep.subr.mxu0 0.0
    %3220 = vmatpush1.msra.mxu0 0.0
    %3221 = vmatprep.subr.mxu0 0.0
    %3222 = vmatpush1.msra.mxu0 0.0
    %3223 = vmatprep.subr.mxu0 0.0
    %3224 = vmatpush1.msra.mxu0 0.0
    %3225 = vmatprep.subr.mxu0 0.0
    %3226 = vmatpush1.msra.mxu0 0.0
    %3227 = vmatprep.subr.mxu0 0.0
    %3228 = vmatpush1.msra.mxu0 0.0
    %3229 = vmatprep.subr.mxu0 0.0
    %3230 = vmatpush1.msra.mxu0 0.0
    %3231 = vmatprep.subr.mxu0 0.0
    %3232 = vmatpush1.msra.mxu0 0.0
    %3233 = vmatprep.subr.mxu0 0.0
    %3234 = vmatpush1.msra.mxu0 0.0
    %3235 = vmatprep.subr.mxu0 0.0
    %3236 = vmatpush1.msra.mxu0 0.0
    %3237 = vmatprep.subr.mxu0 0.0
    %3238 = vmatpush1.msra.mxu0 0.0
    %3239 = vmatprep.subr.mxu0 0.0
    %3240 = vmatpush1.msra.mxu0 0.0
    %3241 = vmatprep.subr.mxu0 0.0
    %3242 = vmatpush1.msra.mxu0 0.0
    %3243 = vmatprep.subr.mxu0 0.0
    %3244 = vmatpush1.msra.mxu0 0.0
    %3245 = vmatprep.subr.mxu0 0.0
    %3246 = vmatpush1.msra.mxu0 0.0
    %3247 = vmatprep.subr.mxu0 0.0
    %3248 = vmatpush1.msra.mxu0 0.0
    %3249 = vmatprep.subr.mxu0 0.0
    %3250 = vmatpush1.msra.mxu0 0.0
    %3251 = vmatprep.subr.mxu0 0.0
    %3252 = vmatpush1.msra.mxu0 0.0
    %3253 = vmatprep.subr.mxu0 0.0
    %3254 = vmatpush1.msra.mxu0 0.0
    %3255 = vmatprep.subr.mxu0 0.0
    %3256 = vmatpush1.msra.mxu0 0.0
    %3257 = vmatprep.subr.mxu0 0.0
    %3258 = vmatpush1.msra.mxu0 0.0
    %3259 = vmatprep.subr.mxu0 0.0
    %3260 = vmatpush1.msra.mxu0 0.0
    %3261 = vmatprep.subr.mxu0 0.0
    %3262 = vmatpush1.msra.mxu0 0.0
    %3263 = vmatprep.subr.mxu0 0.0
    %3264 = vmatpush1.msra.mxu0 0.0
    %3265 = vmatprep.subr.mxu0 0.0
    %3266 = vmatpush1.msra.mxu0 0.0
    %3267 = vmatprep.mubr.f32.mxu0 0.0
    %3268 = vmatmul.mubr.f32.gmra.mrb[0].mxu0 %v3201
    %v3269 = vpop.f32.mrb[0].mxu0
    %v3270 = vadd.f32 %v3195, %v3269
    %v3271 = vpop.f32.mrb[0].mxu0
    %3272 = vdwg.mxu0
    %v3273 = vadd.f32 %v3270, %v866
    %v3274 = vxor.u32 %v3273, 2147483648
    %v3275 = vmul.f32 %v3274, 1.442695
    %v3276 = vpow.pop %v3275
    %v3277 = vadd.f32 %v3276, 1.0
    %v3278 = vrcp.pop %v3277
    %v3279 = vmul.f32 1.0, %v3278
    %v3280 = vtanh.pop %v3273
    %v3281 = vmul.f32 %v3279, %v2948
    %3283 = vrot.lane.b32.xlu0 %v3280, 64
    %v3284 = vpop.permute.xlu0 %3283
    %v3286 = vmul.f32 %v3279, %v3284
    %3288 = vrot.lane.b32.xlu0 %v3286, 32
    %v3289 = vpop.permute.xlu0 %3288
    %v3291 = vadd.f32 %v3281, %v3289
    %v3292 = vtanh.pop %v3291
    %3294 = vrot.lane.b32.xlu0 %v3292, 64
    %v3295 = vpop.permute.xlu0 %3294
    %v3297 = vmul.f32 %v3279, %v3295
    %v3298 = vld [vmem:[#allocation6] sm:$0xff]
    %v3299 = vld [vmem:[#allocation6 + $0x8] sm:$0xff]
    %v3300 = vld [vmem:[#allocation6 + $0x10] sm:$0xff]
    %v3301 = vld [vmem:[#allocation6 + $0x18] sm:$0xff]
    %v3302 = vld [vmem:[#allocation8] sm:$0x1]
    %v3304 = vlaneseq
    %v3305 = vshrl.u32 %v3304, 7
    %v3306 = vsub.s32 0, %v3305
    %v3307 = vrot.slane %v3302, %v3306
    %3310 = vrot.lane.b32.xlu0 %v3297, 32
    %v3311 = vpop.permute.xlu0 %3310
    %v3312 = vsel %vm522, %v3311, 0
    %3314 = vmatprep.subr.mxu0 0.0
    %3315 = vmatpush1.msra.mxu0 %v3298
    %3316 = vmatprep.subr.mxu0 0.0
    %3317 = vmatpush1.msra.mxu0 %v3299
    %3318 = vmatprep.subr.mxu0 0.0
    %3319 = vmatpush1.msra.mxu0 %v3300
    %3320 = vmatprep.subr.mxu0 0.0
    %3321 = vmatpush1.msra.mxu0 %v3301
    %3322 = vmatprep.subr.mxu0 0.0
    %3323 = vmatpush1.msra.mxu0 0.0
    %3324 = vmatprep.subr.mxu0 0.0
    %3325 = vmatpush1.msra.mxu0 0.0
    %3326 = vmatprep.subr.mxu0 0.0
    %3327 = vmatpush1.msra.mxu0 0.0
    %3328 = vmatprep.subr.mxu0 0.0
    %3329 = vmatpush1.msra.mxu0 0.0
    %3330 = vmatprep.subr.mxu0 0.0
    %3331 = vmatpush1.msra.mxu0 0.0
    %3332 = vmatprep.subr.mxu0 0.0
    %3333 = vmatpush1.msra.mxu0 0.0
    %3334 = vmatprep.subr.mxu0 0.0
    %3335 = vmatpush1.msra.mxu0 0.0
    %3336 = vmatprep.subr.mxu0 0.0
    %3337 = vmatpush1.msra.mxu0 0.0
    %3338 = vmatprep.subr.mxu0 0.0
    %3339 = vmatpush1.msra.mxu0 0.0
    %3340 = vmatprep.subr.mxu0 0.0
    %3341 = vmatpush1.msra.mxu0 0.0
    %3342 = vmatprep.subr.mxu0 0.0
    %3343 = vmatpush1.msra.mxu0 0.0
    %3344 = vmatprep.subr.mxu0 0.0
    %3345 = vmatpush1.msra.mxu0 0.0
    %3346 = vmatprep.subr.mxu0 0.0
    %3347 = vmatpush1.msra.mxu0 0.0
    %3348 = vmatprep.subr.mxu0 0.0
    %3349 = vmatpush1.msra.mxu0 0.0
    %3350 = vmatprep.subr.mxu0 0.0
    %3351 = vmatpush1.msra.mxu0 0.0
    %3352 = vmatprep.subr.mxu0 0.0
    %3353 = vmatpush1.msra.mxu0 0.0
    %3354 = vmatprep.subr.mxu0 0.0
    %3355 = vmatpush1.msra.mxu0 0.0
    %3356 = vmatprep.subr.mxu0 0.0
    %3357 = vmatpush1.msra.mxu0 0.0
    %3358 = vmatprep.subr.mxu0 0.0
    %3359 = vmatpush1.msra.mxu0 0.0
    %3360 = vmatprep.subr.mxu0 0.0
    %3361 = vmatpush1.msra.mxu0 0.0
    %3362 = vmatprep.subr.mxu0 0.0
    %3363 = vmatpush1.msra.mxu0 0.0
    %3364 = vmatprep.subr.mxu0 0.0
    %3365 = vmatpush1.msra.mxu0 0.0
    %3366 = vmatprep.subr.mxu0 0.0
    %3367 = vmatpush1.msra.mxu0 0.0
    %3368 = vmatprep.subr.mxu0 0.0
    %3369 = vmatpush1.msra.mxu0 0.0
    %3370 = vmatprep.subr.mxu0 0.0
    %3371 = vmatpush1.msra.mxu0 0.0
    %3372 = vmatprep.subr.mxu0 0.0
    %3373 = vmatpush1.msra.mxu0 0.0
    %3374 = vmatprep.subr.mxu0 0.0
    %3375 = vmatpush1.msra.mxu0 0.0
    %3376 = vmatprep.subr.mxu0 0.0
    %3377 = vmatpush1.msra.mxu0 0.0
    %3378 = vmatprep.mubr.f32.mxu0 0.0
    %3379 = vmatmul.mubr.f32.gmra.mrb[0].mxu0 %v3312
    %v3380 = vpop.f32.mrb[0].mxu0
    %v3381 = vadd.f32 %v3307, %v3380
    %v3382 = vpop.f32.mrb[0].mxu0
    %3383 = vdwg.mxu0
    %vm3384 = vcmask 523264
    %3385 = vst.msk [vmem:[%s12] sm:$0xff] %vm3384, %v3381
    %3387 = vst.msk [vmem:[%s13] sm:$0xff] %vm522, %v3200
    %3389 = vrot.lane.b32.xlu0 %v3116, 96
    %v3390 = vpop.permute.xlu0 %3389
    %3392 = vst.msk [vmem:[%s14] sm:$0xff] %vm522, %v3390
    %s3394 = scalar_lea.vmem %s13, 8
    %3395 = vst.msk [vmem:[%s3394] sm:$0xff] %vm522, %v3311
    %3397 = vrot.lane.b32.xlu0 %v3291, 96
    %v3398 = vpop.permute.xlu0 %3397
    %s3400 = scalar_lea.vmem %s14, 8
    %3401 = vst.msk [vmem:[%s3400] sm:$0xff] %vm522, %v3398
    // Predicated region
    $region58: #{forward.1} parent=1 // pred_check
      _
    $region59: #{forward.1} parent=1 // pred_check_branch
      %3403 = sbr.rel (0) target = $region61
    $region60: #{forward.1} parent=1 // pred_region
      _
    $region61: #{forward.1} parent=1 // pred_fallthru
      _
    // Predicated region
    $region62: #{forward.1} parent=1 // pred_check
      _
    $region63: #{forward.1} parent=1 // pred_check_branch
      %3405 = sbr.rel (0) target = $region65
    $region64: #{forward.1} parent=1 // pred_region
      _
    $region65: #{forward.1} parent=1 // pred_fallthru
      _
    // Predicated region
    $region66: #{forward.1} parent=1 // pred_check
      _
    $region67: #{forward.1} parent=1 // pred_check_branch
      %3407 = sbr.rel (0) target = $region69
    $region68: #{forward.1} parent=1 // pred_region
      _
    $region69: #{forward.1} parent=1 // pred_fallthru
      _
    // Predicated region
    $region70: #{forward.1} parent=1 // pred_check
      _
    $region71: #{forward.1} parent=1 // pred_check_branch
      %3409 = sbr.rel (0) target = $region73
    $region72: #{forward.1} parent=1 // pred_region
      _
    $region73: #{forward.1} parent=1 // pred_fallthru
      _
    // Predicated region
    $region74: #{forward.1} parent=1 // pred_check
      _
    $region75: #{forward.1} parent=1 // pred_check_branch
      %3411 = sbr.rel (0) target = $region77
    $region76: #{forward.1} parent=1 // pred_region
      _
    $region77: #{forward.1} parent=1 // pred_fallthru
      _
    // Predicated region
    $region78: #{forward.1} parent=1 // pred_check
      _
    $region79: #{forward.1} parent=1 // pred_check_branch
      %3413 = sbr.rel (0) target = $region81
    $region80: #{forward.1} parent=1 // pred_region
      _
    $region81: #{forward.1} parent=1 // pred_fallthru
      _
    %3414 = vsyncpa [#allocation5], 1
    %3415 = vsyncpa [#allocation7], 1

</llo_original>
